<compile_context>
chip_gen: v7x
topology: tpu7x:2x2x1
jax: 0.10.0
libtpu: 0.0.40
codegen_flags: <defaults>
</compile_context>

<pallas_src>
import functools
import math

import jax
import jax.numpy as jnp
from jax.experimental import pallas as pl
from jax.experimental.pallas import tpu as pltpu

# ----------------------------- config (small, ViT-shaped) -----------------------------
CFG = dict(
    image=16,          # H = W
    channels=3,        # RGB like the real model
    patch=8,           # -> 2x2 = 4 patches
    hidden=32,         # hidden_size
    heads=4,           # num_attention_heads  (head_dim = 8)
    layers=2,          # num_hidden_layers
    intermediate=64,   # intermediate_size = 4 * hidden
    num_labels=3,      # ViT.NUM_LABELS
    eps=1e-12,         # ViTConfig.layer_norm_eps
)

# --------------------------------- in-kernel helpers -----------------------------------

def _dot_bf16(x, w):
    """bf16 MXU matmul with f32 accumulation."""
    return jnp.dot(x.astype(jnp.bfloat16), w.astype(jnp.bfloat16),
                   preferred_element_type=jnp.float32)


def _layernorm(x, g, b, eps):
    """x: (M, D) f32, g/b: (1, D)."""
    mean = jnp.mean(x, axis=-1, keepdims=True)
    xc = x - mean
    var = jnp.mean(xc * xc, axis=-1, keepdims=True)
    return xc * jax.lax.rsqrt(var + eps) * g.astype(jnp.float32) + b.astype(jnp.float32)


def _gelu_tanh(y):
    # TODO(synk): HF ViT "gelu" is the exact erf form; tanh approximation used here for
    #             guaranteed Mosaic transcendental lowering (tanh/exp run on the EUP).
    c = math.sqrt(2.0 / math.pi)
    return 0.5 * y * (1.0 + jnp.tanh(c * (y + 0.044715 * y * y * y)))


# --------------------------------- fused Pallas kernel --------------------------------

def _vit_forward_kernel(tokens_ref, patch_w_ref, prefix_ref, bias_ref,
                        ln1_g_ref, ln1_b_ref, wqkv_ref, bqkv_ref,
                        wo_ref, bo_ref, ln2_g_ref, ln2_b_ref,
                        w1_ref, b1_ref, w2_ref, b2_ref,
                        lnf_g_ref, lnf_b_ref, cls_sel_ref, cls_w_ref, cls_b_ref,
                        o_ref, *, layers, nh, dh, eps):
    """Whole ViT forward on the (M=B*S, D) residual stream in a single grid step."""
    D = nh * dh
    scale = 1.0 / math.sqrt(dh)
    bias = bias_ref[...]                         # (M, M) block-diagonal additive mask

    # --- patch embedding + (pos | cls-token | conv-bias) prefix -> residual stream ---
    # CLS rows of `tokens` are zero, so the conv bias/cls-token/pos terms all live in
    # the precomputed per-row `prefix` slab; one lane-dense (M, K)x(K, D) matmul.
    h = _dot_bf16(tokens_ref[...], patch_w_ref[...]) + prefix_ref[...].astype(jnp.float32)

    # --- transformer encoder: statically unrolled over layers, weights sliced from the
    #     stacked (layers, ...) refs, everything stays in VMEM/vregs ---
    for l in range(layers):
        # LN1 + fused QKV projection: one lane-dense (M, 3*D) matmul.
        ln1 = _layernorm(h, ln1_g_ref[l], ln1_b_ref[l], eps)
        qkv = _dot_bf16(ln1, wqkv_ref[l]) + bqkv_ref[l].astype(jnp.float32)

        # Multi-head self-attention: heads are static lane slices of the QKV slab;
        # cross-image attention is killed by the -1e30 additive bias, so all (batch,
        # head) slices run inside this single grid step with no reshapes/transposes.
        head_outs = []
        for hd in range(nh):
            q_h = qkv[:, hd * dh:(hd + 1) * dh]
            k_h = qkv[:, D + hd * dh:D + (hd + 1) * dh]
            v_h = qkv[:, 2 * D + hd * dh:2 * D + (hd + 1) * dh]
            s = jnp.einsum("qd,kd->qk",
                           q_h.astype(jnp.bfloat16), k_h.astype(jnp.bfloat16),
                           preferred_element_type=jnp.float32) * scale + bias
            s = s - jnp.max(s, axis=-1, keepdims=True)
            p = jnp.exp(s)
            p = p * pl.reciprocal(jnp.sum(p, axis=-1, keepdims=True), approx=True)
            head_outs.append(_dot_bf16(p, v_h))
        attn = jnp.concatenate(head_outs, axis=-1)                 # (M, D) lane-dense

        h = h + _dot_bf16(attn, wo_ref[l]) + bo_ref[l].astype(jnp.float32)   # residual 1

        # LN2 + MLP.
        ln2 = _layernorm(h, ln2_g_ref[l], ln2_b_ref[l], eps)
        m = _gelu_tanh(_dot_bf16(ln2, w1_ref[l]) + b1_ref[l].astype(jnp.float32))
        h = h + _dot_bf16(m, w2_ref[l]) + b2_ref[l].astype(jnp.float32)      # residual 2

    # --- CLS-row selection (exact f32 one-hot matmul), final LN + classifier ---
    cls = jnp.dot(cls_sel_ref[...], h, preferred_element_type=jnp.float32)   # (B, D)
    cls = _layernorm(cls, lnf_g_ref[...], lnf_b_ref[...], eps)
    o_ref[...] = (_dot_bf16(cls, cls_w_ref[...])
                  + cls_b_ref[...].astype(jnp.float32)).astype(o_ref.dtype)


# ------------------------------- Pallas call wrapper -----------------------------------

def _full_spec(shape):
    nd = len(shape)
    return pl.BlockSpec(shape, lambda i, _nd=nd: (0,) * _nd)


def pallas_vit_forward(tokens, patch_w, prefix, attn_bias, stacked,
                       lnf_g, lnf_b, cls_sel, cls_w, cls_b,
                       *, layers, nh, dh, eps, num_labels):
    D = patch_w.shape[1]
    B = cls_sel.shape[0]
    args = [tokens, patch_w, prefix, attn_bias,
            stacked["ln1_g"], stacked["ln1_b"], stacked["wqkv"], stacked["bqkv"],
            stacked["wo"], stacked["bo"], stacked["ln2_g"], stacked["ln2_b"],
            stacked["w1"], stacked["b1"], stacked["w2"], stacked["b2"],
            lnf_g.reshape(1, D), lnf_b.reshape(1, D),
            cls_sel, cls_w, cls_b.reshape(1, num_labels)]
    # NOTE(scale): at these toy sizes the whole model is one grid step on one TensorCore;
    # at real ViT-base scale the residual-stream rows would become a "parallel" grid axis
    # and the matmuls tiled (128/256-aligned, f32 VMEM accumulators) against VMEM limits.
    return pl.pallas_call(
        functools.partial(_vit_forward_kernel, layers=layers, nh=nh, dh=dh, eps=eps),
        out_shape=jax.ShapeDtypeStruct((B, num_labels), jnp.float32),
        grid=(1,),
        in_specs=[_full_spec(a.shape) for a in args],
        out_specs=_full_spec((B, num_labels)),
        compiler_params=pltpu.CompilerParams(dimension_semantics=("arbitrary",)),
    )(*args)


# ---------------------------------- parameters ----------------------------------------

def init_params(key, cfg):
    D = cfg["hidden"]
    C = cfg["channels"]
    P = cfg["patch"]
    I = cfg["intermediate"]
    n_patches = (cfg["image"] // P) ** 2
    S = n_patches + 1

    def nrm(k, shape, std=0.02):
        return (std * jax.random.normal(k, shape)).astype(jnp.float32)

    keys = iter(jax.random.split(key, 4 + 4 * cfg["layers"]))

    params = {
        "patch_w": nrm(next(keys), (C * P * P, D)),    # Conv2d weight, flattened (c,ph,pw)
        "patch_b": jnp.zeros((D,), jnp.float32),
        "cls": nrm(next(keys), (1, 1, D)),
        "pos": nrm(next(keys), (1, S, D)),
        "lnf_g": jnp.ones((D,), jnp.float32),
        "lnf_b": jnp.zeros((D,), jnp.float32),
        "cls_w": nrm(next(keys), (D, cfg["num_labels"])),
        "cls_b": jnp.zeros((cfg["num_labels"],), jnp.float32),
        "layers": [],
    }
    for _ in range(cfg["layers"]):
        params["layers"].append({
            "ln1_g": jnp.ones((D,), jnp.float32), "ln1_b": jnp.zeros((D,), jnp.float32),
            "wqkv": nrm(next(keys), (D, 3 * D)),       # [wq | wk | wv] packed
            "bqkv": jnp.zeros((3 * D,), jnp.float32),
            "wo": nrm(next(keys), (D, D)), "bo": jnp.zeros((D,), jnp.float32),
            "ln2_g": jnp.ones((D,), jnp.float32), "ln2_b": jnp.zeros((D,), jnp.float32),
            "w1": nrm(next(keys), (D, I)), "b1": jnp.zeros((I,), jnp.float32),
            "w2": nrm(next(keys), (I, D)), "b2": jnp.zeros((D,), jnp.float32),
        })
    return params


def _stack_layers(layers_list):
    """Stack per-layer params along a leading axis; 1-D vectors become (L, 1, dim)."""
    out = {}
    for name in layers_list[0]:
        arrs = [a if a.ndim == 2 else a.reshape(1, -1)
                for a in (lyr[name] for lyr in layers_list)]
        out[name] = jnp.stack(arrs, axis=0)
    return out


# ----------------------------------- forward pass --------------------------------------

def vit_forward(x, params, cfg):
    """x: (B, C, H, W) float32 (NCHW, like PyTorch). Returns logits (B, num_labels)."""
    B, C, H, W = x.shape
    P = cfg["patch"]
    D = cfg["hidden"]
    nh = cfg["heads"]
    dh = D // nh
    eps = cfg["eps"]
    L = cfg["num_labels"]
    nH, nW = H // P, W // P
    n_patch = nH * nW
    S = n_patch + 1
    M = B * S
    K = C * P * P

    # --- im2col patch extraction (Conv2d k=s=P); (c,ph,pw) flatten order matches
    #     flattening the Conv2d weight (D,C,P,P) -> (C*P*P, D). ---
    patches = x.reshape(B, C, nH, P, nW, P).transpose(0, 2, 4, 1, 3, 5)
    patches = patches.reshape(B, n_patch, K)
    # Token rows: one zero row per image at the CLS position, then that image's patches.
    tokens = jnp.concatenate([jnp.zeros((B, 1, K), x.dtype), patches], axis=1).reshape(M, K)

    # Per-row additive prefix: position embedding + (CLS token on row 0 | conv bias else).
    is_cls = (jnp.arange(S) == 0)[None, :, None]
    prefix = params["pos"] + jnp.where(is_cls, params["cls"],
                                       params["patch_b"][None, None, :])
    prefix = jnp.broadcast_to(prefix, (B, S, D)).reshape(M, D)

    # Block-diagonal additive attention bias: tokens only attend within their own image.
    img_id = jnp.arange(M, dtype=jnp.int32) // S
    attn_bias = jnp.where(img_id[:, None] == img_id[None, :], 0.0, -1e30).astype(jnp.float32)

    # One-hot CLS-row selector (exact f32 matmul inside the kernel).
    cls_sel = (jnp.arange(M)[None, :] == (jnp.arange(B) * S)[:, None]).astype(jnp.float32)

    stacked = _stack_layers(params["layers"])

    # --- ONE fused pallas_call for the whole forward ---
    return pallas_vit_forward(tokens, params["patch_w"], prefix, attn_bias, stacked,
                              params["lnf_g"], params["lnf_b"], cls_sel,
                              params["cls_w"], params["cls_b"],
                              layers=cfg["layers"], nh=nh, dh=dh, eps=eps, num_labels=L)


# -------------------------------------- main --------------------------------------------

if __name__ == "__main__":
    key = jax.random.PRNGKey(0)
    k_param, k_input = jax.random.split(key)

    params = init_params(k_param, CFG)
    x = jax.random.normal(
        k_input, (2, CFG["channels"], CFG["image"], CFG["image"]), dtype=jnp.float32
    )

    fwd = jax.jit(functools.partial(vit_forward, cfg=CFG))
    logits = fwd(x, params)
    jax.block_until_ready(logits)

    assert logits.shape == (2, CFG["num_labels"])
    assert bool(jnp.all(jnp.isfinite(logits)))
    print("KERNEL_OK")
</pallas_src>

<mosaic_0001>
module attributes {stable_mosaic.version = 11 : i64} {
  func.func @_vit_forward_kernel(%arg0: i32, %arg1: memref<10x192xf32, #tpu.memory_space<vmem>>, %arg2: memref<192x32xf32, #tpu.memory_space<vmem>>, %arg3: memref<10x32xf32, #tpu.memory_space<vmem>>, %arg4: memref<10x10xf32, #tpu.memory_space<vmem>>, %arg5: memref<2x1x32xf32, #tpu.memory_space<vmem>>, %arg6: memref<2x1x32xf32, #tpu.memory_space<vmem>>, %arg7: memref<2x32x96xf32, #tpu.memory_space<vmem>>, %arg8: memref<2x1x96xf32, #tpu.memory_space<vmem>>, %arg9: memref<2x32x32xf32, #tpu.memory_space<vmem>>, %arg10: memref<2x1x32xf32, #tpu.memory_space<vmem>>, %arg11: memref<2x1x32xf32, #tpu.memory_space<vmem>>, %arg12: memref<2x1x32xf32, #tpu.memory_space<vmem>>, %arg13: memref<2x32x64xf32, #tpu.memory_space<vmem>>, %arg14: memref<2x1x64xf32, #tpu.memory_space<vmem>>, %arg15: memref<2x64x32xf32, #tpu.memory_space<vmem>>, %arg16: memref<2x1x32xf32, #tpu.memory_space<vmem>>, %arg17: memref<1x32xf32, #tpu.memory_space<vmem>>, %arg18: memref<1x32xf32, #tpu.memory_space<vmem>>, %arg19: memref<2x10xf32, #tpu.memory_space<vmem>>, %arg20: memref<32x3xf32, #tpu.memory_space<vmem>>, %arg21: memref<1x3xf32, #tpu.memory_space<vmem>>, %arg22: memref<2x3xf32, #tpu.memory_space<vmem>>) attributes {dimension_semantics = [#tpu.dimension_semantics<arbitrary>], iteration_bounds = array<i64: 1>, scalar_prefetch = 0 : i64, scratch_operands = 0 : i64, tpu.core_type = #tpu.core_type<tc>, window_params = [{pipeline_mode = #tpu.pipeline_mode<synchronous>, transform_indices = @transform_0, window_bounds = array<i64: 10, 192>}, {pipeline_mode = #tpu.pipeline_mode<synchronous>, transform_indices = @transform_1, window_bounds = array<i64: 192, 32>}, {pipeline_mode = #tpu.pipeline_mode<synchronous>, transform_indices = @transform_2, window_bounds = array<i64: 10, 32>}, {pipeline_mode = #tpu.pipeline_mode<synchronous>, transform_indices = @transform_3, window_bounds = array<i64: 10, 10>}, {pipeline_mode = #tpu.pipeline_mode<synchronous>, transform_indices = @transform_4, window_bounds = array<i64: 2, 1, 32>}, {pipeline_mode = #tpu.pipeline_mode<synchronous>, transform_indices = @transform_5, window_bounds = array<i64: 2, 1, 32>}, {pipeline_mode = #tpu.pipeline_mode<synchronous>, transform_indices = @transform_6, window_bounds = array<i64: 2, 32, 96>}, {pipeline_mode = #tpu.pipeline_mode<synchronous>, transform_indices = @transform_7, window_bounds = array<i64: 2, 1, 96>}, {pipeline_mode = #tpu.pipeline_mode<synchronous>, transform_indices = @transform_8, window_bounds = array<i64: 2, 32, 32>}, {pipeline_mode = #tpu.pipeline_mode<synchronous>, transform_indices = @transform_9, window_bounds = array<i64: 2, 1, 32>}, {pipeline_mode = #tpu.pipeline_mode<synchronous>, transform_indices = @transform_10, window_bounds = array<i64: 2, 1, 32>}, {pipeline_mode = #tpu.pipeline_mode<synchronous>, transform_indices = @transform_11, window_bounds = array<i64: 2, 1, 32>}, {pipeline_mode = #tpu.pipeline_mode<synchronous>, transform_indices = @transform_12, window_bounds = array<i64: 2, 32, 64>}, {pipeline_mode = #tpu.pipeline_mode<synchronous>, transform_indices = @transform_13, window_bounds = array<i64: 2, 1, 64>}, {pipeline_mode = #tpu.pipeline_mode<synchronous>, transform_indices = @transform_14, window_bounds = array<i64: 2, 64, 32>}, {pipeline_mode = #tpu.pipeline_mode<synchronous>, transform_indices = @transform_15, window_bounds = array<i64: 2, 1, 32>}, {pipeline_mode = #tpu.pipeline_mode<synchronous>, transform_indices = @transform_16, window_bounds = array<i64: 1, 32>}, {pipeline_mode = #tpu.pipeline_mode<synchronous>, transform_indices = @transform_17, window_bounds = array<i64: 1, 32>}, {pipeline_mode = #tpu.pipeline_mode<synchronous>, transform_indices = @transform_18, window_bounds = array<i64: 2, 10>}, {pipeline_mode = #tpu.pipeline_mode<synchronous>, transform_indices = @transform_19, window_bounds = array<i64: 32, 3>}, {pipeline_mode = #tpu.pipeline_mode<synchronous>, transform_indices = @transform_20, window_bounds = array<i64: 1, 3>}, {pipeline_mode = #tpu.pipeline_mode<synchronous>, transform_indices = @transform_21, window_bounds = array<i64: 2, 3>}]} {
    %c0 = arith.constant 0 : index
    %c0_0 = arith.constant 0 : index
    %0 = vector.load %arg4[%c0, %c0_0] : memref<10x10xf32, #tpu.memory_space<vmem>>, vector<10x10xf32>
    %c0_1 = arith.constant 0 : index
    %c0_2 = arith.constant 0 : index
    %1 = vector.load %arg1[%c0_1, %c0_2] : memref<10x192xf32, #tpu.memory_space<vmem>>, vector<10x192xf32>
    %c0_3 = arith.constant 0 : index
    %c0_4 = arith.constant 0 : index
    %2 = vector.load %arg2[%c0_3, %c0_4] : memref<192x32xf32, #tpu.memory_space<vmem>>, vector<192x32xf32>
    %3 = arith.truncf %1 : vector<10x192xf32> to vector<10x192xbf16>
    %4 = arith.truncf %2 : vector<192x32xf32> to vector<192x32xbf16>
    %cst = arith.constant dense<0.000000e+00> : vector<10x32xf32>
    %5 = tpu.matmul %3, %4, %cst {dimension_numbers = #tpu.dot_dimension_numbers<[1], [0], [0], [1], [0, 0, 1, 1], [], []>} : vector<10x192xbf16>, vector<192x32xbf16>, vector<10x32xf32> -> vector<10x32xf32>
    %c0_5 = arith.constant 0 : index
    %c0_6 = arith.constant 0 : index
    %6 = vector.load %arg3[%c0_5, %c0_6] : memref<10x32xf32, #tpu.memory_space<vmem>>, vector<10x32xf32>
    %7 = arith.addf %5, %6 : vector<10x32xf32>
    %c0_7 = arith.constant 0 : index
    %c0_8 = arith.constant 0 : index
    %c0_9 = arith.constant 0 : index
    %8 = vector.load %arg5[%c0_7, %c0_8, %c0_9] : memref<2x1x32xf32, #tpu.memory_space<vmem>>, vector<1x1x32xf32>
    %9 = vector.shape_cast %8 : vector<1x1x32xf32> to vector<1x32xf32>
    %c0_10 = arith.constant 0 : index
    %c0_11 = arith.constant 0 : index
    %c0_12 = arith.constant 0 : index
    %10 = vector.load %arg6[%c0_10, %c0_11, %c0_12] : memref<2x1x32xf32, #tpu.memory_space<vmem>>, vector<1x1x32xf32>
    %11 = vector.shape_cast %10 : vector<1x1x32xf32> to vector<1x32xf32>
    %cst_13 = arith.constant dense<0.000000e+00> : vector<10xf32>
    %12 = vector.multi_reduction <add>, %7, %cst_13 [1] : vector<10x32xf32> to vector<10xf32>
    %13 = vector.shape_cast %12 : vector<10xf32> to vector<10x1xf32>
    %cst_14 = arith.constant 3.200000e+01 : f32
    %14 = vector.broadcast %cst_14 : f32 to vector<10x1xf32>
    %15 = arith.divf %13, %14 : vector<10x1xf32>
    %16 = vector.broadcast %15 : vector<10x1xf32> to vector<10x32xf32>
    %17 = arith.subf %7, %16 : vector<10x32xf32>
    %18 = arith.mulf %17, %17 : vector<10x32xf32>
    %cst_15 = arith.constant dense<0.000000e+00> : vector<10xf32>
    %19 = vector.multi_reduction <add>, %18, %cst_15 [1] : vector<10x32xf32> to vector<10xf32>
    %20 = vector.shape_cast %19 : vector<10xf32> to vector<10x1xf32>
    %cst_16 = arith.constant 3.200000e+01 : f32
    %21 = vector.broadcast %cst_16 : f32 to vector<10x1xf32>
    %22 = arith.divf %20, %21 : vector<10x1xf32>
    %cst_17 = arith.constant 9.99999996E-13 : f32
    %23 = vector.broadcast %cst_17 : f32 to vector<10x1xf32>
    %24 = arith.addf %22, %23 : vector<10x1xf32>
    %25 = math.rsqrt %24 : vector<10x1xf32>
    %26 = vector.broadcast %25 : vector<10x1xf32> to vector<10x32xf32>
    %27 = arith.mulf %17, %26 : vector<10x32xf32>
    %28 = vector.broadcast %9 : vector<1x32xf32> to vector<10x32xf32>
    %29 = arith.mulf %27, %28 : vector<10x32xf32>
    %30 = vector.broadcast %11 : vector<1x32xf32> to vector<10x32xf32>
    %31 = arith.addf %29, %30 : vector<10x32xf32>
    %c0_18 = arith.constant 0 : index
    %c0_19 = arith.constant 0 : index
    %c0_20 = arith.constant 0 : index
    %32 = vector.load %arg7[%c0_18, %c0_19, %c0_20] : memref<2x32x96xf32, #tpu.memory_space<vmem>>, vector<1x32x96xf32>
    %33 = vector.shape_cast %32 : vector<1x32x96xf32> to vector<32x96xf32>
    %34 = arith.truncf %31 : vector<10x32xf32> to vector<10x32xbf16>
    %35 = arith.truncf %33 : vector<32x96xf32> to vector<32x96xbf16>
    %cst_21 = arith.constant dense<0.000000e+00> : vector<10x96xf32>
    %36 = tpu.matmul %34, %35, %cst_21 {dimension_numbers = #tpu.dot_dimension_numbers<[1], [0], [0], [1], [0, 0, 1, 1], [], []>} : vector<10x32xbf16>, vector<32x96xbf16>, vector<10x96xf32> -> vector<10x96xf32>
    %c0_22 = arith.constant 0 : index
    %c0_23 = arith.constant 0 : index
    %c0_24 = arith.constant 0 : index
    %37 = vector.load %arg8[%c0_22, %c0_23, %c0_24] : memref<2x1x96xf32, #tpu.memory_space<vmem>>, vector<1x1x96xf32>
    %38 = vector.shape_cast %37 : vector<1x1x96xf32> to vector<1x96xf32>
    %39 = vector.broadcast %38 : vector<1x96xf32> to vector<10x96xf32>
    %40 = arith.addf %36, %39 : vector<10x96xf32>
    %41 = vector.extract_strided_slice %40 {offsets = [0, 0], sizes = [10, 8], strides = [1, 1]} : vector<10x96xf32> to vector<10x8xf32>
    %42 = vector.extract_strided_slice %40 {offsets = [0, 32], sizes = [10, 8], strides = [1, 1]} : vector<10x96xf32> to vector<10x8xf32>
    %43 = vector.extract_strided_slice %40 {offsets = [0, 64], sizes = [10, 8], strides = [1, 1]} : vector<10x96xf32> to vector<10x8xf32>
    %44 = arith.truncf %41 : vector<10x8xf32> to vector<10x8xbf16>
    %45 = arith.truncf %42 : vector<10x8xf32> to vector<10x8xbf16>
    "tpu.trace_start"() <{level = 10 : i32, message = "qd,kd->qk"}> : () -> ()
    %cst_25 = arith.constant dense<0.000000e+00> : vector<10x10xf32>
    %46 = tpu.matmul %44, %45, %cst_25 {dimension_numbers = #tpu.dot_dimension_numbers<[1], [1], [0], [0], [0, 0, 1, 0], [], []>} : vector<10x8xbf16>, vector<10x8xbf16>, vector<10x10xf32> -> vector<10x10xf32>
    "tpu.trace_stop"() : () -> ()
    %cst_26 = arith.constant 0.353553385 : f32
    %47 = vector.broadcast %cst_26 : f32 to vector<10x10xf32>
    %48 = arith.mulf %46, %47 : vector<10x10xf32>
    %49 = arith.addf %48, %0 : vector<10x10xf32>
    %cst_27 = arith.constant dense<0xFF800000> : vector<10xf32>
    %50 = vector.multi_reduction <maximumf>, %49, %cst_27 [1] : vector<10x10xf32> to vector<10xf32>
    %51 = vector.shape_cast %50 : vector<10xf32> to vector<10x1xf32>
    %52 = vector.broadcast %51 : vector<10x1xf32> to vector<10x10xf32>
    %53 = arith.subf %49, %52 : vector<10x10xf32>
    %54 = math.exp %53 : vector<10x10xf32>
    %cst_28 = arith.constant dense<0.000000e+00> : vector<10xf32>
    %55 = vector.multi_reduction <add>, %54, %cst_28 [1] : vector<10x10xf32> to vector<10xf32>
    %56 = vector.shape_cast %55 : vector<10xf32> to vector<10x1xf32>
    %57 = tpu.reciprocal %56 {approx = true} : vector<10x1xf32> -> vector<10x1xf32>
    %58 = vector.broadcast %57 : vector<10x1xf32> to vector<10x10xf32>
    %59 = arith.mulf %54, %58 : vector<10x10xf32>
    %60 = arith.truncf %59 : vector<10x10xf32> to vector<10x10xbf16>
    %61 = arith.truncf %43 : vector<10x8xf32> to vector<10x8xbf16>
    %cst_29 = arith.constant dense<0.000000e+00> : vector<10x8xf32>
    %62 = tpu.matmul %60, %61, %cst_29 {dimension_numbers = #tpu.dot_dimension_numbers<[1], [0], [0], [1], [0, 0, 1, 1], [], []>} : vector<10x10xbf16>, vector<10x8xbf16>, vector<10x8xf32> -> vector<10x8xf32>
    %63 = vector.extract_strided_slice %40 {offsets = [0, 8], sizes = [10, 8], strides = [1, 1]} : vector<10x96xf32> to vector<10x8xf32>
    %64 = vector.extract_strided_slice %40 {offsets = [0, 40], sizes = [10, 8], strides = [1, 1]} : vector<10x96xf32> to vector<10x8xf32>
    %65 = vector.extract_strided_slice %40 {offsets = [0, 72], sizes = [10, 8], strides = [1, 1]} : vector<10x96xf32> to vector<10x8xf32>
    %66 = arith.truncf %63 : vector<10x8xf32> to vector<10x8xbf16>
    %67 = arith.truncf %64 : vector<10x8xf32> to vector<10x8xbf16>
    "tpu.trace_start"() <{level = 10 : i32, message = "qd,kd->qk"}> : () -> ()
    %cst_30 = arith.constant dense<0.000000e+00> : vector<10x10xf32>
    %68 = tpu.matmul %66, %67, %cst_30 {dimension_numbers = #tpu.dot_dimension_numbers<[1], [1], [0], [0], [0, 0, 1, 0], [], []>} : vector<10x8xbf16>, vector<10x8xbf16>, vector<10x10xf32> -> vector<10x10xf32>
    "tpu.trace_stop"() : () -> ()
    %cst_31 = arith.constant 0.353553385 : f32
    %69 = vector.broadcast %cst_31 : f32 to vector<10x10xf32>
    %70 = arith.mulf %68, %69 : vector<10x10xf32>
    %71 = arith.addf %70, %0 : vector<10x10xf32>
    %cst_32 = arith.constant dense<0xFF800000> : vector<10xf32>
    %72 = vector.multi_reduction <maximumf>, %71, %cst_32 [1] : vector<10x10xf32> to vector<10xf32>
    %73 = vector.shape_cast %72 : vector<10xf32> to vector<10x1xf32>
    %74 = vector.broadcast %73 : vector<10x1xf32> to vector<10x10xf32>
    %75 = arith.subf %71, %74 : vector<10x10xf32>
    %76 = math.exp %75 : vector<10x10xf32>
    %cst_33 = arith.constant dense<0.000000e+00> : vector<10xf32>
    %77 = vector.multi_reduction <add>, %76, %cst_33 [1] : vector<10x10xf32> to vector<10xf32>
    %78 = vector.shape_cast %77 : vector<10xf32> to vector<10x1xf32>
    %79 = tpu.reciprocal %78 {approx = true} : vector<10x1xf32> -> vector<10x1xf32>
    %80 = vector.broadcast %79 : vector<10x1xf32> to vector<10x10xf32>
    %81 = arith.mulf %76, %80 : vector<10x10xf32>
    %82 = arith.truncf %81 : vector<10x10xf32> to vector<10x10xbf16>
    %83 = arith.truncf %65 : vector<10x8xf32> to vector<10x8xbf16>
    %cst_34 = arith.constant dense<0.000000e+00> : vector<10x8xf32>
    %84 = tpu.matmul %82, %83, %cst_34 {dimension_numbers = #tpu.dot_dimension_numbers<[1], [0], [0], [1], [0, 0, 1, 1], [], []>} : vector<10x10xbf16>, vector<10x8xbf16>, vector<10x8xf32> -> vector<10x8xf32>
    %85 = vector.extract_strided_slice %40 {offsets = [0, 16], sizes = [10, 8], strides = [1, 1]} : vector<10x96xf32> to vector<10x8xf32>
    %86 = vector.extract_strided_slice %40 {offsets = [0, 48], sizes = [10, 8], strides = [1, 1]} : vector<10x96xf32> to vector<10x8xf32>
    %87 = vector.extract_strided_slice %40 {offsets = [0, 80], sizes = [10, 8], strides = [1, 1]} : vector<10x96xf32> to vector<10x8xf32>
    %88 = arith.truncf %85 : vector<10x8xf32> to vector<10x8xbf16>
    %89 = arith.truncf %86 : vector<10x8xf32> to vector<10x8xbf16>
    "tpu.trace_start"() <{level = 10 : i32, message = "qd,kd->qk"}> : () -> ()
    %cst_35 = arith.constant dense<0.000000e+00> : vector<10x10xf32>
    %90 = tpu.matmul %88, %89, %cst_35 {dimension_numbers = #tpu.dot_dimension_numbers<[1], [1], [0], [0], [0, 0, 1, 0], [], []>} : vector<10x8xbf16>, vector<10x8xbf16>, vector<10x10xf32> -> vector<10x10xf32>
    "tpu.trace_stop"() : () -> ()
    %cst_36 = arith.constant 0.353553385 : f32
    %91 = vector.broadcast %cst_36 : f32 to vector<10x10xf32>
    %92 = arith.mulf %90, %91 : vector<10x10xf32>
    %93 = arith.addf %92, %0 : vector<10x10xf32>
    %cst_37 = arith.constant dense<0xFF800000> : vector<10xf32>
    %94 = vector.multi_reduction <maximumf>, %93, %cst_37 [1] : vector<10x10xf32> to vector<10xf32>
    %95 = vector.shape_cast %94 : vector<10xf32> to vector<10x1xf32>
    %96 = vector.broadcast %95 : vector<10x1xf32> to vector<10x10xf32>
    %97 = arith.subf %93, %96 : vector<10x10xf32>
    %98 = math.exp %97 : vector<10x10xf32>
    %cst_38 = arith.constant dense<0.000000e+00> : vector<10xf32>
    %99 = vector.multi_reduction <add>, %98, %cst_38 [1] : vector<10x10xf32> to vector<10xf32>
    %100 = vector.shape_cast %99 : vector<10xf32> to vector<10x1xf32>
    %101 = tpu.reciprocal %100 {approx = true} : vector<10x1xf32> -> vector<10x1xf32>
    %102 = vector.broadcast %101 : vector<10x1xf32> to vector<10x10xf32>
    %103 = arith.mulf %98, %102 : vector<10x10xf32>
    %104 = arith.truncf %103 : vector<10x10xf32> to vector<10x10xbf16>
    %105 = arith.truncf %87 : vector<10x8xf32> to vector<10x8xbf16>
    %cst_39 = arith.constant dense<0.000000e+00> : vector<10x8xf32>
    %106 = tpu.matmul %104, %105, %cst_39 {dimension_numbers = #tpu.dot_dimension_numbers<[1], [0], [0], [1], [0, 0, 1, 1], [], []>} : vector<10x10xbf16>, vector<10x8xbf16>, vector<10x8xf32> -> vector<10x8xf32>
    %107 = vector.extract_strided_slice %40 {offsets = [0, 24], sizes = [10, 8], strides = [1, 1]} : vector<10x96xf32> to vector<10x8xf32>
    %108 = vector.extract_strided_slice %40 {offsets = [0, 56], sizes = [10, 8], strides = [1, 1]} : vector<10x96xf32> to vector<10x8xf32>
    %109 = vector.extract_strided_slice %40 {offsets = [0, 88], sizes = [10, 8], strides = [1, 1]} : vector<10x96xf32> to vector<10x8xf32>
    %110 = arith.truncf %107 : vector<10x8xf32> to vector<10x8xbf16>
    %111 = arith.truncf %108 : vector<10x8xf32> to vector<10x8xbf16>
    "tpu.trace_start"() <{level = 10 : i32, message = "qd,kd->qk"}> : () -> ()
    %cst_40 = arith.constant dense<0.000000e+00> : vector<10x10xf32>
    %112 = tpu.matmul %110, %111, %cst_40 {dimension_numbers = #tpu.dot_dimension_numbers<[1], [1], [0], [0], [0, 0, 1, 0], [], []>} : vector<10x8xbf16>, vector<10x8xbf16>, vector<10x10xf32> -> vector<10x10xf32>
    "tpu.trace_stop"() : () -> ()
    %cst_41 = arith.constant 0.353553385 : f32
    %113 = vector.broadcast %cst_41 : f32 to vector<10x10xf32>
    %114 = arith.mulf %112, %113 : vector<10x10xf32>
    %115 = arith.addf %114, %0 : vector<10x10xf32>
    %cst_42 = arith.constant dense<0xFF800000> : vector<10xf32>
    %116 = vector.multi_reduction <maximumf>, %115, %cst_42 [1] : vector<10x10xf32> to vector<10xf32>
    %117 = vector.shape_cast %116 : vector<10xf32> to vector<10x1xf32>
    %118 = vector.broadcast %117 : vector<10x1xf32> to vector<10x10xf32>
    %119 = arith.subf %115, %118 : vector<10x10xf32>
    %120 = math.exp %119 : vector<10x10xf32>
    %cst_43 = arith.constant dense<0.000000e+00> : vector<10xf32>
    %121 = vector.multi_reduction <add>, %120, %cst_43 [1] : vector<10x10xf32> to vector<10xf32>
    %122 = vector.shape_cast %121 : vector<10xf32> to vector<10x1xf32>
    %123 = tpu.reciprocal %122 {approx = true} : vector<10x1xf32> -> vector<10x1xf32>
    %124 = vector.broadcast %123 : vector<10x1xf32> to vector<10x10xf32>
    %125 = arith.mulf %120, %124 : vector<10x10xf32>
    %126 = arith.truncf %125 : vector<10x10xf32> to vector<10x10xbf16>
    %127 = arith.truncf %109 : vector<10x8xf32> to vector<10x8xbf16>
    %cst_44 = arith.constant dense<0.000000e+00> : vector<10x8xf32>
    %128 = tpu.matmul %126, %127, %cst_44 {dimension_numbers = #tpu.dot_dimension_numbers<[1], [0], [0], [1], [0, 0, 1, 1], [], []>} : vector<10x10xbf16>, vector<10x8xbf16>, vector<10x8xf32> -> vector<10x8xf32>
    %129 = tpu.concatenate %62, %84, %106, %128 in 1 : vector<10x8xf32>, vector<10x8xf32>, vector<10x8xf32>, vector<10x8xf32> -> vector<10x32xf32>
    %c0_45 = arith.constant 0 : index
    %c0_46 = arith.constant 0 : index
    %c0_47 = arith.constant 0 : index
    %130 = vector.load %arg9[%c0_45, %c0_46, %c0_47] : memref<2x32x32xf32, #tpu.memory_space<vmem>>, vector<1x32x32xf32>
    %131 = vector.shape_cast %130 : vector<1x32x32xf32> to vector<32x32xf32>
    %132 = arith.truncf %129 : vector<10x32xf32> to vector<10x32xbf16>
    %133 = arith.truncf %131 : vector<32x32xf32> to vector<32x32xbf16>
    %cst_48 = arith.constant dense<0.000000e+00> : vector<10x32xf32>
    %134 = tpu.matmul %132, %133, %cst_48 {dimension_numbers = #tpu.dot_dimension_numbers<[1], [0], [0], [1], [0, 0, 1, 1], [], []>} : vector<10x32xbf16>, vector<32x32xbf16>, vector<10x32xf32> -> vector<10x32xf32>
    %135 = arith.addf %7, %134 : vector<10x32xf32>
    %c0_49 = arith.constant 0 : index
    %c0_50 = arith.constant 0 : index
    %c0_51 = arith.constant 0 : index
    %136 = vector.load %arg10[%c0_49, %c0_50, %c0_51] : memref<2x1x32xf32, #tpu.memory_space<vmem>>, vector<1x1x32xf32>
    %137 = vector.shape_cast %136 : vector<1x1x32xf32> to vector<1x32xf32>
    %138 = vector.broadcast %137 : vector<1x32xf32> to vector<10x32xf32>
    %139 = arith.addf %135, %138 : vector<10x32xf32>
    %c0_52 = arith.constant 0 : index
    %c0_53 = arith.constant 0 : index
    %c0_54 = arith.constant 0 : index
    %140 = vector.load %arg11[%c0_52, %c0_53, %c0_54] : memref<2x1x32xf32, #tpu.memory_space<vmem>>, vector<1x1x32xf32>
    %141 = vector.shape_cast %140 : vector<1x1x32xf32> to vector<1x32xf32>
    %c0_55 = arith.constant 0 : index
    %c0_56 = arith.constant 0 : index
    %c0_57 = arith.constant 0 : index
    %142 = vector.load %arg12[%c0_55, %c0_56, %c0_57] : memref<2x1x32xf32, #tpu.memory_space<vmem>>, vector<1x1x32xf32>
    %143 = vector.shape_cast %142 : vector<1x1x32xf32> to vector<1x32xf32>
    %cst_58 = arith.constant dense<0.000000e+00> : vector<10xf32>
    %144 = vector.multi_reduction <add>, %139, %cst_58 [1] : vector<10x32xf32> to vector<10xf32>
    %145 = vector.shape_cast %144 : vector<10xf32> to vector<10x1xf32>
    %cst_59 = arith.constant 3.200000e+01 : f32
    %146 = vector.broadcast %cst_59 : f32 to vector<10x1xf32>
    %147 = arith.divf %145, %146 : vector<10x1xf32>
    %148 = vector.broadcast %147 : vector<10x1xf32> to vector<10x32xf32>
    %149 = arith.subf %139, %148 : vector<10x32xf32>
    %150 = arith.mulf %149, %149 : vector<10x32xf32>
    %cst_60 = arith.constant dense<0.000000e+00> : vector<10xf32>
    %151 = vector.multi_reduction <add>, %150, %cst_60 [1] : vector<10x32xf32> to vector<10xf32>
    %152 = vector.shape_cast %151 : vector<10xf32> to vector<10x1xf32>
    %cst_61 = arith.constant 3.200000e+01 : f32
    %153 = vector.broadcast %cst_61 : f32 to vector<10x1xf32>
    %154 = arith.divf %152, %153 : vector<10x1xf32>
    %cst_62 = arith.constant 9.99999996E-13 : f32
    %155 = vector.broadcast %cst_62 : f32 to vector<10x1xf32>
    %156 = arith.addf %154, %155 : vector<10x1xf32>
    %157 = math.rsqrt %156 : vector<10x1xf32>
    %158 = vector.broadcast %157 : vector<10x1xf32> to vector<10x32xf32>
    %159 = arith.mulf %149, %158 : vector<10x32xf32>
    %160 = vector.broadcast %141 : vector<1x32xf32> to vector<10x32xf32>
    %161 = arith.mulf %159, %160 : vector<10x32xf32>
    %162 = vector.broadcast %143 : vector<1x32xf32> to vector<10x32xf32>
    %163 = arith.addf %161, %162 : vector<10x32xf32>
    %c0_63 = arith.constant 0 : index
    %c0_64 = arith.constant 0 : index
    %c0_65 = arith.constant 0 : index
    %164 = vector.load %arg13[%c0_63, %c0_64, %c0_65] : memref<2x32x64xf32, #tpu.memory_space<vmem>>, vector<1x32x64xf32>
    %165 = vector.shape_cast %164 : vector<1x32x64xf32> to vector<32x64xf32>
    %166 = arith.truncf %163 : vector<10x32xf32> to vector<10x32xbf16>
    %167 = arith.truncf %165 : vector<32x64xf32> to vector<32x64xbf16>
    %cst_66 = arith.constant dense<0.000000e+00> : vector<10x64xf32>
    %168 = tpu.matmul %166, %167, %cst_66 {dimension_numbers = #tpu.dot_dimension_numbers<[1], [0], [0], [1], [0, 0, 1, 1], [], []>} : vector<10x32xbf16>, vector<32x64xbf16>, vector<10x64xf32> -> vector<10x64xf32>
    %c0_67 = arith.constant 0 : index
    %c0_68 = arith.constant 0 : index
    %c0_69 = arith.constant 0 : index
    %169 = vector.load %arg14[%c0_67, %c0_68, %c0_69] : memref<2x1x64xf32, #tpu.memory_space<vmem>>, vector<1x1x64xf32>
    %170 = vector.shape_cast %169 : vector<1x1x64xf32> to vector<1x64xf32>
    %171 = vector.broadcast %170 : vector<1x64xf32> to vector<10x64xf32>
    %172 = arith.addf %168, %171 : vector<10x64xf32>
    %cst_70 = arith.constant 5.000000e-01 : f32
    %173 = vector.broadcast %cst_70 : f32 to vector<10x64xf32>
    %174 = arith.mulf %173, %172 : vector<10x64xf32>
    %cst_71 = arith.constant 4.471500e-02 : f32
    %175 = vector.broadcast %cst_71 : f32 to vector<10x64xf32>
    %176 = arith.mulf %175, %172 : vector<10x64xf32>
    %177 = arith.mulf %176, %172 : vector<10x64xf32>
    %178 = arith.mulf %177, %172 : vector<10x64xf32>
    %179 = arith.addf %172, %178 : vector<10x64xf32>
    %cst_72 = arith.constant 0.797884583 : f32
    %180 = vector.broadcast %cst_72 : f32 to vector<10x64xf32>
    %181 = arith.mulf %180, %179 : vector<10x64xf32>
    %182 = math.tanh %181 : vector<10x64xf32>
    %cst_73 = arith.constant 1.000000e+00 : f32
    %183 = vector.broadcast %cst_73 : f32 to vector<10x64xf32>
    %184 = arith.addf %183, %182 : vector<10x64xf32>
    %185 = arith.mulf %174, %184 : vector<10x64xf32>
    %c0_74 = arith.constant 0 : index
    %c0_75 = arith.constant 0 : index
    %c0_76 = arith.constant 0 : index
    %186 = vector.load %arg15[%c0_74, %c0_75, %c0_76] : memref<2x64x32xf32, #tpu.memory_space<vmem>>, vector<1x64x32xf32>
    %187 = vector.shape_cast %186 : vector<1x64x32xf32> to vector<64x32xf32>
    %188 = arith.truncf %185 : vector<10x64xf32> to vector<10x64xbf16>
    %189 = arith.truncf %187 : vector<64x32xf32> to vector<64x32xbf16>
    %cst_77 = arith.constant dense<0.000000e+00> : vector<10x32xf32>
    %190 = tpu.matmul %188, %189, %cst_77 {dimension_numbers = #tpu.dot_dimension_numbers<[1], [0], [0], [1], [0, 0, 1, 1], [], []>} : vector<10x64xbf16>, vector<64x32xbf16>, vector<10x32xf32> -> vector<10x32xf32>
    %191 = arith.addf %139, %190 : vector<10x32xf32>
    %c0_78 = arith.constant 0 : index
    %c0_79 = arith.constant 0 : index
    %c0_80 = arith.constant 0 : index
    %192 = vector.load %arg16[%c0_78, %c0_79, %c0_80] : memref<2x1x32xf32, #tpu.memory_space<vmem>>, vector<1x1x32xf32>
    %193 = vector.shape_cast %192 : vector<1x1x32xf32> to vector<1x32xf32>
    %194 = vector.broadcast %193 : vector<1x32xf32> to vector<10x32xf32>
    %195 = arith.addf %191, %194 : vector<10x32xf32>
    %c1 = arith.constant 1 : index
    %c0_81 = arith.constant 0 : index
    %c0_82 = arith.constant 0 : index
    %196 = vector.load %arg5[%c1, %c0_81, %c0_82] : memref<2x1x32xf32, #tpu.memory_space<vmem>>, vector<1x1x32xf32>
    %197 = vector.shape_cast %196 : vector<1x1x32xf32> to vector<1x32xf32>
    %c1_83 = arith.constant 1 : index
    %c0_84 = arith.constant 0 : index
    %c0_85 = arith.constant 0 : index
    %198 = vector.load %arg6[%c1_83, %c0_84, %c0_85] : memref<2x1x32xf32, #tpu.memory_space<vmem>>, vector<1x1x32xf32>
    %199 = vector.shape_cast %198 : vector<1x1x32xf32> to vector<1x32xf32>
    %cst_86 = arith.constant dense<0.000000e+00> : vector<10xf32>
    %200 = vector.multi_reduction <add>, %195, %cst_86 [1] : vector<10x32xf32> to vector<10xf32>
    %201 = vector.shape_cast %200 : vector<10xf32> to vector<10x1xf32>
    %cst_87 = arith.constant 3.200000e+01 : f32
    %202 = vector.broadcast %cst_87 : f32 to vector<10x1xf32>
    %203 = arith.divf %201, %202 : vector<10x1xf32>
    %204 = vector.broadcast %203 : vector<10x1xf32> to vector<10x32xf32>
    %205 = arith.subf %195, %204 : vector<10x32xf32>
    %206 = arith.mulf %205, %205 : vector<10x32xf32>
    %cst_88 = arith.constant dense<0.000000e+00> : vector<10xf32>
    %207 = vector.multi_reduction <add>, %206, %cst_88 [1] : vector<10x32xf32> to vector<10xf32>
    %208 = vector.shape_cast %207 : vector<10xf32> to vector<10x1xf32>
    %cst_89 = arith.constant 3.200000e+01 : f32
    %209 = vector.broadcast %cst_89 : f32 to vector<10x1xf32>
    %210 = arith.divf %208, %209 : vector<10x1xf32>
    %cst_90 = arith.constant 9.99999996E-13 : f32
    %211 = vector.broadcast %cst_90 : f32 to vector<10x1xf32>
    %212 = arith.addf %210, %211 : vector<10x1xf32>
    %213 = math.rsqrt %212 : vector<10x1xf32>
    %214 = vector.broadcast %213 : vector<10x1xf32> to vector<10x32xf32>
    %215 = arith.mulf %205, %214 : vector<10x32xf32>
    %216 = vector.broadcast %197 : vector<1x32xf32> to vector<10x32xf32>
    %217 = arith.mulf %215, %216 : vector<10x32xf32>
    %218 = vector.broadcast %199 : vector<1x32xf32> to vector<10x32xf32>
    %219 = arith.addf %217, %218 : vector<10x32xf32>
    %c1_91 = arith.constant 1 : index
    %c0_92 = arith.constant 0 : index
    %c0_93 = arith.constant 0 : index
    %220 = vector.load %arg7[%c1_91, %c0_92, %c0_93] : memref<2x32x96xf32, #tpu.memory_space<vmem>>, vector<1x32x96xf32>
    %221 = vector.shape_cast %220 : vector<1x32x96xf32> to vector<32x96xf32>
    %222 = arith.truncf %219 : vector<10x32xf32> to vector<10x32xbf16>
    %223 = arith.truncf %221 : vector<32x96xf32> to vector<32x96xbf16>
    %cst_94 = arith.constant dense<0.000000e+00> : vector<10x96xf32>
    %224 = tpu.matmul %222, %223, %cst_94 {dimension_numbers = #tpu.dot_dimension_numbers<[1], [0], [0], [1], [0, 0, 1, 1], [], []>} : vector<10x32xbf16>, vector<32x96xbf16>, vector<10x96xf32> -> vector<10x96xf32>
    %c1_95 = arith.constant 1 : index
    %c0_96 = arith.constant 0 : index
    %c0_97 = arith.constant 0 : index
    %225 = vector.load %arg8[%c1_95, %c0_96, %c0_97] : memref<2x1x96xf32, #tpu.memory_space<vmem>>, vector<1x1x96xf32>
    %226 = vector.shape_cast %225 : vector<1x1x96xf32> to vector<1x96xf32>
    %227 = vector.broadcast %226 : vector<1x96xf32> to vector<10x96xf32>
    %228 = arith.addf %224, %227 : vector<10x96xf32>
    %229 = vector.extract_strided_slice %228 {offsets = [0, 0], sizes = [10, 8], strides = [1, 1]} : vector<10x96xf32> to vector<10x8xf32>
    %230 = vector.extract_strided_slice %228 {offsets = [0, 32], sizes = [10, 8], strides = [1, 1]} : vector<10x96xf32> to vector<10x8xf32>
    %231 = vector.extract_strided_slice %228 {offsets = [0, 64], sizes = [10, 8], strides = [1, 1]} : vector<10x96xf32> to vector<10x8xf32>
    %232 = arith.truncf %229 : vector<10x8xf32> to vector<10x8xbf16>
    %233 = arith.truncf %230 : vector<10x8xf32> to vector<10x8xbf16>
    "tpu.trace_start"() <{level = 10 : i32, message = "qd,kd->qk"}> : () -> ()
    %cst_98 = arith.constant dense<0.000000e+00> : vector<10x10xf32>
    %234 = tpu.matmul %232, %233, %cst_98 {dimension_numbers = #tpu.dot_dimension_numbers<[1], [1], [0], [0], [0, 0, 1, 0], [], []>} : vector<10x8xbf16>, vector<10x8xbf16>, vector<10x10xf32> -> vector<10x10xf32>
    "tpu.trace_stop"() : () -> ()
    %cst_99 = arith.constant 0.353553385 : f32
    %235 = vector.broadcast %cst_99 : f32 to vector<10x10xf32>
    %236 = arith.mulf %234, %235 : vector<10x10xf32>
    %237 = arith.addf %236, %0 : vector<10x10xf32>
    %cst_100 = arith.constant dense<0xFF800000> : vector<10xf32>
    %238 = vector.multi_reduction <maximumf>, %237, %cst_100 [1] : vector<10x10xf32> to vector<10xf32>
    %239 = vector.shape_cast %238 : vector<10xf32> to vector<10x1xf32>
    %240 = vector.broadcast %239 : vector<10x1xf32> to vector<10x10xf32>
    %241 = arith.subf %237, %240 : vector<10x10xf32>
    %242 = math.exp %241 : vector<10x10xf32>
    %cst_101 = arith.constant dense<0.000000e+00> : vector<10xf32>
    %243 = vector.multi_reduction <add>, %242, %cst_101 [1] : vector<10x10xf32> to vector<10xf32>
    %244 = vector.shape_cast %243 : vector<10xf32> to vector<10x1xf32>
    %245 = tpu.reciprocal %244 {approx = true} : vector<10x1xf32> -> vector<10x1xf32>
    %246 = vector.broadcast %245 : vector<10x1xf32> to vector<10x10xf32>
    %247 = arith.mulf %242, %246 : vector<10x10xf32>
    %248 = arith.truncf %247 : vector<10x10xf32> to vector<10x10xbf16>
    %249 = arith.truncf %231 : vector<10x8xf32> to vector<10x8xbf16>
    %cst_102 = arith.constant dense<0.000000e+00> : vector<10x8xf32>
    %250 = tpu.matmul %248, %249, %cst_102 {dimension_numbers = #tpu.dot_dimension_numbers<[1], [0], [0], [1], [0, 0, 1, 1], [], []>} : vector<10x10xbf16>, vector<10x8xbf16>, vector<10x8xf32> -> vector<10x8xf32>
    %251 = vector.extract_strided_slice %228 {offsets = [0, 8], sizes = [10, 8], strides = [1, 1]} : vector<10x96xf32> to vector<10x8xf32>
    %252 = vector.extract_strided_slice %228 {offsets = [0, 40], sizes = [10, 8], strides = [1, 1]} : vector<10x96xf32> to vector<10x8xf32>
    %253 = vector.extract_strided_slice %228 {offsets = [0, 72], sizes = [10, 8], strides = [1, 1]} : vector<10x96xf32> to vector<10x8xf32>
    %254 = arith.truncf %251 : vector<10x8xf32> to vector<10x8xbf16>
    %255 = arith.truncf %252 : vector<10x8xf32> to vector<10x8xbf16>
    "tpu.trace_start"() <{level = 10 : i32, message = "qd,kd->qk"}> : () -> ()
    %cst_103 = arith.constant dense<0.000000e+00> : vector<10x10xf32>
    %256 = tpu.matmul %254, %255, %cst_103 {dimension_numbers = #tpu.dot_dimension_numbers<[1], [1], [0], [0], [0, 0, 1, 0], [], []>} : vector<10x8xbf16>, vector<10x8xbf16>, vector<10x10xf32> -> vector<10x10xf32>
    "tpu.trace_stop"() : () -> ()
    %cst_104 = arith.constant 0.353553385 : f32
    %257 = vector.broadcast %cst_104 : f32 to vector<10x10xf32>
    %258 = arith.mulf %256, %257 : vector<10x10xf32>
    %259 = arith.addf %258, %0 : vector<10x10xf32>
    %cst_105 = arith.constant dense<0xFF800000> : vector<10xf32>
    %260 = vector.multi_reduction <maximumf>, %259, %cst_105 [1] : vector<10x10xf32> to vector<10xf32>
    %261 = vector.shape_cast %260 : vector<10xf32> to vector<10x1xf32>
    %262 = vector.broadcast %261 : vector<10x1xf32> to vector<10x10xf32>
    %263 = arith.subf %259, %262 : vector<10x10xf32>
    %264 = math.exp %263 : vector<10x10xf32>
    %cst_106 = arith.constant dense<0.000000e+00> : vector<10xf32>
    %265 = vector.multi_reduction <add>, %264, %cst_106 [1] : vector<10x10xf32> to vector<10xf32>
    %266 = vector.shape_cast %265 : vector<10xf32> to vector<10x1xf32>
    %267 = tpu.reciprocal %266 {approx = true} : vector<10x1xf32> -> vector<10x1xf32>
    %268 = vector.broadcast %267 : vector<10x1xf32> to vector<10x10xf32>
    %269 = arith.mulf %264, %268 : vector<10x10xf32>
    %270 = arith.truncf %269 : vector<10x10xf32> to vector<10x10xbf16>
    %271 = arith.truncf %253 : vector<10x8xf32> to vector<10x8xbf16>
    %cst_107 = arith.constant dense<0.000000e+00> : vector<10x8xf32>
    %272 = tpu.matmul %270, %271, %cst_107 {dimension_numbers = #tpu.dot_dimension_numbers<[1], [0], [0], [1], [0, 0, 1, 1], [], []>} : vector<10x10xbf16>, vector<10x8xbf16>, vector<10x8xf32> -> vector<10x8xf32>
    %273 = vector.extract_strided_slice %228 {offsets = [0, 16], sizes = [10, 8], strides = [1, 1]} : vector<10x96xf32> to vector<10x8xf32>
    %274 = vector.extract_strided_slice %228 {offsets = [0, 48], sizes = [10, 8], strides = [1, 1]} : vector<10x96xf32> to vector<10x8xf32>
    %275 = vector.extract_strided_slice %228 {offsets = [0, 80], sizes = [10, 8], strides = [1, 1]} : vector<10x96xf32> to vector<10x8xf32>
    %276 = arith.truncf %273 : vector<10x8xf32> to vector<10x8xbf16>
    %277 = arith.truncf %274 : vector<10x8xf32> to vector<10x8xbf16>
    "tpu.trace_start"() <{level = 10 : i32, message = "qd,kd->qk"}> : () -> ()
    %cst_108 = arith.constant dense<0.000000e+00> : vector<10x10xf32>
    %278 = tpu.matmul %276, %277, %cst_108 {dimension_numbers = #tpu.dot_dimension_numbers<[1], [1], [0], [0], [0, 0, 1, 0], [], []>} : vector<10x8xbf16>, vector<10x8xbf16>, vector<10x10xf32> -> vector<10x10xf32>
    "tpu.trace_stop"() : () -> ()
    %cst_109 = arith.constant 0.353553385 : f32
    %279 = vector.broadcast %cst_109 : f32 to vector<10x10xf32>
    %280 = arith.mulf %278, %279 : vector<10x10xf32>
    %281 = arith.addf %280, %0 : vector<10x10xf32>
    %cst_110 = arith.constant dense<0xFF800000> : vector<10xf32>
    %282 = vector.multi_reduction <maximumf>, %281, %cst_110 [1] : vector<10x10xf32> to vector<10xf32>
    %283 = vector.shape_cast %282 : vector<10xf32> to vector<10x1xf32>
    %284 = vector.broadcast %283 : vector<10x1xf32> to vector<10x10xf32>
    %285 = arith.subf %281, %284 : vector<10x10xf32>
    %286 = math.exp %285 : vector<10x10xf32>
    %cst_111 = arith.constant dense<0.000000e+00> : vector<10xf32>
    %287 = vector.multi_reduction <add>, %286, %cst_111 [1] : vector<10x10xf32> to vector<10xf32>
    %288 = vector.shape_cast %287 : vector<10xf32> to vector<10x1xf32>
    %289 = tpu.reciprocal %288 {approx = true} : vector<10x1xf32> -> vector<10x1xf32>
    %290 = vector.broadcast %289 : vector<10x1xf32> to vector<10x10xf32>
    %291 = arith.mulf %286, %290 : vector<10x10xf32>
    %292 = arith.truncf %291 : vector<10x10xf32> to vector<10x10xbf16>
    %293 = arith.truncf %275 : vector<10x8xf32> to vector<10x8xbf16>
    %cst_112 = arith.constant dense<0.000000e+00> : vector<10x8xf32>
    %294 = tpu.matmul %292, %293, %cst_112 {dimension_numbers = #tpu.dot_dimension_numbers<[1], [0], [0], [1], [0, 0, 1, 1], [], []>} : vector<10x10xbf16>, vector<10x8xbf16>, vector<10x8xf32> -> vector<10x8xf32>
    %295 = vector.extract_strided_slice %228 {offsets = [0, 24], sizes = [10, 8], strides = [1, 1]} : vector<10x96xf32> to vector<10x8xf32>
    %296 = vector.extract_strided_slice %228 {offsets = [0, 56], sizes = [10, 8], strides = [1, 1]} : vector<10x96xf32> to vector<10x8xf32>
    %297 = vector.extract_strided_slice %228 {offsets = [0, 88], sizes = [10, 8], strides = [1, 1]} : vector<10x96xf32> to vector<10x8xf32>
    %298 = arith.truncf %295 : vector<10x8xf32> to vector<10x8xbf16>
    %299 = arith.truncf %296 : vector<10x8xf32> to vector<10x8xbf16>
    "tpu.trace_start"() <{level = 10 : i32, message = "qd,kd->qk"}> : () -> ()
    %cst_113 = arith.constant dense<0.000000e+00> : vector<10x10xf32>
    %300 = tpu.matmul %298, %299, %cst_113 {dimension_numbers = #tpu.dot_dimension_numbers<[1], [1], [0], [0], [0, 0, 1, 0], [], []>} : vector<10x8xbf16>, vector<10x8xbf16>, vector<10x10xf32> -> vector<10x10xf32>
    "tpu.trace_stop"() : () -> ()
    %cst_114 = arith.constant 0.353553385 : f32
    %301 = vector.broadcast %cst_114 : f32 to vector<10x10xf32>
    %302 = arith.mulf %300, %301 : vector<10x10xf32>
    %303 = arith.addf %302, %0 : vector<10x10xf32>
    %cst_115 = arith.constant dense<0xFF800000> : vector<10xf32>
    %304 = vector.multi_reduction <maximumf>, %303, %cst_115 [1] : vector<10x10xf32> to vector<10xf32>
    %305 = vector.shape_cast %304 : vector<10xf32> to vector<10x1xf32>
    %306 = vector.broadcast %305 : vector<10x1xf32> to vector<10x10xf32>
    %307 = arith.subf %303, %306 : vector<10x10xf32>
    %308 = math.exp %307 : vector<10x10xf32>
    %cst_116 = arith.constant dense<0.000000e+00> : vector<10xf32>
    %309 = vector.multi_reduction <add>, %308, %cst_116 [1] : vector<10x10xf32> to vector<10xf32>
    %310 = vector.shape_cast %309 : vector<10xf32> to vector<10x1xf32>
    %311 = tpu.reciprocal %310 {approx = true} : vector<10x1xf32> -> vector<10x1xf32>
    %312 = vector.broadcast %311 : vector<10x1xf32> to vector<10x10xf32>
    %313 = arith.mulf %308, %312 : vector<10x10xf32>
    %314 = arith.truncf %313 : vector<10x10xf32> to vector<10x10xbf16>
    %315 = arith.truncf %297 : vector<10x8xf32> to vector<10x8xbf16>
    %cst_117 = arith.constant dense<0.000000e+00> : vector<10x8xf32>
    %316 = tpu.matmul %314, %315, %cst_117 {dimension_numbers = #tpu.dot_dimension_numbers<[1], [0], [0], [1], [0, 0, 1, 1], [], []>} : vector<10x10xbf16>, vector<10x8xbf16>, vector<10x8xf32> -> vector<10x8xf32>
    %317 = tpu.concatenate %250, %272, %294, %316 in 1 : vector<10x8xf32>, vector<10x8xf32>, vector<10x8xf32>, vector<10x8xf32> -> vector<10x32xf32>
    %c1_118 = arith.constant 1 : index
    %c0_119 = arith.constant 0 : index
    %c0_120 = arith.constant 0 : index
    %318 = vector.load %arg9[%c1_118, %c0_119, %c0_120] : memref<2x32x32xf32, #tpu.memory_space<vmem>>, vector<1x32x32xf32>
    %319 = vector.shape_cast %318 : vector<1x32x32xf32> to vector<32x32xf32>
    %320 = arith.truncf %317 : vector<10x32xf32> to vector<10x32xbf16>
    %321 = arith.truncf %319 : vector<32x32xf32> to vector<32x32xbf16>
    %cst_121 = arith.constant dense<0.000000e+00> : vector<10x32xf32>
    %322 = tpu.matmul %320, %321, %cst_121 {dimension_numbers = #tpu.dot_dimension_numbers<[1], [0], [0], [1], [0, 0, 1, 1], [], []>} : vector<10x32xbf16>, vector<32x32xbf16>, vector<10x32xf32> -> vector<10x32xf32>
    %323 = arith.addf %195, %322 : vector<10x32xf32>
    %c1_122 = arith.constant 1 : index
    %c0_123 = arith.constant 0 : index
    %c0_124 = arith.constant 0 : index
    %324 = vector.load %arg10[%c1_122, %c0_123, %c0_124] : memref<2x1x32xf32, #tpu.memory_space<vmem>>, vector<1x1x32xf32>
    %325 = vector.shape_cast %324 : vector<1x1x32xf32> to vector<1x32xf32>
    %326 = vector.broadcast %325 : vector<1x32xf32> to vector<10x32xf32>
    %327 = arith.addf %323, %326 : vector<10x32xf32>
    %c1_125 = arith.constant 1 : index
    %c0_126 = arith.constant 0 : index
    %c0_127 = arith.constant 0 : index
    %328 = vector.load %arg11[%c1_125, %c0_126, %c0_127] : memref<2x1x32xf32, #tpu.memory_space<vmem>>, vector<1x1x32xf32>
    %329 = vector.shape_cast %328 : vector<1x1x32xf32> to vector<1x32xf32>
    %c1_128 = arith.constant 1 : index
    %c0_129 = arith.constant 0 : index
    %c0_130 = arith.constant 0 : index
    %330 = vector.load %arg12[%c1_128, %c0_129, %c0_130] : memref<2x1x32xf32, #tpu.memory_space<vmem>>, vector<1x1x32xf32>
    %331 = vector.shape_cast %330 : vector<1x1x32xf32> to vector<1x32xf32>
    %cst_131 = arith.constant dense<0.000000e+00> : vector<10xf32>
    %332 = vector.multi_reduction <add>, %327, %cst_131 [1] : vector<10x32xf32> to vector<10xf32>
    %333 = vector.shape_cast %332 : vector<10xf32> to vector<10x1xf32>
    %cst_132 = arith.constant 3.200000e+01 : f32
    %334 = vector.broadcast %cst_132 : f32 to vector<10x1xf32>
    %335 = arith.divf %333, %334 : vector<10x1xf32>
    %336 = vector.broadcast %335 : vector<10x1xf32> to vector<10x32xf32>
    %337 = arith.subf %327, %336 : vector<10x32xf32>
    %338 = arith.mulf %337, %337 : vector<10x32xf32>
    %cst_133 = arith.constant dense<0.000000e+00> : vector<10xf32>
    %339 = vector.multi_reduction <add>, %338, %cst_133 [1] : vector<10x32xf32> to vector<10xf32>
    %340 = vector.shape_cast %339 : vector<10xf32> to vector<10x1xf32>
    %cst_134 = arith.constant 3.200000e+01 : f32
    %341 = vector.broadcast %cst_134 : f32 to vector<10x1xf32>
    %342 = arith.divf %340, %341 : vector<10x1xf32>
    %cst_135 = arith.constant 9.99999996E-13 : f32
    %343 = vector.broadcast %cst_135 : f32 to vector<10x1xf32>
    %344 = arith.addf %342, %343 : vector<10x1xf32>
    %345 = math.rsqrt %344 : vector<10x1xf32>
    %346 = vector.broadcast %345 : vector<10x1xf32> to vector<10x32xf32>
    %347 = arith.mulf %337, %346 : vector<10x32xf32>
    %348 = vector.broadcast %329 : vector<1x32xf32> to vector<10x32xf32>
    %349 = arith.mulf %347, %348 : vector<10x32xf32>
    %350 = vector.broadcast %331 : vector<1x32xf32> to vector<10x32xf32>
    %351 = arith.addf %349, %350 : vector<10x32xf32>
    %c1_136 = arith.constant 1 : index
    %c0_137 = arith.constant 0 : index
    %c0_138 = arith.constant 0 : index
    %352 = vector.load %arg13[%c1_136, %c0_137, %c0_138] : memref<2x32x64xf32, #tpu.memory_space<vmem>>, vector<1x32x64xf32>
    %353 = vector.shape_cast %352 : vector<1x32x64xf32> to vector<32x64xf32>
    %354 = arith.truncf %351 : vector<10x32xf32> to vector<10x32xbf16>
    %355 = arith.truncf %353 : vector<32x64xf32> to vector<32x64xbf16>
    %cst_139 = arith.constant dense<0.000000e+00> : vector<10x64xf32>
    %356 = tpu.matmul %354, %355, %cst_139 {dimension_numbers = #tpu.dot_dimension_numbers<[1], [0], [0], [1], [0, 0, 1, 1], [], []>} : vector<10x32xbf16>, vector<32x64xbf16>, vector<10x64xf32> -> vector<10x64xf32>
    %c1_140 = arith.constant 1 : index
    %c0_141 = arith.constant 0 : index
    %c0_142 = arith.constant 0 : index
    %357 = vector.load %arg14[%c1_140, %c0_141, %c0_142] : memref<2x1x64xf32, #tpu.memory_space<vmem>>, vector<1x1x64xf32>
    %358 = vector.shape_cast %357 : vector<1x1x64xf32> to vector<1x64xf32>
    %359 = vector.broadcast %358 : vector<1x64xf32> to vector<10x64xf32>
    %360 = arith.addf %356, %359 : vector<10x64xf32>
    %cst_143 = arith.constant 5.000000e-01 : f32
    %361 = vector.broadcast %cst_143 : f32 to vector<10x64xf32>
    %362 = arith.mulf %361, %360 : vector<10x64xf32>
    %cst_144 = arith.constant 4.471500e-02 : f32
    %363 = vector.broadcast %cst_144 : f32 to vector<10x64xf32>
    %364 = arith.mulf %363, %360 : vector<10x64xf32>
    %365 = arith.mulf %364, %360 : vector<10x64xf32>
    %366 = arith.mulf %365, %360 : vector<10x64xf32>
    %367 = arith.addf %360, %366 : vector<10x64xf32>
    %cst_145 = arith.constant 0.797884583 : f32
    %368 = vector.broadcast %cst_145 : f32 to vector<10x64xf32>
    %369 = arith.mulf %368, %367 : vector<10x64xf32>
    %370 = math.tanh %369 : vector<10x64xf32>
    %cst_146 = arith.constant 1.000000e+00 : f32
    %371 = vector.broadcast %cst_146 : f32 to vector<10x64xf32>
    %372 = arith.addf %371, %370 : vector<10x64xf32>
    %373 = arith.mulf %362, %372 : vector<10x64xf32>
    %c1_147 = arith.constant 1 : index
    %c0_148 = arith.constant 0 : index
    %c0_149 = arith.constant 0 : index
    %374 = vector.load %arg15[%c1_147, %c0_148, %c0_149] : memref<2x64x32xf32, #tpu.memory_space<vmem>>, vector<1x64x32xf32>
    %375 = vector.shape_cast %374 : vector<1x64x32xf32> to vector<64x32xf32>
    %376 = arith.truncf %373 : vector<10x64xf32> to vector<10x64xbf16>
    %377 = arith.truncf %375 : vector<64x32xf32> to vector<64x32xbf16>
    %cst_150 = arith.constant dense<0.000000e+00> : vector<10x32xf32>
    %378 = tpu.matmul %376, %377, %cst_150 {dimension_numbers = #tpu.dot_dimension_numbers<[1], [0], [0], [1], [0, 0, 1, 1], [], []>} : vector<10x64xbf16>, vector<64x32xbf16>, vector<10x32xf32> -> vector<10x32xf32>
    %379 = arith.addf %327, %378 : vector<10x32xf32>
    %c1_151 = arith.constant 1 : index
    %c0_152 = arith.constant 0 : index
    %c0_153 = arith.constant 0 : index
    %380 = vector.load %arg16[%c1_151, %c0_152, %c0_153] : memref<2x1x32xf32, #tpu.memory_space<vmem>>, vector<1x1x32xf32>
    %381 = vector.shape_cast %380 : vector<1x1x32xf32> to vector<1x32xf32>
    %382 = vector.broadcast %381 : vector<1x32xf32> to vector<10x32xf32>
    %383 = arith.addf %379, %382 : vector<10x32xf32>
    %c0_154 = arith.constant 0 : index
    %c0_155 = arith.constant 0 : index
    %384 = vector.load %arg19[%c0_154, %c0_155] : memref<2x10xf32, #tpu.memory_space<vmem>>, vector<2x10xf32>
    %cst_156 = arith.constant dense<0.000000e+00> : vector<2x32xf32>
    %385 = tpu.matmul %384, %383, %cst_156 {dimension_numbers = #tpu.dot_dimension_numbers<[1], [0], [0], [1], [0, 0, 1, 1], [], []>} : vector<2x10xf32>, vector<10x32xf32>, vector<2x32xf32> -> vector<2x32xf32>
    %c0_157 = arith.constant 0 : index
    %c0_158 = arith.constant 0 : index
    %386 = vector.load %arg17[%c0_157, %c0_158] : memref<1x32xf32, #tpu.memory_space<vmem>>, vector<1x32xf32>
    %c0_159 = arith.constant 0 : index
    %c0_160 = arith.constant 0 : index
    %387 = vector.load %arg18[%c0_159, %c0_160] : memref<1x32xf32, #tpu.memory_space<vmem>>, vector<1x32xf32>
    %cst_161 = arith.constant dense<0.000000e+00> : vector<2xf32>
    %388 = vector.multi_reduction <add>, %385, %cst_161 [1] : vector<2x32xf32> to vector<2xf32>
    %389 = vector.shape_cast %388 : vector<2xf32> to vector<2x1xf32>
    %cst_162 = arith.constant 3.200000e+01 : f32
    %390 = vector.broadcast %cst_162 : f32 to vector<2x1xf32>
    %391 = arith.divf %389, %390 : vector<2x1xf32>
    %392 = vector.broadcast %391 : vector<2x1xf32> to vector<2x32xf32>
    %393 = arith.subf %385, %392 : vector<2x32xf32>
    %394 = arith.mulf %393, %393 : vector<2x32xf32>
    %cst_163 = arith.constant dense<0.000000e+00> : vector<2xf32>
    %395 = vector.multi_reduction <add>, %394, %cst_163 [1] : vector<2x32xf32> to vector<2xf32>
    %396 = vector.shape_cast %395 : vector<2xf32> to vector<2x1xf32>
    %cst_164 = arith.constant 3.200000e+01 : f32
    %397 = vector.broadcast %cst_164 : f32 to vector<2x1xf32>
    %398 = arith.divf %396, %397 : vector<2x1xf32>
    %cst_165 = arith.constant 9.99999996E-13 : f32
    %399 = vector.broadcast %cst_165 : f32 to vector<2x1xf32>
    %400 = arith.addf %398, %399 : vector<2x1xf32>
    %401 = math.rsqrt %400 : vector<2x1xf32>
    %402 = vector.broadcast %401 : vector<2x1xf32> to vector<2x32xf32>
    %403 = arith.mulf %393, %402 : vector<2x32xf32>
    %404 = vector.broadcast %386 : vector<1x32xf32> to vector<2x32xf32>
    %405 = arith.mulf %403, %404 : vector<2x32xf32>
    %406 = vector.broadcast %387 : vector<1x32xf32> to vector<2x32xf32>
    %407 = arith.addf %405, %406 : vector<2x32xf32>
    %c0_166 = arith.constant 0 : index
    %c0_167 = arith.constant 0 : index
    %408 = vector.load %arg20[%c0_166, %c0_167] : memref<32x3xf32, #tpu.memory_space<vmem>>, vector<32x3xf32>
    %409 = arith.truncf %407 : vector<2x32xf32> to vector<2x32xbf16>
    %410 = arith.truncf %408 : vector<32x3xf32> to vector<32x3xbf16>
    %cst_168 = arith.constant dense<0.000000e+00> : vector<2x3xf32>
    %411 = tpu.matmul %409, %410, %cst_168 {dimension_numbers = #tpu.dot_dimension_numbers<[1], [0], [0], [1], [0, 0, 1, 1], [], []>} : vector<2x32xbf16>, vector<32x3xbf16>, vector<2x3xf32> -> vector<2x3xf32>
    %c0_169 = arith.constant 0 : index
    %c0_170 = arith.constant 0 : index
    %412 = vector.load %arg21[%c0_169, %c0_170] : memref<1x3xf32, #tpu.memory_space<vmem>>, vector<1x3xf32>
    %413 = vector.broadcast %412 : vector<1x3xf32> to vector<2x3xf32>
    %414 = arith.addf %411, %413 : vector<2x3xf32>
    %c0_171 = arith.constant 0 : index
    %c0_172 = arith.constant 0 : index
    %415 = vector.load %arg22[%c0_171, %c0_172] : memref<2x3xf32, #tpu.memory_space<vmem>>, vector<2x3xf32>
    tpu.vector_store %arg22[%c0_171, %c0_172], %414 {strides = array<i32>} : memref<2x3xf32, #tpu.memory_space<vmem>>, vector<2x3xf32>,
    return
  }
  func.func @transform_0(%arg0: i32) -> (i32, i32) {
    %c0_i32 = arith.constant 0 : i32
    %c0_i32_0 = arith.constant 0 : i32
    %c0_i32_1 = arith.constant 0 : i32
    return %c0_i32, %c0_i32_0 : i32, i32
  }
  func.func @transform_1(%arg0: i32) -> (i32, i32) {
    %c0_i32 = arith.constant 0 : i32
    %c0_i32_0 = arith.constant 0 : i32
    %c0_i32_1 = arith.constant 0 : i32
    return %c0_i32, %c0_i32_0 : i32, i32
  }
  func.func @transform_2(%arg0: i32) -> (i32, i32) {
    %c0_i32 = arith.constant 0 : i32
    %c0_i32_0 = arith.constant 0 : i32
    %c0_i32_1 = arith.constant 0 : i32
    return %c0_i32, %c0_i32_0 : i32, i32
  }
  func.func @transform_3(%arg0: i32) -> (i32, i32) {
    %c0_i32 = arith.constant 0 : i32
    %c0_i32_0 = arith.constant 0 : i32
    %c0_i32_1 = arith.constant 0 : i32
    return %c0_i32, %c0_i32_0 : i32, i32
  }
  func.func @transform_4(%arg0: i32) -> (i32, i32, i32) {
    %c0_i32 = arith.constant 0 : i32
    %c0_i32_0 = arith.constant 0 : i32
    %c0_i32_1 = arith.constant 0 : i32
    %c0_i32_2 = arith.constant 0 : i32
    return %c0_i32, %c0_i32_0, %c0_i32_1 : i32, i32, i32
  }
  func.func @transform_5(%arg0: i32) -> (i32, i32, i32) {
    %c0_i32 = arith.constant 0 : i32
    %c0_i32_0 = arith.constant 0 : i32
    %c0_i32_1 = arith.constant 0 : i32
    %c0_i32_2 = arith.constant 0 : i32
    return %c0_i32, %c0_i32_0, %c0_i32_1 : i32, i32, i32
  }
  func.func @transform_6(%arg0: i32) -> (i32, i32, i32) {
    %c0_i32 = arith.constant 0 : i32
    %c0_i32_0 = arith.constant 0 : i32
    %c0_i32_1 = arith.constant 0 : i32
    %c0_i32_2 = arith.constant 0 : i32
    return %c0_i32, %c0_i32_0, %c0_i32_1 : i32, i32, i32
  }
  func.func @transform_7(%arg0: i32) -> (i32, i32, i32) {
    %c0_i32 = arith.constant 0 : i32
    %c0_i32_0 = arith.constant 0 : i32
    %c0_i32_1 = arith.constant 0 : i32
    %c0_i32_2 = arith.constant 0 : i32
    return %c0_i32, %c0_i32_0, %c0_i32_1 : i32, i32, i32
  }
  func.func @transform_8(%arg0: i32) -> (i32, i32, i32) {
    %c0_i32 = arith.constant 0 : i32
    %c0_i32_0 = arith.constant 0 : i32
    %c0_i32_1 = arith.constant 0 : i32
    %c0_i32_2 = arith.constant 0 : i32
    return %c0_i32, %c0_i32_0, %c0_i32_1 : i32, i32, i32
  }
  func.func @transform_9(%arg0: i32) -> (i32, i32, i32) {
    %c0_i32 = arith.constant 0 : i32
    %c0_i32_0 = arith.constant 0 : i32
    %c0_i32_1 = arith.constant 0 : i32
    %c0_i32_2 = arith.constant 0 : i32
    return %c0_i32, %c0_i32_0, %c0_i32_1 : i32, i32, i32
  }
  func.func @transform_10(%arg0: i32) -> (i32, i32, i32) {
    %c0_i32 = arith.constant 0 : i32
    %c0_i32_0 = arith.constant 0 : i32
    %c0_i32_1 = arith.constant 0 : i32
    %c0_i32_2 = arith.constant 0 : i32
    return %c0_i32, %c0_i32_0, %c0_i32_1 : i32, i32, i32
  }
  func.func @transform_11(%arg0: i32) -> (i32, i32, i32) {
    %c0_i32 = arith.constant 0 : i32
    %c0_i32_0 = arith.constant 0 : i32
    %c0_i32_1 = arith.constant 0 : i32
    %c0_i32_2 = arith.constant 0 : i32
    return %c0_i32, %c0_i32_0, %c0_i32_1 : i32, i32, i32
  }
  func.func @transform_12(%arg0: i32) -> (i32, i32, i32) {
    %c0_i32 = arith.constant 0 : i32
    %c0_i32_0 = arith.constant 0 : i32
    %c0_i32_1 = arith.constant 0 : i32
    %c0_i32_2 = arith.constant 0 : i32
    return %c0_i32, %c0_i32_0, %c0_i32_1 : i32, i32, i32
  }
  func.func @transform_13(%arg0: i32) -> (i32, i32, i32) {
    %c0_i32 = arith.constant 0 : i32
    %c0_i32_0 = arith.constant 0 : i32
    %c0_i32_1 = arith.constant 0 : i32
    %c0_i32_2 = arith.constant 0 : i32
    return %c0_i32, %c0_i32_0, %c0_i32_1 : i32, i32, i32
  }
  func.func @transform_14(%arg0: i32) -> (i32, i32, i32) {
    %c0_i32 = arith.constant 0 : i32
    %c0_i32_0 = arith.constant 0 : i32
    %c0_i32_1 = arith.constant 0 : i32
    %c0_i32_2 = arith.constant 0 : i32
    return %c0_i32, %c0_i32_0, %c0_i32_1 : i32, i32, i32
  }
  func.func @transform_15(%arg0: i32) -> (i32, i32, i32) {
    %c0_i32 = arith.constant 0 : i32
    %c0_i32_0 = arith.constant 0 : i32
    %c0_i32_1 = arith.constant 0 : i32
    %c0_i32_2 = arith.constant 0 : i32
    return %c0_i32, %c0_i32_0, %c0_i32_1 : i32, i32, i32
  }
  func.func @transform_16(%arg0: i32) -> (i32, i32) {
    %c0_i32 = arith.constant 0 : i32
    %c0_i32_0 = arith.constant 0 : i32
    %c0_i32_1 = arith.constant 0 : i32
    return %c0_i32, %c0_i32_0 : i32, i32
  }
  func.func @transform_17(%arg0: i32) -> (i32, i32) {
    %c0_i32 = arith.constant 0 : i32
    %c0_i32_0 = arith.constant 0 : i32
    %c0_i32_1 = arith.constant 0 : i32
    return %c0_i32, %c0_i32_0 : i32, i32
  }
  func.func @transform_18(%arg0: i32) -> (i32, i32) {
    %c0_i32 = arith.constant 0 : i32
    %c0_i32_0 = arith.constant 0 : i32
    %c0_i32_1 = arith.constant 0 : i32
    return %c0_i32, %c0_i32_0 : i32, i32
  }
  func.func @transform_19(%arg0: i32) -> (i32, i32) {
    %c0_i32 = arith.constant 0 : i32
    %c0_i32_0 = arith.constant 0 : i32
    %c0_i32_1 = arith.constant 0 : i32
    return %c0_i32, %c0_i32_0 : i32, i32
  }
  func.func @transform_20(%arg0: i32) -> (i32, i32) {
    %c0_i32 = arith.constant 0 : i32
    %c0_i32_0 = arith.constant 0 : i32
    %c0_i32_1 = arith.constant 0 : i32
    return %c0_i32, %c0_i32_0 : i32, i32
  }
  func.func @transform_21(%arg0: i32) -> (i32, i32) {
    %c0_i32 = arith.constant 0 : i32
    %c0_i32_0 = arith.constant 0 : i32
    %c0_i32_1 = arith.constant 0 : i32
    return %c0_i32, %c0_i32_0 : i32, i32
  }
}

</mosaic_0001>

<llo_original>
// kernel: vit_forward.1
$region0: #{vit_forward.1}
  #allocation0 [shape = 'u32[]', space=smem, size = 0x4, offset = 0x4, fixed_abs, tag = 'smem constant byte address 0x4 - core index']
  #allocation1 [shape = 'u32[144,128]{1,0:T(1,128)}', space=vmem, size = 0x12000, scoped, tag = 'internal scratch']
  %s0 = inlined_call_operand.vmem [shape: f32[10,192], index: 0, kind: input, shape index: {}]
  %s1 = inlined_call_operand.vmem [shape: f32[192,32], index: 1, kind: input, shape index: {}]
  %s2 = inlined_call_operand.vmem [shape: f32[10,32], index: 2, kind: input, shape index: {}]
  %s3 = inlined_call_operand.vmem [shape: f32[10,10], index: 3, kind: input, shape index: {}]
  %s4 = inlined_call_operand.vmem [shape: f32[2,1,32], index: 4, kind: input, shape index: {}]
  %s5 = inlined_call_operand.vmem [shape: f32[2,1,32], index: 5, kind: input, shape index: {}]
  %s6 = inlined_call_operand.vmem [shape: f32[2,32,96], index: 6, kind: input, shape index: {}]
  %s7 = inlined_call_operand.vmem [shape: f32[2,1,96], index: 7, kind: input, shape index: {}]
  %s8 = inlined_call_operand.vmem [shape: f32[2,32,32], index: 8, kind: input, shape index: {}]
  %s9 = inlined_call_operand.vmem [shape: f32[2,1,32], index: 9, kind: input, shape index: {}]
  %s10 = inlined_call_operand.vmem [shape: f32[2,1,32], index: 10, kind: input, shape index: {}]
  %s11 = inlined_call_operand.vmem [shape: f32[2,1,32], index: 11, kind: input, shape index: {}]
  %s12 = inlined_call_operand.vmem [shape: f32[2,32,64], index: 12, kind: input, shape index: {}]
  %s13 = inlined_call_operand.vmem [shape: f32[2,1,64], index: 13, kind: input, shape index: {}]
  %s14 = inlined_call_operand.vmem [shape: f32[2,64,32], index: 14, kind: input, shape index: {}]
  %s15 = inlined_call_operand.vmem [shape: f32[2,1,32], index: 15, kind: input, shape index: {}]
  %s16 = inlined_call_operand.vmem [shape: f32[1,32], index: 16, kind: input, shape index: {}]
  %s17 = inlined_call_operand.vmem [shape: f32[1,32], index: 17, kind: input, shape index: {}]
  %s18 = inlined_call_operand.vmem [shape: f32[2,10], index: 18, kind: input, shape index: {}]
  %s19 = inlined_call_operand.vmem [shape: f32[32,3], index: 19, kind: input, shape index: {}]
  %s20 = inlined_call_operand.vmem [shape: f32[1,3], index: 20, kind: input, shape index: {}]
  %s21 = inlined_call_operand.hbm [shape: f32[2,3], index: 21, kind: output, shape index: {}]
  %s22 = sld [smem:[#allocation0]]
  $region94: #{vit_forward.1} parent=0
    _
  %s24 = ssub.s32 1, %s22
  %s25 = scalar_select 0, %s24, %s22
  $region1: #{vit_forward.1} parent=0
    #allocation2 [shape = 'u8[1024]{0}', space=vmem, size = 0x400, scoped, tag = 'output window, operand 0, single buffered']
    #allocation3 [shape = 's32[1]{0}', space=sflag, size = 0x4, scoped, tag = 'scoped memory for vit_forward.1']
    %26 = vsyncpa [#allocation3], 0
    // Predicated region
    $region2: #{vit_forward.1} parent=1 // pred_check
      _
    $region3: #{vit_forward.1} parent=1 // pred_check_branch
      %28 = sbr.rel (0) target = $region5
    $region4: #{vit_forward.1} parent=1 // pred_region
      _
    $region5: #{vit_forward.1} parent=1 // pred_fallthru
      _
    // Predicated region
    $region6: #{vit_forward.1} parent=1 // pred_check
      _
    $region7: #{vit_forward.1} parent=1 // pred_check_branch
      %30 = sbr.rel (0) target = $region9
    $region8: #{vit_forward.1} parent=1 // pred_region
      _
    $region9: #{vit_forward.1} parent=1 // pred_fallthru
      _
    // Predicated region
    $region10: #{vit_forward.1} parent=1 // pred_check
      _
    $region11: #{vit_forward.1} parent=1 // pred_check_branch
      %32 = sbr.rel (0) target = $region13
    $region12: #{vit_forward.1} parent=1 // pred_region
      _
    $region13: #{vit_forward.1} parent=1 // pred_fallthru
      _
    // Predicated region
    $region14: #{vit_forward.1} parent=1 // pred_check
      _
    $region15: #{vit_forward.1} parent=1 // pred_check_branch
      %34 = sbr.rel (0) target = $region17
    $region16: #{vit_forward.1} parent=1 // pred_region
      _
    $region17: #{vit_forward.1} parent=1 // pred_fallthru
      _
    // Predicated region
    $region18: #{vit_forward.1} parent=1 // pred_check
      _
    $region19: #{vit_forward.1} parent=1 // pred_check_branch
      %36 = sbr.rel (0) target = $region21
    $region20: #{vit_forward.1} parent=1 // pred_region
      _
    $region21: #{vit_forward.1} parent=1 // pred_fallthru
      _
    // Predicated region
    $region22: #{vit_forward.1} parent=1 // pred_check
      _
    $region23: #{vit_forward.1} parent=1 // pred_check_branch
      %38 = sbr.rel (0) target = $region25
    $region24: #{vit_forward.1} parent=1 // pred_region
      _
    $region25: #{vit_forward.1} parent=1 // pred_fallthru
      _
    // Predicated region
    $region26: #{vit_forward.1} parent=1 // pred_check
      _
    $region27: #{vit_forward.1} parent=1 // pred_check_branch
      %40 = sbr.rel (0) target = $region29
    $region28: #{vit_forward.1} parent=1 // pred_region
      _
    $region29: #{vit_forward.1} parent=1 // pred_fallthru
      _
    // Predicated region
    $region30: #{vit_forward.1} parent=1 // pred_check
      _
    $region31: #{vit_forward.1} parent=1 // pred_check_branch
      %42 = sbr.rel (0) target = $region33
    $region32: #{vit_forward.1} parent=1 // pred_region
      _
    $region33: #{vit_forward.1} parent=1 // pred_fallthru
      _
    // Predicated region
    $region34: #{vit_forward.1} parent=1 // pred_check
      _
    $region35: #{vit_forward.1} parent=1 // pred_check_branch
      %44 = sbr.rel (0) target = $region37
    $region36: #{vit_forward.1} parent=1 // pred_region
      _
    $region37: #{vit_forward.1} parent=1 // pred_fallthru
      _
    // Predicated region
    $region38: #{vit_forward.1} parent=1 // pred_check
      _
    $region39: #{vit_forward.1} parent=1 // pred_check_branch
      %46 = sbr.rel (0) target = $region41
    $region40: #{vit_forward.1} parent=1 // pred_region
      _
    $region41: #{vit_forward.1} parent=1 // pred_fallthru
      _
    // Predicated region
    $region42: #{vit_forward.1} parent=1 // pred_check
      _
    $region43: #{vit_forward.1} parent=1 // pred_check_branch
      %48 = sbr.rel (0) target = $region45
    $region44: #{vit_forward.1} parent=1 // pred_region
      _
    $region45: #{vit_forward.1} parent=1 // pred_fallthru
      _
    // Predicated region
    $region46: #{vit_forward.1} parent=1 // pred_check
      _
    $region47: #{vit_forward.1} parent=1 // pred_check_branch
      %50 = sbr.rel (0) target = $region49
    $region48: #{vit_forward.1} parent=1 // pred_region
      _
    $region49: #{vit_forward.1} parent=1 // pred_fallthru
      _
    // Predicated region
    $region50: #{vit_forward.1} parent=1 // pred_check
      _
    $region51: #{vit_forward.1} parent=1 // pred_check_branch
      %52 = sbr.rel (0) target = $region53
    $region52: #{vit_forward.1} parent=1 // pred_region
      _
    $region53: #{vit_forward.1} parent=1 // pred_fallthru
      _
    // Predicated region
    $region54: #{vit_forward.1} parent=1 // pred_check
      _
    $region55: #{vit_forward.1} parent=1 // pred_check_branch
      %54 = sbr.rel (0) target = $region57
    $region56: #{vit_forward.1} parent=1 // pred_region
      _
    $region57: #{vit_forward.1} parent=1 // pred_fallthru
      _
    // Predicated region
    $region58: #{vit_forward.1} parent=1 // pred_check
      _
    $region59: #{vit_forward.1} parent=1 // pred_check_branch
      %56 = sbr.rel (0) target = $region61
    $region60: #{vit_forward.1} parent=1 // pred_region
      _
    $region61: #{vit_forward.1} parent=1 // pred_fallthru
      _
    // Predicated region
    $region62: #{vit_forward.1} parent=1 // pred_check
      _
    $region63: #{vit_forward.1} parent=1 // pred_check_branch
      %58 = sbr.rel (0) target = $region65
    $region64: #{vit_forward.1} parent=1 // pred_region
      _
    $region65: #{vit_forward.1} parent=1 // pred_fallthru
      _
    // Predicated region
    $region66: #{vit_forward.1} parent=1 // pred_check
      _
    $region67: #{vit_forward.1} parent=1 // pred_check_branch
      %60 = sbr.rel (0) target = $region69
    $region68: #{vit_forward.1} parent=1 // pred_region
      _
    $region69: #{vit_forward.1} parent=1 // pred_fallthru
      _
    // Predicated region
    $region70: #{vit_forward.1} parent=1 // pred_check
      _
    $region71: #{vit_forward.1} parent=1 // pred_check_branch
      %62 = sbr.rel (0) target = $region73
    $region72: #{vit_forward.1} parent=1 // pred_region
      _
    $region73: #{vit_forward.1} parent=1 // pred_fallthru
      _
    // Predicated region
    $region74: #{vit_forward.1} parent=1 // pred_check
      _
    $region75: #{vit_forward.1} parent=1 // pred_check_branch
      %64 = sbr.rel (0) target = $region77
    $region76: #{vit_forward.1} parent=1 // pred_region
      _
    $region77: #{vit_forward.1} parent=1 // pred_fallthru
      _
    // Predicated region
    $region78: #{vit_forward.1} parent=1 // pred_check
      _
    $region79: #{vit_forward.1} parent=1 // pred_check_branch
      %66 = sbr.rel (0) target = $region81
    $region80: #{vit_forward.1} parent=1 // pred_region
      _
    $region81: #{vit_forward.1} parent=1 // pred_fallthru
      _
    // Predicated region
    $region82: #{vit_forward.1} parent=1 // pred_check
      _
    $region83: #{vit_forward.1} parent=1 // pred_check_branch
      %68 = sbr.rel (0) target = $region85
    $region84: #{vit_forward.1} parent=1 // pred_region
      _
    $region85: #{vit_forward.1} parent=1 // pred_fallthru
      _
    %v70 = vld [vmem:[%s3] sm:$0xff]
    %v71 = vld [vmem:[%s3 + $0x8] sm:$0x3]
    %v72 = vld [vmem:[%s0] sm:$0xff]
    %v73 = vld [vmem:[%s0 + $0x8] sm:$0xff]
    %v74 = vld [vmem:[%s0 + $0x10] sm:$0x3]
    %v75 = vld [vmem:[%s0 + $0x18] sm:$0x3]
    %v76 = vld [vmem:[%s1] sm:$0xff]
    %v77 = vld [vmem:[%s1 + $0x8] sm:$0xff]
    %v78 = vld [vmem:[%s1 + $0x10] sm:$0xff]
    %v79 = vld [vmem:[%s1 + $0x18] sm:$0xff]
    %v80 = vld [vmem:[%s1 + $0x20] sm:$0xff]
    %v81 = vld [vmem:[%s1 + $0x28] sm:$0xff]
    %v82 = vld [vmem:[%s1 + $0x30] sm:$0xff]
    %v83 = vld [vmem:[%s1 + $0x38] sm:$0xff]
    %v84 = vld [vmem:[%s1 + $0x40] sm:$0xff]
    %v85 = vld [vmem:[%s1 + $0x48] sm:$0xff]
    %v86 = vld [vmem:[%s1 + $0x50] sm:$0xff]
    %v87 = vld [vmem:[%s1 + $0x58] sm:$0xff]
    %v88 = vld [vmem:[%s1 + $0x60] sm:$0xff]
    %v89 = vld [vmem:[%s1 + $0x68] sm:$0xff]
    %v90 = vld [vmem:[%s1 + $0x70] sm:$0xff]
    %v91 = vld [vmem:[%s1 + $0x78] sm:$0xff]
    %v92 = vld [vmem:[%s1 + $0x80] sm:$0xff]
    %v93 = vld [vmem:[%s1 + $0x88] sm:$0xff]
    %v94 = vld [vmem:[%s1 + $0x90] sm:$0xff]
    %v95 = vld [vmem:[%s1 + $0x98] sm:$0xff]
    %v96 = vld [vmem:[%s1 + $0xa0] sm:$0xff]
    %v97 = vld [vmem:[%s1 + $0xa8] sm:$0xff]
    %v98 = vld [vmem:[%s1 + $0xb0] sm:$0xff]
    %v99 = vld [vmem:[%s1 + $0xb8] sm:$0xff]
    %v100 = vpack.c.bf16 %v74, %v72
    %v101 = vpack.c.bf16 %v75, %v73
    %v102 = vpack.c.bf16 %v77, %v76
    %v103 = vpack.c.bf16 %v79, %v78
    %v104 = vpack.c.bf16 %v81, %v80
    %v105 = vpack.c.bf16 %v83, %v82
    %v106 = vpack.c.bf16 %v85, %v84
    %v107 = vpack.c.bf16 %v87, %v86
    %v108 = vpack.c.bf16 %v89, %v88
    %v109 = vpack.c.bf16 %v91, %v90
    %v110 = vpack.c.bf16 %v93, %v92
    %v111 = vpack.c.bf16 %v95, %v94
    %v112 = vpack.c.bf16 %v97, %v96
    %v113 = vpack.c.bf16 %v99, %v98
    %v114 = vld [vmem:[%s2] sm:$0xff]
    %v115 = vld [vmem:[%s2 + $0x8] sm:$0x3]
    %vm116 = vcmask 523264
    %v118 = vsel %vm116, %v101, 0
    %120 = vmatprep.subr.bf16.mxu0 0
    %121 = vmatpush1.bf16.msra.mxu0 %v102
    %122 = vmatprep.subr.bf16.mxu0 0
    %123 = vmatpush1.bf16.msra.mxu0 %v103
    %124 = vmatprep.subr.bf16.mxu0 0
    %125 = vmatpush1.bf16.msra.mxu0 %v104
    %126 = vmatprep.subr.bf16.mxu0 0
    %127 = vmatpush1.bf16.msra.mxu0 %v105
    %128 = vmatprep.subr.bf16.mxu0 0
    %129 = vmatpush1.bf16.msra.mxu0 %v106
    %130 = vmatprep.subr.bf16.mxu0 0
    %131 = vmatpush1.bf16.msra.mxu0 %v107
    %132 = vmatprep.subr.bf16.mxu0 0
    %133 = vmatpush1.bf16.msra.mxu0 %v108
    %134 = vmatprep.subr.bf16.mxu0 0
    %135 = vmatpush1.bf16.msra.mxu0 %v109
    %136 = vmatprep.subr.bf16.mxu0 0
    %137 = vmatpush1.bf16.msra.mxu0 %v110
    %138 = vmatprep.subr.bf16.mxu0 0
    %139 = vmatpush1.bf16.msra.mxu0 %v111
    %140 = vmatprep.subr.bf16.mxu0 0
    %141 = vmatpush1.bf16.msra.mxu0 %v112
    %142 = vmatprep.subr.bf16.mxu0 0
    %143 = vmatpush1.bf16.msra.mxu0 %v113
    %144 = vmatprep.subr.bf16.mxu0 0
    %145 = vmatpush1.bf16.msra.mxu0 0
    %146 = vmatprep.subr.bf16.mxu0 0
    %147 = vmatpush1.bf16.msra.mxu0 0
    %148 = vmatprep.subr.bf16.mxu0 0
    %149 = vmatpush1.bf16.msra.mxu0 0
    %150 = vmatprep.subr.bf16.mxu0 0
    %151 = vmatpush1.bf16.msra.mxu0 0
    %152 = vmatprep.mubr.bf16.mxu0 %v118
    %153 = vmatmul.mubr.bf16.gmra.mrb[0].mxu0 %v100
    %v154 = vpop.f32.mrb[0].mxu0
    %v155 = vadd.f32 %v114, %v154
    %v156 = vpop.f32.mrb[0].mxu0
    %v157 = vpop.f32.mrb[0].mxu0
    %v158 = vadd.f32 %v115, %v157
    %v159 = vpop.f32.mrb[0].mxu0
    %160 = vdwg.mxu0
    %v161 = vld [vmem:[%s4] sm:$0x1]
    %v162 = vld [vmem:[%s5] sm:$0x1]
    %vm163 = vcmask 261120
    %v164 = vsel %vm163, %v155, 0.0
    %165 = vadd.xlane.f32.xlu0 %v164
    %v166 = vpop.xlane.xlu0 %165
    %vm167 = vcmask 254976
    %v168 = vsel %vm167, %v158, 0.0
    %169 = vadd.xlane.f32.xlu0 %v168
    %v170 = vpop.xlane.xlu0 %169
    %v171 = vrcp.pop 32.0
    %v172 = vmul.f32 %v166, %v171
    %v173 = vmul.f32 %v170, %v171
    %v174 = vsub.f32 %v155, %v172
    %v175 = vsub.f32 %v158, %v173
    %v176 = vmul.f32 %v174, %v174
    %v177 = vmul.f32 %v175, %v175
    %v178 = vsel %vm163, %v176, 0.0
    %179 = vadd.xlane.f32.xlu0 %v178
    %v180 = vpop.xlane.xlu0 %179
    %v181 = vsel %vm167, %v177, 0.0
    %182 = vadd.xlane.f32.xlu0 %v181
    %v183 = vpop.xlane.xlu0 %182
    %v184 = vmul.f32 %v180, %v171
    %v185 = vmul.f32 %v183, %v171
    %v186 = vadd.f32 %v184, 1e-12
    %v187 = vadd.f32 %v185, 1e-12
    %v188 = vrsqrt.pop %v186
    %v189 = vrsqrt.pop %v187
    %v190 = vmul.f32 %v174, %v188
    %v191 = vmul.f32 %v175, %v189
    %v193 = vlaneseq
    %v194 = vshrl.u32 %v193, 7
    %v195 = vsub.s32 0, %v194
    %v196 = vrot.slane %v161, %v195
    %v198 = vmul.f32 %v190, %v196
    %v199 = vmul.f32 %v191, %v196
    %v201 = vlaneseq
    %v202 = vshrl.u32 %v201, 7
    %v203 = vsub.s32 0, %v202
    %v204 = vrot.slane %v162, %v203
    %v206 = vadd.f32 %v198, %v204
    %v207 = vadd.f32 %v199, %v204
    %v208 = vld [vmem:[%s6] sm:$0xff]
    %v209 = vld [vmem:[%s6 + $0x8] sm:$0xff]
    %v210 = vld [vmem:[%s6 + $0x10] sm:$0xff]
    %v211 = vld [vmem:[%s6 + $0x18] sm:$0xff]
    %v212 = vpack.c.bf16 %v207, %v206
    %v213 = vpack.c.bf16 %v209, %v208
    %v214 = vpack.c.bf16 %v211, %v210
    %v215 = vld [vmem:[%s7] sm:$0x1]
    %v217 = vlaneseq
    %v218 = vshrl.u32 %v217, 7
    %v219 = vsub.s32 0, %v218
    %v220 = vrot.slane %v215, %v219
    %v223 = vsel %vm163, %v212, 0
    %225 = vmatprep.subr.bf16.mxu0 0
    %226 = vmatpush1.bf16.msra.mxu0 %v213
    %227 = vmatprep.subr.bf16.mxu0 0
    %228 = vmatpush1.bf16.msra.mxu0 %v214
    %229 = vmatprep.subr.bf16.mxu0 0
    %230 = vmatpush1.bf16.msra.mxu0 0
    %231 = vmatprep.subr.bf16.mxu0 0
    %232 = vmatpush1.bf16.msra.mxu0 0
    %233 = vmatprep.subr.bf16.mxu0 0
    %234 = vmatpush1.bf16.msra.mxu0 0
    %235 = vmatprep.subr.bf16.mxu0 0
    %236 = vmatpush1.bf16.msra.mxu0 0
    %237 = vmatprep.subr.bf16.mxu0 0
    %238 = vmatpush1.bf16.msra.mxu0 0
    %239 = vmatprep.subr.bf16.mxu0 0
    %240 = vmatpush1.bf16.msra.mxu0 0
    %241 = vmatprep.subr.bf16.mxu0 0
    %242 = vmatpush1.bf16.msra.mxu0 0
    %243 = vmatprep.subr.bf16.mxu0 0
    %244 = vmatpush1.bf16.msra.mxu0 0
    %245 = vmatprep.subr.bf16.mxu0 0
    %246 = vmatpush1.bf16.msra.mxu0 0
    %247 = vmatprep.subr.bf16.mxu0 0
    %248 = vmatpush1.bf16.msra.mxu0 0
    %249 = vmatprep.subr.bf16.mxu0 0
    %250 = vmatpush1.bf16.msra.mxu0 0
    %251 = vmatprep.subr.bf16.mxu0 0
    %252 = vmatpush1.bf16.msra.mxu0 0
    %253 = vmatprep.subr.bf16.mxu0 0
    %254 = vmatpush1.bf16.msra.mxu0 0
    %255 = vmatprep.subr.bf16.mxu0 0
    %256 = vmatpush1.bf16.msra.mxu0 0
    %257 = vmatprep.mubr.bf16.mxu0 0
    %258 = vmatmul.mubr.bf16.gmra.mrb[0].mxu0 %v223
    %v259 = vpop.f32.mrb[0].mxu0
    %v260 = vadd.f32 %v220, %v259
    %v261 = vpop.f32.mrb[0].mxu0
    %v262 = vpop.f32.mrb[0].mxu0
    %v263 = vadd.f32 %v220, %v262
    %v264 = vpop.f32.mrb[0].mxu0
    %265 = vdwg.mxu0
    %v266 = vpack.c.bf16 %v263, %v260
    %268 = vrot.lane.b32.xlu0 %v266, 96
    %v269 = vpop.permute.xlu0 %268
    %vm270 = vcmask 64512
    %v272 = vsel %vm270, %v266, 0
    %v275 = vsel %vm270, %v269, 0
    %277 = vmatprep.subr.bf16.mxu0 0
    %278 = vmatpush1.bf16.xpose.msra.mxu0 %v275
    %279 = vmatprep.subr.bf16.mxu0 0
    %280 = vmatpush1.bf16.xpose.msra.mxu0 0
    %281 = vmatprep.subr.bf16.mxu0 0
    %282 = vmatpush1.bf16.xpose.msra.mxu0 0
    %283 = vmatprep.subr.bf16.mxu0 0
    %284 = vmatpush1.bf16.xpose.msra.mxu0 0
    %285 = vmatprep.subr.bf16.mxu0 0
    %286 = vmatpush1.bf16.xpose.msra.mxu0 0
    %287 = vmatprep.subr.bf16.mxu0 0
    %288 = vmatpush1.bf16.xpose.msra.mxu0 0
    %289 = vmatprep.subr.bf16.mxu0 0
    %290 = vmatpush1.bf16.xpose.msra.mxu0 0
    %291 = vmatprep.subr.bf16.mxu0 0
    %292 = vmatpush1.bf16.xpose.msra.mxu0 0
    %293 = vmatprep.subr.bf16.mxu0 0
    %294 = vmatpush1.bf16.xpose.msra.mxu0 0
    %295 = vmatprep.subr.bf16.mxu0 0
    %296 = vmatpush1.bf16.xpose.msra.mxu0 0
    %297 = vmatprep.subr.bf16.mxu0 0
    %298 = vmatpush1.bf16.xpose.msra.mxu0 0
    %299 = vmatprep.subr.bf16.mxu0 0
    %300 = vmatpush1.bf16.xpose.msra.mxu0 0
    %301 = vmatprep.subr.bf16.mxu0 0
    %302 = vmatpush1.bf16.xpose.msra.mxu0 0
    %303 = vmatprep.subr.bf16.mxu0 0
    %304 = vmatpush1.bf16.xpose.msra.mxu0 0
    %305 = vmatprep.subr.bf16.mxu0 0
    %306 = vmatpush1.bf16.xpose.msra.mxu0 0
    %307 = vmatprep.subr.bf16.mxu0 0
    %308 = vmatpush1.bf16.xpose.msra.mxu0 0
    %309 = vmatprep.mubr.bf16.mxu0 0
    %310 = vmatmul.mubr.bf16.gmra.mrb[0].mxu0 %v272
    %v311 = vpop.f32.mrb[0].mxu0
    %v312 = vadd.f32 0.0, %v311
    %v313 = vpop.f32.mrb[0].mxu0
    %v314 = vpop.f32.mrb[0].mxu0
    %v315 = vadd.f32 0.0, %v314
    %v316 = vpop.f32.mrb[0].mxu0
    %317 = vdwg.mxu0
    %v318 = vmul.f32 %v312, 0.35355338
    %v319 = vmul.f32 %v315, 0.35355338
    %v320 = vadd.f32 %v318, %v70
    %v321 = vadd.f32 %v319, %v71
    %vm322 = vcmask 80896
    %v323 = vsel %vm322, %v320, -inf
    %324 = vmax.xlane.f32.xlu0 %v323
    %v325 = vpop.xlane.xlu0 %324
    %vm326 = vcmask 74752
    %v327 = vsel %vm326, %v321, -inf
    %328 = vmax.xlane.f32.xlu0 %v327
    %v329 = vpop.xlane.xlu0 %328
    %v330 = vsub.f32 %v320, %v325
    %v331 = vsub.f32 %v321, %v329
    %v332 = vmul.f32 %v330, 1.442695
    %v333 = vpow.pop %v332
    %v334 = vmul.f32 %v331, 1.442695
    %v335 = vpow.pop %v334
    %v336 = vsel %vm322, %v333, 0.0
    %337 = vadd.xlane.f32.xlu0 %v336
    %v338 = vpop.xlane.xlu0 %337
    %v339 = vsel %vm326, %v335, 0.0
    %340 = vadd.xlane.f32.xlu0 %v339
    %v341 = vpop.xlane.xlu0 %340
    %v342 = vrcp.pop %v338
    %v343 = vrcp.pop %v341
    %v344 = vmul.f32 %v333, %v342
    %v345 = vmul.f32 %v335, %v343
    %v346 = vpack.c.bf16 %v345, %v344
    %347 = vrot.lane.b32.xlu0 %v266, 64
    %v348 = vpop.permute.xlu0 %347
    %v350 = vsel %vm322, %v346, 0
    %vm352 = vcmask 1044480
    %v354 = vsel %vm352, %v348, 0
    %356 = vmatprep.subr.bf16.mxu0 0
    %357 = vmatpush1.bf16.msra.mxu0 %v354
    %358 = vmatprep.subr.bf16.mxu0 0
    %359 = vmatpush1.bf16.msra.mxu0 0
    %360 = vmatprep.subr.bf16.mxu0 0
    %361 = vmatpush1.bf16.msra.mxu0 0
    %362 = vmatprep.subr.bf16.mxu0 0
    %363 = vmatpush1.bf16.msra.mxu0 0
    %364 = vmatprep.subr.bf16.mxu0 0
    %365 = vmatpush1.bf16.msra.mxu0 0
    %366 = vmatprep.subr.bf16.mxu0 0
    %367 = vmatpush1.bf16.msra.mxu0 0
    %368 = vmatprep.subr.bf16.mxu0 0
    %369 = vmatpush1.bf16.msra.mxu0 0
    %370 = vmatprep.subr.bf16.mxu0 0
    %371 = vmatpush1.bf16.msra.mxu0 0
    %372 = vmatprep.subr.bf16.mxu0 0
    %373 = vmatpush1.bf16.msra.mxu0 0
    %374 = vmatprep.subr.bf16.mxu0 0
    %375 = vmatpush1.bf16.msra.mxu0 0
    %376 = vmatprep.subr.bf16.mxu0 0
    %377 = vmatpush1.bf16.msra.mxu0 0
    %378 = vmatprep.subr.bf16.mxu0 0
    %379 = vmatpush1.bf16.msra.mxu0 0
    %380 = vmatprep.subr.bf16.mxu0 0
    %381 = vmatpush1.bf16.msra.mxu0 0
    %382 = vmatprep.subr.bf16.mxu0 0
    %383 = vmatpush1.bf16.msra.mxu0 0
    %384 = vmatprep.subr.bf16.mxu0 0
    %385 = vmatpush1.bf16.msra.mxu0 0
    %386 = vmatprep.subr.bf16.mxu0 0
    %387 = vmatpush1.bf16.msra.mxu0 0
    %388 = vmatprep.mubr.bf16.mxu0 0
    %389 = vmatmul.mubr.bf16.gmra.mrb[0].mxu0 %v350
    %v390 = vpop.f32.mrb[0].mxu0
    %v391 = vadd.f32 0.0, %v390
    %v392 = vpop.f32.mrb[0].mxu0
    %v393 = vpop.f32.mrb[0].mxu0
    %v394 = vadd.f32 0.0, %v393
    %v395 = vpop.f32.mrb[0].mxu0
    %396 = vdwg.mxu0
    %397 = vrot.lane.b32.xlu0 %v266, 120
    %v398 = vpop.permute.xlu0 %397
    %399 = vrot.lane.b32.xlu0 %v266, 88
    %v400 = vpop.permute.xlu0 %399
    %v402 = vsel %vm270, %v398, 0
    %v405 = vsel %vm270, %v400, 0
    %407 = vmatprep.subr.bf16.mxu0 0
    %408 = vmatpush1.bf16.xpose.msra.mxu0 %v405
    %409 = vmatprep.subr.bf16.mxu0 0
    %410 = vmatpush1.bf16.xpose.msra.mxu0 0
    %411 = vmatprep.subr.bf16.mxu0 0
    %412 = vmatpush1.bf16.xpose.msra.mxu0 0
    %413 = vmatprep.subr.bf16.mxu0 0
    %414 = vmatpush1.bf16.xpose.msra.mxu0 0
    %415 = vmatprep.subr.bf16.mxu0 0
    %416 = vmatpush1.bf16.xpose.msra.mxu0 0
    %417 = vmatprep.subr.bf16.mxu0 0
    %418 = vmatpush1.bf16.xpose.msra.mxu0 0
    %419 = vmatprep.subr.bf16.mxu0 0
    %420 = vmatpush1.bf16.xpose.msra.mxu0 0
    %421 = vmatprep.subr.bf16.mxu0 0
    %422 = vmatpush1.bf16.xpose.msra.mxu0 0
    %423 = vmatprep.subr.bf16.mxu0 0
    %424 = vmatpush1.bf16.xpose.msra.mxu0 0
    %425 = vmatprep.subr.bf16.mxu0 0
    %426 = vmatpush1.bf16.xpose.msra.mxu0 0
    %427 = vmatprep.subr.bf16.mxu0 0
    %428 = vmatpush1.bf16.xpose.msra.mxu0 0
    %429 = vmatprep.subr.bf16.mxu0 0
    %430 = vmatpush1.bf16.xpose.msra.mxu0 0
    %431 = vmatprep.subr.bf16.mxu0 0
    %432 = vmatpush1.bf16.xpose.msra.mxu0 0
    %433 = vmatprep.subr.bf16.mxu0 0
    %434 = vmatpush1.bf16.xpose.msra.mxu0 0
    %435 = vmatprep.subr.bf16.mxu0 0
    %436 = vmatpush1.bf16.xpose.msra.mxu0 0
    %437 = vmatprep.subr.bf16.mxu0 0
    %438 = vmatpush1.bf16.xpose.msra.mxu0 0
    %439 = vmatprep.mubr.bf16.mxu0 0
    %440 = vmatmul.mubr.bf16.gmra.mrb[0].mxu0 %v402
    %v441 = vpop.f32.mrb[0].mxu0
    %v442 = vadd.f32 0.0, %v441
    %v443 = vpop.f32.mrb[0].mxu0
    %v444 = vpop.f32.mrb[0].mxu0
    %v445 = vadd.f32 0.0, %v444
    %v446 = vpop.f32.mrb[0].mxu0
    %447 = vdwg.mxu0
    %v448 = vmul.f32 %v442, 0.35355338
    %v449 = vmul.f32 %v445, 0.35355338
    %v450 = vadd.f32 %v448, %v70
    %v451 = vadd.f32 %v449, %v71
    %v452 = vsel %vm322, %v450, -inf
    %453 = vmax.xlane.f32.xlu0 %v452
    %v454 = vpop.xlane.xlu0 %453
    %v455 = vsel %vm326, %v451, -inf
    %456 = vmax.xlane.f32.xlu0 %v455
    %v457 = vpop.xlane.xlu0 %456
    %v458 = vsub.f32 %v450, %v454
    %v459 = vsub.f32 %v451, %v457
    %v460 = vmul.f32 %v458, 1.442695
    %v461 = vpow.pop %v460
    %v462 = vmul.f32 %v459, 1.442695
    %v463 = vpow.pop %v462
    %v464 = vsel %vm322, %v461, 0.0
    %465 = vadd.xlane.f32.xlu0 %v464
    %v466 = vpop.xlane.xlu0 %465
    %v467 = vsel %vm326, %v463, 0.0
    %468 = vadd.xlane.f32.xlu0 %v467
    %v469 = vpop.xlane.xlu0 %468
    %v470 = vrcp.pop %v466
    %v471 = vrcp.pop %v469
    %v472 = vmul.f32 %v461, %v470
    %v473 = vmul.f32 %v463, %v471
    %v474 = vpack.c.bf16 %v473, %v472
    %475 = vrot.lane.b32.xlu0 %v266, 56
    %v476 = vpop.permute.xlu0 %475
    %v478 = vsel %vm322, %v474, 0
    %v481 = vsel %vm352, %v476, 0
    %483 = vmatprep.subr.bf16.mxu0 0
    %484 = vmatpush1.bf16.msra.mxu0 %v481
    %485 = vmatprep.subr.bf16.mxu0 0
    %486 = vmatpush1.bf16.msra.mxu0 0
    %487 = vmatprep.subr.bf16.mxu0 0
    %488 = vmatpush1.bf16.msra.mxu0 0
    %489 = vmatprep.subr.bf16.mxu0 0
    %490 = vmatpush1.bf16.msra.mxu0 0
    %491 = vmatprep.subr.bf16.mxu0 0
    %492 = vmatpush1.bf16.msra.mxu0 0
    %493 = vmatprep.subr.bf16.mxu0 0
    %494 = vmatpush1.bf16.msra.mxu0 0
    %495 = vmatprep.subr.bf16.mxu0 0
    %496 = vmatpush1.bf16.msra.mxu0 0
    %497 = vmatprep.subr.bf16.mxu0 0
    %498 = vmatpush1.bf16.msra.mxu0 0
    %499 = vmatprep.subr.bf16.mxu0 0
    %500 = vmatpush1.bf16.msra.mxu0 0
    %501 = vmatprep.subr.bf16.mxu0 0
    %502 = vmatpush1.bf16.msra.mxu0 0
    %503 = vmatprep.subr.bf16.mxu0 0
    %504 = vmatpush1.bf16.msra.mxu0 0
    %505 = vmatprep.subr.bf16.mxu0 0
    %506 = vmatpush1.bf16.msra.mxu0 0
    %507 = vmatprep.subr.bf16.mxu0 0
    %508 = vmatpush1.bf16.msra.mxu0 0
    %509 = vmatprep.subr.bf16.mxu0 0
    %510 = vmatpush1.bf16.msra.mxu0 0
    %511 = vmatprep.subr.bf16.mxu0 0
    %512 = vmatpush1.bf16.msra.mxu0 0
    %513 = vmatprep.subr.bf16.mxu0 0
    %514 = vmatpush1.bf16.msra.mxu0 0
    %515 = vmatprep.mubr.bf16.mxu0 0
    %516 = vmatmul.mubr.bf16.gmra.mrb[0].mxu0 %v478
    %v517 = vpop.f32.mrb[0].mxu0
    %v518 = vadd.f32 0.0, %v517
    %v519 = vpop.f32.mrb[0].mxu0
    %v520 = vpop.f32.mrb[0].mxu0
    %v521 = vadd.f32 0.0, %v520
    %v522 = vpop.f32.mrb[0].mxu0
    %523 = vdwg.mxu0
    %524 = vrot.lane.b32.xlu0 %v266, 112
    %v525 = vpop.permute.xlu0 %524
    %526 = vrot.lane.b32.xlu0 %v266, 80
    %v527 = vpop.permute.xlu0 %526
    %v529 = vsel %vm270, %v525, 0
    %v532 = vsel %vm270, %v527, 0
    %534 = vmatprep.subr.bf16.mxu0 0
    %535 = vmatpush1.bf16.xpose.msra.mxu0 %v532
    %536 = vmatprep.subr.bf16.mxu0 0
    %537 = vmatpush1.bf16.xpose.msra.mxu0 0
    %538 = vmatprep.subr.bf16.mxu0 0
    %539 = vmatpush1.bf16.xpose.msra.mxu0 0
    %540 = vmatprep.subr.bf16.mxu0 0
    %541 = vmatpush1.bf16.xpose.msra.mxu0 0
    %542 = vmatprep.subr.bf16.mxu0 0
    %543 = vmatpush1.bf16.xpose.msra.mxu0 0
    %544 = vmatprep.subr.bf16.mxu0 0
    %545 = vmatpush1.bf16.xpose.msra.mxu0 0
    %546 = vmatprep.subr.bf16.mxu0 0
    %547 = vmatpush1.bf16.xpose.msra.mxu0 0
    %548 = vmatprep.subr.bf16.mxu0 0
    %549 = vmatpush1.bf16.xpose.msra.mxu0 0
    %550 = vmatprep.subr.bf16.mxu0 0
    %551 = vmatpush1.bf16.xpose.msra.mxu0 0
    %552 = vmatprep.subr.bf16.mxu0 0
    %553 = vmatpush1.bf16.xpose.msra.mxu0 0
    %554 = vmatprep.subr.bf16.mxu0 0
    %555 = vmatpush1.bf16.xpose.msra.mxu0 0
    %556 = vmatprep.subr.bf16.mxu0 0
    %557 = vmatpush1.bf16.xpose.msra.mxu0 0
    %558 = vmatprep.subr.bf16.mxu0 0
    %559 = vmatpush1.bf16.xpose.msra.mxu0 0
    %560 = vmatprep.subr.bf16.mxu0 0
    %561 = vmatpush1.bf16.xpose.msra.mxu0 0
    %562 = vmatprep.subr.bf16.mxu0 0
    %563 = vmatpush1.bf16.xpose.msra.mxu0 0
    %564 = vmatprep.subr.bf16.mxu0 0
    %565 = vmatpush1.bf16.xpose.msra.mxu0 0
    %566 = vmatprep.mubr.bf16.mxu0 0
    %567 = vmatmul.mubr.bf16.gmra.mrb[0].mxu0 %v529
    %v568 = vpop.f32.mrb[0].mxu0
    %v569 = vadd.f32 0.0, %v568
    %v570 = vpop.f32.mrb[0].mxu0
    %v571 = vpop.f32.mrb[0].mxu0
    %v572 = vadd.f32 0.0, %v571
    %v573 = vpop.f32.mrb[0].mxu0
    %574 = vdwg.mxu0
    %v575 = vmul.f32 %v569, 0.35355338
    %v576 = vmul.f32 %v572, 0.35355338
    %v577 = vadd.f32 %v575, %v70
    %v578 = vadd.f32 %v576, %v71
    %v579 = vsel %vm322, %v577, -inf
    %580 = vmax.xlane.f32.xlu0 %v579
    %v581 = vpop.xlane.xlu0 %580
    %v582 = vsel %vm326, %v578, -inf
    %583 = vmax.xlane.f32.xlu0 %v582
    %v584 = vpop.xlane.xlu0 %583
    %v585 = vsub.f32 %v577, %v581
    %v586 = vsub.f32 %v578, %v584
    %v587 = vmul.f32 %v585, 1.442695
    %v588 = vpow.pop %v587
    %v589 = vmul.f32 %v586, 1.442695
    %v590 = vpow.pop %v589
    %v591 = vsel %vm322, %v588, 0.0
    %592 = vadd.xlane.f32.xlu0 %v591
    %v593 = vpop.xlane.xlu0 %592
    %v594 = vsel %vm326, %v590, 0.0
    %595 = vadd.xlane.f32.xlu0 %v594
    %v596 = vpop.xlane.xlu0 %595
    %v597 = vrcp.pop %v593
    %v598 = vrcp.pop %v596
    %v599 = vmul.f32 %v588, %v597
    %v600 = vmul.f32 %v590, %v598
    %v601 = vpack.c.bf16 %v600, %v599
    %602 = vrot.lane.b32.xlu0 %v266, 48
    %v603 = vpop.permute.xlu0 %602
    %v605 = vsel %vm322, %v601, 0
    %v608 = vsel %vm352, %v603, 0
    %610 = vmatprep.subr.bf16.mxu0 0
    %611 = vmatpush1.bf16.msra.mxu0 %v608
    %612 = vmatprep.subr.bf16.mxu0 0
    %613 = vmatpush1.bf16.msra.mxu0 0
    %614 = vmatprep.subr.bf16.mxu0 0
    %615 = vmatpush1.bf16.msra.mxu0 0
    %616 = vmatprep.subr.bf16.mxu0 0
    %617 = vmatpush1.bf16.msra.mxu0 0
    %618 = vmatprep.subr.bf16.mxu0 0
    %619 = vmatpush1.bf16.msra.mxu0 0
    %620 = vmatprep.subr.bf16.mxu0 0
    %621 = vmatpush1.bf16.msra.mxu0 0
    %622 = vmatprep.subr.bf16.mxu0 0
    %623 = vmatpush1.bf16.msra.mxu0 0
    %624 = vmatprep.subr.bf16.mxu0 0
    %625 = vmatpush1.bf16.msra.mxu0 0
    %626 = vmatprep.subr.bf16.mxu0 0
    %627 = vmatpush1.bf16.msra.mxu0 0
    %628 = vmatprep.subr.bf16.mxu0 0
    %629 = vmatpush1.bf16.msra.mxu0 0
    %630 = vmatprep.subr.bf16.mxu0 0
    %631 = vmatpush1.bf16.msra.mxu0 0
    %632 = vmatprep.subr.bf16.mxu0 0
    %633 = vmatpush1.bf16.msra.mxu0 0
    %634 = vmatprep.subr.bf16.mxu0 0
    %635 = vmatpush1.bf16.msra.mxu0 0
    %636 = vmatprep.subr.bf16.mxu0 0
    %637 = vmatpush1.bf16.msra.mxu0 0
    %638 = vmatprep.subr.bf16.mxu0 0
    %639 = vmatpush1.bf16.msra.mxu0 0
    %640 = vmatprep.subr.bf16.mxu0 0
    %641 = vmatpush1.bf16.msra.mxu0 0
    %642 = vmatprep.mubr.bf16.mxu0 0
    %643 = vmatmul.mubr.bf16.gmra.mrb[0].mxu0 %v605
    %v644 = vpop.f32.mrb[0].mxu0
    %v645 = vadd.f32 0.0, %v644
    %v646 = vpop.f32.mrb[0].mxu0
    %v647 = vpop.f32.mrb[0].mxu0
    %v648 = vadd.f32 0.0, %v647
    %v649 = vpop.f32.mrb[0].mxu0
    %650 = vdwg.mxu0
    %651 = vrot.lane.b32.xlu0 %v266, 104
    %v652 = vpop.permute.xlu0 %651
    %653 = vrot.lane.b32.xlu0 %v266, 72
    %v654 = vpop.permute.xlu0 %653
    %v656 = vsel %vm270, %v652, 0
    %v659 = vsel %vm270, %v654, 0
    %661 = vmatprep.subr.bf16.mxu0 0
    %662 = vmatpush1.bf16.xpose.msra.mxu0 %v659
    %663 = vmatprep.subr.bf16.mxu0 0
    %664 = vmatpush1.bf16.xpose.msra.mxu0 0
    %665 = vmatprep.subr.bf16.mxu0 0
    %666 = vmatpush1.bf16.xpose.msra.mxu0 0
    %667 = vmatprep.subr.bf16.mxu0 0
    %668 = vmatpush1.bf16.xpose.msra.mxu0 0
    %669 = vmatprep.subr.bf16.mxu0 0
    %670 = vmatpush1.bf16.xpose.msra.mxu0 0
    %671 = vmatprep.subr.bf16.mxu0 0
    %672 = vmatpush1.bf16.xpose.msra.mxu0 0
    %673 = vmatprep.subr.bf16.mxu0 0
    %674 = vmatpush1.bf16.xpose.msra.mxu0 0
    %675 = vmatprep.subr.bf16.mxu0 0
    %676 = vmatpush1.bf16.xpose.msra.mxu0 0
    %677 = vmatprep.subr.bf16.mxu0 0
    %678 = vmatpush1.bf16.xpose.msra.mxu0 0
    %679 = vmatprep.subr.bf16.mxu0 0
    %680 = vmatpush1.bf16.xpose.msra.mxu0 0
    %681 = vmatprep.subr.bf16.mxu0 0
    %682 = vmatpush1.bf16.xpose.msra.mxu0 0
    %683 = vmatprep.subr.bf16.mxu0 0
    %684 = vmatpush1.bf16.xpose.msra.mxu0 0
    %685 = vmatprep.subr.bf16.mxu0 0
    %686 = vmatpush1.bf16.xpose.msra.mxu0 0
    %687 = vmatprep.subr.bf16.mxu0 0
    %688 = vmatpush1.bf16.xpose.msra.mxu0 0
    %689 = vmatprep.subr.bf16.mxu0 0
    %690 = vmatpush1.bf16.xpose.msra.mxu0 0
    %691 = vmatprep.subr.bf16.mxu0 0
    %692 = vmatpush1.bf16.xpose.msra.mxu0 0
    %693 = vmatprep.mubr.bf16.mxu0 0
    %694 = vmatmul.mubr.bf16.gmra.mrb[0].mxu0 %v656
    %v695 = vpop.f32.mrb[0].mxu0
    %v696 = vadd.f32 0.0, %v695
    %v697 = vpop.f32.mrb[0].mxu0
    %v698 = vpop.f32.mrb[0].mxu0
    %v699 = vadd.f32 0.0, %v698
    %v700 = vpop.f32.mrb[0].mxu0
    %701 = vdwg.mxu0
    %v702 = vmul.f32 %v696, 0.35355338
    %v703 = vmul.f32 %v699, 0.35355338
    %v704 = vadd.f32 %v702, %v70
    %v705 = vadd.f32 %v703, %v71
    %v706 = vsel %vm322, %v704, -inf
    %707 = vmax.xlane.f32.xlu0 %v706
    %v708 = vpop.xlane.xlu0 %707
    %v709 = vsel %vm326, %v705, -inf
    %710 = vmax.xlane.f32.xlu0 %v709
    %v711 = vpop.xlane.xlu0 %710
    %v712 = vsub.f32 %v704, %v708
    %v713 = vsub.f32 %v705, %v711
    %v714 = vmul.f32 %v712, 1.442695
    %v715 = vpow.pop %v714
    %v716 = vmul.f32 %v713, 1.442695
    %v717 = vpow.pop %v716
    %v718 = vsel %vm322, %v715, 0.0
    %719 = vadd.xlane.f32.xlu0 %v718
    %v720 = vpop.xlane.xlu0 %719
    %v721 = vsel %vm326, %v717, 0.0
    %722 = vadd.xlane.f32.xlu0 %v721
    %v723 = vpop.xlane.xlu0 %722
    %v724 = vrcp.pop %v720
    %v725 = vrcp.pop %v723
    %v726 = vmul.f32 %v715, %v724
    %v727 = vmul.f32 %v717, %v725
    %v728 = vpack.c.bf16 %v727, %v726
    %729 = vrot.lane.b32.xlu0 %v266, 40
    %v730 = vpop.permute.xlu0 %729
    %v732 = vsel %vm322, %v728, 0
    %v735 = vsel %vm352, %v730, 0
    %737 = vmatprep.subr.bf16.mxu0 0
    %738 = vmatpush1.bf16.msra.mxu0 %v735
    %739 = vmatprep.subr.bf16.mxu0 0
    %740 = vmatpush1.bf16.msra.mxu0 0
    %741 = vmatprep.subr.bf16.mxu0 0
    %742 = vmatpush1.bf16.msra.mxu0 0
    %743 = vmatprep.subr.bf16.mxu0 0
    %744 = vmatpush1.bf16.msra.mxu0 0
    %745 = vmatprep.subr.bf16.mxu0 0
    %746 = vmatpush1.bf16.msra.mxu0 0
    %747 = vmatprep.subr.bf16.mxu0 0
    %748 = vmatpush1.bf16.msra.mxu0 0
    %749 = vmatprep.subr.bf16.mxu0 0
    %750 = vmatpush1.bf16.msra.mxu0 0
    %751 = vmatprep.subr.bf16.mxu0 0
    %752 = vmatpush1.bf16.msra.mxu0 0
    %753 = vmatprep.subr.bf16.mxu0 0
    %754 = vmatpush1.bf16.msra.mxu0 0
    %755 = vmatprep.subr.bf16.mxu0 0
    %756 = vmatpush1.bf16.msra.mxu0 0
    %757 = vmatprep.subr.bf16.mxu0 0
    %758 = vmatpush1.bf16.msra.mxu0 0
    %759 = vmatprep.subr.bf16.mxu0 0
    %760 = vmatpush1.bf16.msra.mxu0 0
    %761 = vmatprep.subr.bf16.mxu0 0
    %762 = vmatpush1.bf16.msra.mxu0 0
    %763 = vmatprep.subr.bf16.mxu0 0
    %764 = vmatpush1.bf16.msra.mxu0 0
    %765 = vmatprep.subr.bf16.mxu0 0
    %766 = vmatpush1.bf16.msra.mxu0 0
    %767 = vmatprep.subr.bf16.mxu0 0
    %768 = vmatpush1.bf16.msra.mxu0 0
    %769 = vmatprep.mubr.bf16.mxu0 0
    %770 = vmatmul.mubr.bf16.gmra.mrb[0].mxu0 %v732
    %v771 = vpop.f32.mrb[0].mxu0
    %v772 = vadd.f32 0.0, %v771
    %v773 = vpop.f32.mrb[0].mxu0
    %v774 = vpop.f32.mrb[0].mxu0
    %v775 = vadd.f32 0.0, %v774
    %v776 = vpop.f32.mrb[0].mxu0
    %777 = vdwg.mxu0
    %780 = vrot.lane.b32.xlu0 %v518, 8
    %v781 = vpop.permute.xlu0 %780
    %782 = vrot.lane.b32.xlu0 %v521, 8
    %v783 = vpop.permute.xlu0 %782
    %788 = vrot.lane.b32.xlu0 %v645, 16
    %v789 = vpop.permute.xlu0 %788
    %790 = vrot.lane.b32.xlu0 %v648, 16
    %v791 = vpop.permute.xlu0 %790
    %796 = vrot.lane.b32.xlu0 %v772, 24
    %v797 = vpop.permute.xlu0 %796
    %798 = vrot.lane.b32.xlu0 %v775, 24
    %v799 = vpop.permute.xlu0 %798
    %v802 = vsel %vm270, %v391, %v781
    %v803 = vsel %vm270, %v394, %v783
    %vm804 = vcmask 130048
    %v805 = vsel %vm804, %v802, %v789
    %v806 = vsel %vm804, %v803, %v791
    %vm807 = vcmask 195584
    %v808 = vsel %vm807, %v805, %v797
    %v809 = vsel %vm807, %v806, %v799
    %v810 = vld [vmem:[%s8] sm:$0xff]
    %v811 = vld [vmem:[%s8 + $0x8] sm:$0xff]
    %v812 = vld [vmem:[%s8 + $0x10] sm:$0xff]
    %v813 = vld [vmem:[%s8 + $0x18] sm:$0xff]
    %v814 = vpack.c.bf16 %v809, %v808
    %v815 = vpack.c.bf16 %v811, %v810
    %v816 = vpack.c.bf16 %v813, %v812
    %v818 = vsel %vm163, %v814, 0
    %820 = vmatprep.subr.bf16.mxu0 0
    %821 = vmatpush1.bf16.msra.mxu0 %v815
    %822 = vmatprep.subr.bf16.mxu0 0
    %823 = vmatpush1.bf16.msra.mxu0 %v816
    %824 = vmatprep.subr.bf16.mxu0 0
    %825 = vmatpush1.bf16.msra.mxu0 0
    %826 = vmatprep.subr.bf16.mxu0 0
    %827 = vmatpush1.bf16.msra.mxu0 0
    %828 = vmatprep.subr.bf16.mxu0 0
    %829 = vmatpush1.bf16.msra.mxu0 0
    %830 = vmatprep.subr.bf16.mxu0 0
    %831 = vmatpush1.bf16.msra.mxu0 0
    %832 = vmatprep.subr.bf16.mxu0 0
    %833 = vmatpush1.bf16.msra.mxu0 0
    %834 = vmatprep.subr.bf16.mxu0 0
    %835 = vmatpush1.bf16.msra.mxu0 0
    %836 = vmatprep.subr.bf16.mxu0 0
    %837 = vmatpush1.bf16.msra.mxu0 0
    %838 = vmatprep.subr.bf16.mxu0 0
    %839 = vmatpush1.bf16.msra.mxu0 0
    %840 = vmatprep.subr.bf16.mxu0 0
    %841 = vmatpush1.bf16.msra.mxu0 0
    %842 = vmatprep.subr.bf16.mxu0 0
    %843 = vmatpush1.bf16.msra.mxu0 0
    %844 = vmatprep.subr.bf16.mxu0 0
    %845 = vmatpush1.bf16.msra.mxu0 0
    %846 = vmatprep.subr.bf16.mxu0 0
    %847 = vmatpush1.bf16.msra.mxu0 0
    %848 = vmatprep.subr.bf16.mxu0 0
    %849 = vmatpush1.bf16.msra.mxu0 0
    %850 = vmatprep.subr.bf16.mxu0 0
    %851 = vmatpush1.bf16.msra.mxu0 0
    %852 = vmatprep.mubr.bf16.mxu0 0
    %853 = vmatmul.mubr.bf16.gmra.mrb[0].mxu0 %v818
    %v854 = vpop.f32.mrb[0].mxu0
    %v855 = vadd.f32 0.0, %v854
    %v856 = vpop.f32.mrb[0].mxu0
    %v857 = vpop.f32.mrb[0].mxu0
    %v858 = vadd.f32 0.0, %v857
    %v859 = vpop.f32.mrb[0].mxu0
    %860 = vdwg.mxu0
    %v861 = vadd.f32 %v155, %v855
    %v862 = vadd.f32 %v158, %v858
    %v863 = vld [vmem:[%s9] sm:$0x1]
    %v865 = vlaneseq
    %v866 = vshrl.u32 %v865, 7
    %v867 = vsub.s32 0, %v866
    %v868 = vrot.slane %v863, %v867
    %v870 = vadd.f32 %v861, %v868
    %v871 = vadd.f32 %v862, %v868
    %v872 = vld [vmem:[%s10] sm:$0x1]
    %v873 = vld [vmem:[%s11] sm:$0x1]
    %v874 = vsel %vm163, %v870, 0.0
    %875 = vadd.xlane.f32.xlu0 %v874
    %v876 = vpop.xlane.xlu0 %875
    %v877 = vsel %vm167, %v871, 0.0
    %878 = vadd.xlane.f32.xlu0 %v877
    %v879 = vpop.xlane.xlu0 %878
    %v880 = vmul.f32 %v876, %v171
    %v881 = vmul.f32 %v879, %v171
    %v882 = vsub.f32 %v870, %v880
    %v883 = vsub.f32 %v871, %v881
    %v884 = vmul.f32 %v882, %v882
    %v885 = vmul.f32 %v883, %v883
    %v886 = vsel %vm163, %v884, 0.0
    %887 = vadd.xlane.f32.xlu0 %v886
    %v888 = vpop.xlane.xlu0 %887
    %v889 = vsel %vm167, %v885, 0.0
    %890 = vadd.xlane.f32.xlu0 %v889
    %v891 = vpop.xlane.xlu0 %890
    %v892 = vmul.f32 %v888, %v171
    %v893 = vmul.f32 %v891, %v171
    %v894 = vadd.f32 %v892, 1e-12
    %v895 = vadd.f32 %v893, 1e-12
    %v896 = vrsqrt.pop %v894
    %v897 = vrsqrt.pop %v895
    %v898 = vmul.f32 %v882, %v896
    %v899 = vmul.f32 %v883, %v897
    %v901 = vlaneseq
    %v902 = vshrl.u32 %v901, 7
    %v903 = vsub.s32 0, %v902
    %v904 = vrot.slane %v872, %v903
    %v906 = vmul.f32 %v898, %v904
    %v907 = vmul.f32 %v899, %v904
    %v909 = vlaneseq
    %v910 = vshrl.u32 %v909, 7
    %v911 = vsub.s32 0, %v910
    %v912 = vrot.slane %v873, %v911
    %v914 = vadd.f32 %v906, %v912
    %v915 = vadd.f32 %v907, %v912
    %v916 = vld [vmem:[%s12] sm:$0xff]
    %v917 = vld [vmem:[%s12 + $0x8] sm:$0xff]
    %v918 = vld [vmem:[%s12 + $0x10] sm:$0xff]
    %v919 = vld [vmem:[%s12 + $0x18] sm:$0xff]
    %v920 = vpack.c.bf16 %v915, %v914
    %v921 = vpack.c.bf16 %v917, %v916
    %v922 = vpack.c.bf16 %v919, %v918
    %v923 = vld [vmem:[%s13] sm:$0x1]
    %v925 = vlaneseq
    %v926 = vshrl.u32 %v925, 7
    %v927 = vsub.s32 0, %v926
    %v928 = vrot.slane %v923, %v927
    %v931 = vsel %vm163, %v920, 0
    %933 = vmatprep.subr.bf16.mxu0 0
    %934 = vmatpush1.bf16.msra.mxu0 %v921
    %935 = vmatprep.subr.bf16.mxu0 0
    %936 = vmatpush1.bf16.msra.mxu0 %v922
    %937 = vmatprep.subr.bf16.mxu0 0
    %938 = vmatpush1.bf16.msra.mxu0 0
    %939 = vmatprep.subr.bf16.mxu0 0
    %940 = vmatpush1.bf16.msra.mxu0 0
    %941 = vmatprep.subr.bf16.mxu0 0
    %942 = vmatpush1.bf16.msra.mxu0 0
    %943 = vmatprep.subr.bf16.mxu0 0
    %944 = vmatpush1.bf16.msra.mxu0 0
    %945 = vmatprep.subr.bf16.mxu0 0
    %946 = vmatpush1.bf16.msra.mxu0 0
    %947 = vmatprep.subr.bf16.mxu0 0
    %948 = vmatpush1.bf16.msra.mxu0 0
    %949 = vmatprep.subr.bf16.mxu0 0
    %950 = vmatpush1.bf16.msra.mxu0 0
    %951 = vmatprep.subr.bf16.mxu0 0
    %952 = vmatpush1.bf16.msra.mxu0 0
    %953 = vmatprep.subr.bf16.mxu0 0
    %954 = vmatpush1.bf16.msra.mxu0 0
    %955 = vmatprep.subr.bf16.mxu0 0
    %956 = vmatpush1.bf16.msra.mxu0 0
    %957 = vmatprep.subr.bf16.mxu0 0
    %958 = vmatpush1.bf16.msra.mxu0 0
    %959 = vmatprep.subr.bf16.mxu0 0
    %960 = vmatpush1.bf16.msra.mxu0 0
    %961 = vmatprep.subr.bf16.mxu0 0
    %962 = vmatpush1.bf16.msra.mxu0 0
    %963 = vmatprep.subr.bf16.mxu0 0
    %964 = vmatpush1.bf16.msra.mxu0 0
    %965 = vmatprep.mubr.bf16.mxu0 0
    %966 = vmatmul.mubr.bf16.gmra.mrb[0].mxu0 %v931
    %v967 = vpop.f32.mrb[0].mxu0
    %v968 = vadd.f32 %v928, %v967
    %v969 = vpop.f32.mrb[0].mxu0
    %v970 = vpop.f32.mrb[0].mxu0
    %v971 = vadd.f32 %v928, %v970
    %v972 = vpop.f32.mrb[0].mxu0
    %973 = vdwg.mxu0
    %v974 = vmul.f32 %v968, 0.5
    %v975 = vmul.f32 %v971, 0.5
    %v976 = vmul.f32 %v968, 0.044715
    %v977 = vmul.f32 %v971, 0.044715
    %v978 = vmul.f32 %v976, %v968
    %v979 = vmul.f32 %v977, %v971
    %v980 = vmul.f32 %v978, %v968
    %v981 = vmul.f32 %v979, %v971
    %v982 = vadd.f32 %v968, %v980
    %v983 = vadd.f32 %v971, %v981
    %v984 = vmul.f32 %v982, 0.7978846
    %v985 = vmul.f32 %v983, 0.7978846
    %v986 = vtanh.pop %v984
    %v987 = vtanh.pop %v985
    %v988 = vadd.f32 %v986, 1.0
    %v989 = vadd.f32 %v987, 1.0
    %v990 = vmul.f32 %v974, %v988
    %v991 = vmul.f32 %v975, %v989
    %v992 = vld [vmem:[%s14] sm:$0xff]
    %v993 = vld [vmem:[%s14 + $0x8] sm:$0xff]
    %v994 = vld [vmem:[%s14 + $0x10] sm:$0xff]
    %v995 = vld [vmem:[%s14 + $0x18] sm:$0xff]
    %v996 = vld [vmem:[%s14 + $0x20] sm:$0xff]
    %v997 = vld [vmem:[%s14 + $0x28] sm:$0xff]
    %v998 = vld [vmem:[%s14 + $0x30] sm:$0xff]
    %v999 = vld [vmem:[%s14 + $0x38] sm:$0xff]
    %v1000 = vpack.c.bf16 %v991, %v990
    %v1001 = vpack.c.bf16 %v993, %v992
    %v1002 = vpack.c.bf16 %v995, %v994
    %v1003 = vpack.c.bf16 %v997, %v996
    %v1004 = vpack.c.bf16 %v999, %v998
    %v1006 = vsel %vm116, %v1000, 0
    %1008 = vmatprep.subr.bf16.mxu0 0
    %1009 = vmatpush1.bf16.msra.mxu0 %v1001
    %1010 = vmatprep.subr.bf16.mxu0 0
    %1011 = vmatpush1.bf16.msra.mxu0 %v1002
    %1012 = vmatprep.subr.bf16.mxu0 0
    %1013 = vmatpush1.bf16.msra.mxu0 %v1003
    %1014 = vmatprep.subr.bf16.mxu0 0
    %1015 = vmatpush1.bf16.msra.mxu0 %v1004
    %1016 = vmatprep.subr.bf16.mxu0 0
    %1017 = vmatpush1.bf16.msra.mxu0 0
    %1018 = vmatprep.subr.bf16.mxu0 0
    %1019 = vmatpush1.bf16.msra.mxu0 0
    %1020 = vmatprep.subr.bf16.mxu0 0
    %1021 = vmatpush1.bf16.msra.mxu0 0
    %1022 = vmatprep.subr.bf16.mxu0 0
    %1023 = vmatpush1.bf16.msra.mxu0 0
    %1024 = vmatprep.subr.bf16.mxu0 0
    %1025 = vmatpush1.bf16.msra.mxu0 0
    %1026 = vmatprep.subr.bf16.mxu0 0
    %1027 = vmatpush1.bf16.msra.mxu0 0
    %1028 = vmatprep.subr.bf16.mxu0 0
    %1029 = vmatpush1.bf16.msra.mxu0 0
    %1030 = vmatprep.subr.bf16.mxu0 0
    %1031 = vmatpush1.bf16.msra.mxu0 0
    %1032 = vmatprep.subr.bf16.mxu0 0
    %1033 = vmatpush1.bf16.msra.mxu0 0
    %1034 = vmatprep.subr.bf16.mxu0 0
    %1035 = vmatpush1.bf16.msra.mxu0 0
    %1036 = vmatprep.subr.bf16.mxu0 0
    %1037 = vmatpush1.bf16.msra.mxu0 0
    %1038 = vmatprep.subr.bf16.mxu0 0
    %1039 = vmatpush1.bf16.msra.mxu0 0
    %1040 = vmatprep.mubr.bf16.mxu0 0
    %1041 = vmatmul.mubr.bf16.gmra.mrb[0].mxu0 %v1006
    %v1042 = vpop.f32.mrb[0].mxu0
    %v1043 = vadd.f32 0.0, %v1042
    %v1044 = vpop.f32.mrb[0].mxu0
    %v1045 = vpop.f32.mrb[0].mxu0
    %v1046 = vadd.f32 0.0, %v1045
    %v1047 = vpop.f32.mrb[0].mxu0
    %1048 = vdwg.mxu0
    %v1049 = vadd.f32 %v870, %v1043
    %v1050 = vadd.f32 %v871, %v1046
    %v1051 = vld [vmem:[%s15] sm:$0x1]
    %v1053 = vlaneseq
    %v1054 = vshrl.u32 %v1053, 7
    %v1055 = vsub.s32 0, %v1054
    %v1056 = vrot.slane %v1051, %v1055
    %v1058 = vadd.f32 %v1049, %v1056
    %v1059 = vadd.f32 %v1050, %v1056
    %s1060 = scalar_lea.vmem %s4, 1
    %v1061 = vld [vmem:[%s1060] sm:$0x1]
    %s1062 = scalar_lea.vmem %s5, 1
    %v1063 = vld [vmem:[%s1062] sm:$0x1]
    %v1064 = vsel %vm163, %v1058, 0.0
    %1065 = vadd.xlane.f32.xlu0 %v1064
    %v1066 = vpop.xlane.xlu0 %1065
    %v1067 = vsel %vm167, %v1059, 0.0
    %1068 = vadd.xlane.f32.xlu0 %v1067
    %v1069 = vpop.xlane.xlu0 %1068
    %v1070 = vmul.f32 %v1066, %v171
    %v1071 = vmul.f32 %v1069, %v171
    %v1072 = vsub.f32 %v1058, %v1070
    %v1073 = vsub.f32 %v1059, %v1071
    %v1074 = vmul.f32 %v1072, %v1072
    %v1075 = vmul.f32 %v1073, %v1073
    %v1076 = vsel %vm163, %v1074, 0.0
    %1077 = vadd.xlane.f32.xlu0 %v1076
    %v1078 = vpop.xlane.xlu0 %1077
    %v1079 = vsel %vm167, %v1075, 0.0
    %1080 = vadd.xlane.f32.xlu0 %v1079
    %v1081 = vpop.xlane.xlu0 %1080
    %v1082 = vmul.f32 %v1078, %v171
    %v1083 = vmul.f32 %v1081, %v171
    %v1084 = vadd.f32 %v1082, 1e-12
    %v1085 = vadd.f32 %v1083, 1e-12
    %v1086 = vrsqrt.pop %v1084
    %v1087 = vrsqrt.pop %v1085
    %v1088 = vmul.f32 %v1072, %v1086
    %v1089 = vmul.f32 %v1073, %v1087
    %v1091 = vlaneseq
    %v1092 = vshrl.u32 %v1091, 7
    %v1093 = vsub.s32 0, %v1092
    %v1094 = vrot.slane %v1061, %v1093
    %v1096 = vmul.f32 %v1088, %v1094
    %v1097 = vmul.f32 %v1089, %v1094
    %v1099 = vlaneseq
    %v1100 = vshrl.u32 %v1099, 7
    %v1101 = vsub.s32 0, %v1100
    %v1102 = vrot.slane %v1063, %v1101
    %v1104 = vadd.f32 %v1096, %v1102
    %v1105 = vadd.f32 %v1097, %v1102
    %s1106 = scalar_lea.vmem %s6, 32
    %v1107 = vld [vmem:[%s1106] sm:$0xff]
    %v1108 = vld [vmem:[%s1106 + $0x8] sm:$0xff]
    %v1109 = vld [vmem:[%s1106 + $0x10] sm:$0xff]
    %v1110 = vld [vmem:[%s1106 + $0x18] sm:$0xff]
    %v1111 = vpack.c.bf16 %v1105, %v1104
    %v1112 = vpack.c.bf16 %v1108, %v1107
    %v1113 = vpack.c.bf16 %v1110, %v1109
    %s1114 = scalar_lea.vmem %s7, 1
    %v1115 = vld [vmem:[%s1114] sm:$0x1]
    %v1117 = vlaneseq
    %v1118 = vshrl.u32 %v1117, 7
    %v1119 = vsub.s32 0, %v1118
    %v1120 = vrot.slane %v1115, %v1119
    %v1123 = vsel %vm163, %v1111, 0
    %1125 = vmatprep.subr.bf16.mxu0 0
    %1126 = vmatpush1.bf16.msra.mxu0 %v1112
    %1127 = vmatprep.subr.bf16.mxu0 0
    %1128 = vmatpush1.bf16.msra.mxu0 %v1113
    %1129 = vmatprep.subr.bf16.mxu0 0
    %1130 = vmatpush1.bf16.msra.mxu0 0
    %1131 = vmatprep.subr.bf16.mxu0 0
    %1132 = vmatpush1.bf16.msra.mxu0 0
    %1133 = vmatprep.subr.bf16.mxu0 0
    %1134 = vmatpush1.bf16.msra.mxu0 0
    %1135 = vmatprep.subr.bf16.mxu0 0
    %1136 = vmatpush1.bf16.msra.mxu0 0
    %1137 = vmatprep.subr.bf16.mxu0 0
    %1138 = vmatpush1.bf16.msra.mxu0 0
    %1139 = vmatprep.subr.bf16.mxu0 0
    %1140 = vmatpush1.bf16.msra.mxu0 0
    %1141 = vmatprep.subr.bf16.mxu0 0
    %1142 = vmatpush1.bf16.msra.mxu0 0
    %1143 = vmatprep.subr.bf16.mxu0 0
    %1144 = vmatpush1.bf16.msra.mxu0 0
    %1145 = vmatprep.subr.bf16.mxu0 0
    %1146 = vmatpush1.bf16.msra.mxu0 0
    %1147 = vmatprep.subr.bf16.mxu0 0
    %1148 = vmatpush1.bf16.msra.mxu0 0
    %1149 = vmatprep.subr.bf16.mxu0 0
    %1150 = vmatpush1.bf16.msra.mxu0 0
    %1151 = vmatprep.subr.bf16.mxu0 0
    %1152 = vmatpush1.bf16.msra.mxu0 0
    %1153 = vmatprep.subr.bf16.mxu0 0
    %1154 = vmatpush1.bf16.msra.mxu0 0
    %1155 = vmatprep.subr.bf16.mxu0 0
    %1156 = vmatpush1.bf16.msra.mxu0 0
    %1157 = vmatprep.mubr.bf16.mxu0 0
    %1158 = vmatmul.mubr.bf16.gmra.mrb[0].mxu0 %v1123
    %v1159 = vpop.f32.mrb[0].mxu0
    %v1160 = vadd.f32 %v1120, %v1159
    %v1161 = vpop.f32.mrb[0].mxu0
    %v1162 = vpop.f32.mrb[0].mxu0
    %v1163 = vadd.f32 %v1120, %v1162
    %v1164 = vpop.f32.mrb[0].mxu0
    %1165 = vdwg.mxu0
    %v1166 = vpack.c.bf16 %v1163, %v1160
    %1168 = vrot.lane.b32.xlu0 %v1166, 96
    %v1169 = vpop.permute.xlu0 %1168
    %v1171 = vsel %vm270, %v1166, 0
    %v1174 = vsel %vm270, %v1169, 0
    %1176 = vmatprep.subr.bf16.mxu0 0
    %1177 = vmatpush1.bf16.xpose.msra.mxu0 %v1174
    %1178 = vmatprep.subr.bf16.mxu0 0
    %1179 = vmatpush1.bf16.xpose.msra.mxu0 0
    %1180 = vmatprep.subr.bf16.mxu0 0
    %1181 = vmatpush1.bf16.xpose.msra.mxu0 0
    %1182 = vmatprep.subr.bf16.mxu0 0
    %1183 = vmatpush1.bf16.xpose.msra.mxu0 0
    %1184 = vmatprep.subr.bf16.mxu0 0
    %1185 = vmatpush1.bf16.xpose.msra.mxu0 0
    %1186 = vmatprep.subr.bf16.mxu0 0
    %1187 = vmatpush1.bf16.xpose.msra.mxu0 0
    %1188 = vmatprep.subr.bf16.mxu0 0
    %1189 = vmatpush1.bf16.xpose.msra.mxu0 0
    %1190 = vmatprep.subr.bf16.mxu0 0
    %1191 = vmatpush1.bf16.xpose.msra.mxu0 0
    %1192 = vmatprep.subr.bf16.mxu0 0
    %1193 = vmatpush1.bf16.xpose.msra.mxu0 0
    %1194 = vmatprep.subr.bf16.mxu0 0
    %1195 = vmatpush1.bf16.xpose.msra.mxu0 0
    %1196 = vmatprep.subr.bf16.mxu0 0
    %1197 = vmatpush1.bf16.xpose.msra.mxu0 0
    %1198 = vmatprep.subr.bf16.mxu0 0
    %1199 = vmatpush1.bf16.xpose.msra.mxu0 0
    %1200 = vmatprep.subr.bf16.mxu0 0
    %1201 = vmatpush1.bf16.xpose.msra.mxu0 0
    %1202 = vmatprep.subr.bf16.mxu0 0
    %1203 = vmatpush1.bf16.xpose.msra.mxu0 0
    %1204 = vmatprep.subr.bf16.mxu0 0
    %1205 = vmatpush1.bf16.xpose.msra.mxu0 0
    %1206 = vmatprep.subr.bf16.mxu0 0
    %1207 = vmatpush1.bf16.xpose.msra.mxu0 0
    %1208 = vmatprep.mubr.bf16.mxu0 0
    %1209 = vmatmul.mubr.bf16.gmra.mrb[0].mxu0 %v1171
    %v1210 = vpop.f32.mrb[0].mxu0
    %v1211 = vadd.f32 0.0, %v1210
    %v1212 = vpop.f32.mrb[0].mxu0
    %v1213 = vpop.f32.mrb[0].mxu0
    %v1214 = vadd.f32 0.0, %v1213
    %v1215 = vpop.f32.mrb[0].mxu0
    %1216 = vdwg.mxu0
    %v1217 = vmul.f32 %v1211, 0.35355338
    %v1218 = vmul.f32 %v1214, 0.35355338
    %v1219 = vadd.f32 %v1217, %v70
    %v1220 = vadd.f32 %v1218, %v71
    %v1221 = vsel %vm322, %v1219, -inf
    %1222 = vmax.xlane.f32.xlu0 %v1221
    %v1223 = vpop.xlane.xlu0 %1222
    %v1224 = vsel %vm326, %v1220, -inf
    %1225 = vmax.xlane.f32.xlu0 %v1224
    %v1226 = vpop.xlane.xlu0 %1225
    %v1227 = vsub.f32 %v1219, %v1223
    %v1228 = vsub.f32 %v1220, %v1226
    %v1229 = vmul.f32 %v1227, 1.442695
    %v1230 = vpow.pop %v1229
    %v1231 = vmul.f32 %v1228, 1.442695
    %v1232 = vpow.pop %v1231
    %v1233 = vsel %vm322, %v1230, 0.0
    %1234 = vadd.xlane.f32.xlu0 %v1233
    %v1235 = vpop.xlane.xlu0 %1234
    %v1236 = vsel %vm326, %v1232, 0.0
    %1237 = vadd.xlane.f32.xlu0 %v1236
    %v1238 = vpop.xlane.xlu0 %1237
    %v1239 = vrcp.pop %v1235
    %v1240 = vrcp.pop %v1238
    %v1241 = vmul.f32 %v1230, %v1239
    %v1242 = vmul.f32 %v1232, %v1240
    %v1243 = vpack.c.bf16 %v1242, %v1241
    %1244 = vrot.lane.b32.xlu0 %v1166, 64
    %v1245 = vpop.permute.xlu0 %1244
    %v1247 = vsel %vm322, %v1243, 0
    %v1250 = vsel %vm352, %v1245, 0
    %1252 = vmatprep.subr.bf16.mxu0 0
    %1253 = vmatpush1.bf16.msra.mxu0 %v1250
    %1254 = vmatprep.subr.bf16.mxu0 0
    %1255 = vmatpush1.bf16.msra.mxu0 0
    %1256 = vmatprep.subr.bf16.mxu0 0
    %1257 = vmatpush1.bf16.msra.mxu0 0
    %1258 = vmatprep.subr.bf16.mxu0 0
    %1259 = vmatpush1.bf16.msra.mxu0 0
    %1260 = vmatprep.subr.bf16.mxu0 0
    %1261 = vmatpush1.bf16.msra.mxu0 0
    %1262 = vmatprep.subr.bf16.mxu0 0
    %1263 = vmatpush1.bf16.msra.mxu0 0
    %1264 = vmatprep.subr.bf16.mxu0 0
    %1265 = vmatpush1.bf16.msra.mxu0 0
    %1266 = vmatprep.subr.bf16.mxu0 0
    %1267 = vmatpush1.bf16.msra.mxu0 0
    %1268 = vmatprep.subr.bf16.mxu0 0
    %1269 = vmatpush1.bf16.msra.mxu0 0
    %1270 = vmatprep.subr.bf16.mxu0 0
    %1271 = vmatpush1.bf16.msra.mxu0 0
    %1272 = vmatprep.subr.bf16.mxu0 0
    %1273 = vmatpush1.bf16.msra.mxu0 0
    %1274 = vmatprep.subr.bf16.mxu0 0
    %1275 = vmatpush1.bf16.msra.mxu0 0
    %1276 = vmatprep.subr.bf16.mxu0 0
    %1277 = vmatpush1.bf16.msra.mxu0 0
    %1278 = vmatprep.subr.bf16.mxu0 0
    %1279 = vmatpush1.bf16.msra.mxu0 0
    %1280 = vmatprep.subr.bf16.mxu0 0
    %1281 = vmatpush1.bf16.msra.mxu0 0
    %1282 = vmatprep.subr.bf16.mxu0 0
    %1283 = vmatpush1.bf16.msra.mxu0 0
    %1284 = vmatprep.mubr.bf16.mxu0 0
    %1285 = vmatmul.mubr.bf16.gmra.mrb[0].mxu0 %v1247
    %v1286 = vpop.f32.mrb[0].mxu0
    %v1287 = vadd.f32 0.0, %v1286
    %v1288 = vpop.f32.mrb[0].mxu0
    %v1289 = vpop.f32.mrb[0].mxu0
    %v1290 = vadd.f32 0.0, %v1289
    %v1291 = vpop.f32.mrb[0].mxu0
    %1292 = vdwg.mxu0
    %1293 = vrot.lane.b32.xlu0 %v1166, 120
    %v1294 = vpop.permute.xlu0 %1293
    %1295 = vrot.lane.b32.xlu0 %v1166, 88
    %v1296 = vpop.permute.xlu0 %1295
    %v1298 = vsel %vm270, %v1294, 0
    %v1301 = vsel %vm270, %v1296, 0
    %1303 = vmatprep.subr.bf16.mxu0 0
    %1304 = vmatpush1.bf16.xpose.msra.mxu0 %v1301
    %1305 = vmatprep.subr.bf16.mxu0 0
    %1306 = vmatpush1.bf16.xpose.msra.mxu0 0
    %1307 = vmatprep.subr.bf16.mxu0 0
    %1308 = vmatpush1.bf16.xpose.msra.mxu0 0
    %1309 = vmatprep.subr.bf16.mxu0 0
    %1310 = vmatpush1.bf16.xpose.msra.mxu0 0
    %1311 = vmatprep.subr.bf16.mxu0 0
    %1312 = vmatpush1.bf16.xpose.msra.mxu0 0
    %1313 = vmatprep.subr.bf16.mxu0 0
    %1314 = vmatpush1.bf16.xpose.msra.mxu0 0
    %1315 = vmatprep.subr.bf16.mxu0 0
    %1316 = vmatpush1.bf16.xpose.msra.mxu0 0
    %1317 = vmatprep.subr.bf16.mxu0 0
    %1318 = vmatpush1.bf16.xpose.msra.mxu0 0
    %1319 = vmatprep.subr.bf16.mxu0 0
    %1320 = vmatpush1.bf16.xpose.msra.mxu0 0
    %1321 = vmatprep.subr.bf16.mxu0 0
    %1322 = vmatpush1.bf16.xpose.msra.mxu0 0
    %1323 = vmatprep.subr.bf16.mxu0 0
    %1324 = vmatpush1.bf16.xpose.msra.mxu0 0
    %1325 = vmatprep.subr.bf16.mxu0 0
    %1326 = vmatpush1.bf16.xpose.msra.mxu0 0
    %1327 = vmatprep.subr.bf16.mxu0 0
    %1328 = vmatpush1.bf16.xpose.msra.mxu0 0
    %1329 = vmatprep.subr.bf16.mxu0 0
    %1330 = vmatpush1.bf16.xpose.msra.mxu0 0
    %1331 = vmatprep.subr.bf16.mxu0 0
    %1332 = vmatpush1.bf16.xpose.msra.mxu0 0
    %1333 = vmatprep.subr.bf16.mxu0 0
    %1334 = vmatpush1.bf16.xpose.msra.mxu0 0
    %1335 = vmatprep.mubr.bf16.mxu0 0
    %1336 = vmatmul.mubr.bf16.gmra.mrb[0].mxu0 %v1298
    %v1337 = vpop.f32.mrb[0].mxu0
    %v1338 = vadd.f32 0.0, %v1337
    %v1339 = vpop.f32.mrb[0].mxu0
    %v1340 = vpop.f32.mrb[0].mxu0
    %v1341 = vadd.f32 0.0, %v1340
    %v1342 = vpop.f32.mrb[0].mxu0
    %1343 = vdwg.mxu0
    %v1344 = vmul.f32 %v1338, 0.35355338
    %v1345 = vmul.f32 %v1341, 0.35355338
    %v1346 = vadd.f32 %v1344, %v70
    %v1347 = vadd.f32 %v1345, %v71
    %v1348 = vsel %vm322, %v1346, -inf
    %1349 = vmax.xlane.f32.xlu0 %v1348
    %v1350 = vpop.xlane.xlu0 %1349
    %v1351 = vsel %vm326, %v1347, -inf
    %1352 = vmax.xlane.f32.xlu0 %v1351
    %v1353 = vpop.xlane.xlu0 %1352
    %v1354 = vsub.f32 %v1346, %v1350
    %v1355 = vsub.f32 %v1347, %v1353
    %v1356 = vmul.f32 %v1354, 1.442695
    %v1357 = vpow.pop %v1356
    %v1358 = vmul.f32 %v1355, 1.442695
    %v1359 = vpow.pop %v1358
    %v1360 = vsel %vm322, %v1357, 0.0
    %1361 = vadd.xlane.f32.xlu0 %v1360
    %v1362 = vpop.xlane.xlu0 %1361
    %v1363 = vsel %vm326, %v1359, 0.0
    %1364 = vadd.xlane.f32.xlu0 %v1363
    %v1365 = vpop.xlane.xlu0 %1364
    %v1366 = vrcp.pop %v1362
    %v1367 = vrcp.pop %v1365
    %v1368 = vmul.f32 %v1357, %v1366
    %v1369 = vmul.f32 %v1359, %v1367
    %v1370 = vpack.c.bf16 %v1369, %v1368
    %1371 = vrot.lane.b32.xlu0 %v1166, 56
    %v1372 = vpop.permute.xlu0 %1371
    %v1374 = vsel %vm322, %v1370, 0
    %v1377 = vsel %vm352, %v1372, 0
    %1379 = vmatprep.subr.bf16.mxu0 0
    %1380 = vmatpush1.bf16.msra.mxu0 %v1377
    %1381 = vmatprep.subr.bf16.mxu0 0
    %1382 = vmatpush1.bf16.msra.mxu0 0
    %1383 = vmatprep.subr.bf16.mxu0 0
    %1384 = vmatpush1.bf16.msra.mxu0 0
    %1385 = vmatprep.subr.bf16.mxu0 0
    %1386 = vmatpush1.bf16.msra.mxu0 0
    %1387 = vmatprep.subr.bf16.mxu0 0
    %1388 = vmatpush1.bf16.msra.mxu0 0
    %1389 = vmatprep.subr.bf16.mxu0 0
    %1390 = vmatpush1.bf16.msra.mxu0 0
    %1391 = vmatprep.subr.bf16.mxu0 0
    %1392 = vmatpush1.bf16.msra.mxu0 0
    %1393 = vmatprep.subr.bf16.mxu0 0
    %1394 = vmatpush1.bf16.msra.mxu0 0
    %1395 = vmatprep.subr.bf16.mxu0 0
    %1396 = vmatpush1.bf16.msra.mxu0 0
    %1397 = vmatprep.subr.bf16.mxu0 0
    %1398 = vmatpush1.bf16.msra.mxu0 0
    %1399 = vmatprep.subr.bf16.mxu0 0
    %1400 = vmatpush1.bf16.msra.mxu0 0
    %1401 = vmatprep.subr.bf16.mxu0 0
    %1402 = vmatpush1.bf16.msra.mxu0 0
    %1403 = vmatprep.subr.bf16.mxu0 0
    %1404 = vmatpush1.bf16.msra.mxu0 0
    %1405 = vmatprep.subr.bf16.mxu0 0
    %1406 = vmatpush1.bf16.msra.mxu0 0
    %1407 = vmatprep.subr.bf16.mxu0 0
    %1408 = vmatpush1.bf16.msra.mxu0 0
    %1409 = vmatprep.subr.bf16.mxu0 0
    %1410 = vmatpush1.bf16.msra.mxu0 0
    %1411 = vmatprep.mubr.bf16.mxu0 0
    %1412 = vmatmul.mubr.bf16.gmra.mrb[0].mxu0 %v1374
    %v1413 = vpop.f32.mrb[0].mxu0
    %v1414 = vadd.f32 0.0, %v1413
    %v1415 = vpop.f32.mrb[0].mxu0
    %v1416 = vpop.f32.mrb[0].mxu0
    %v1417 = vadd.f32 0.0, %v1416
    %v1418 = vpop.f32.mrb[0].mxu0
    %1419 = vdwg.mxu0
    %1420 = vrot.lane.b32.xlu0 %v1166, 112
    %v1421 = vpop.permute.xlu0 %1420
    %1422 = vrot.lane.b32.xlu0 %v1166, 80
    %v1423 = vpop.permute.xlu0 %1422
    %v1425 = vsel %vm270, %v1421, 0
    %v1428 = vsel %vm270, %v1423, 0
    %1430 = vmatprep.subr.bf16.mxu0 0
    %1431 = vmatpush1.bf16.xpose.msra.mxu0 %v1428
    %1432 = vmatprep.subr.bf16.mxu0 0
    %1433 = vmatpush1.bf16.xpose.msra.mxu0 0
    %1434 = vmatprep.subr.bf16.mxu0 0
    %1435 = vmatpush1.bf16.xpose.msra.mxu0 0
    %1436 = vmatprep.subr.bf16.mxu0 0
    %1437 = vmatpush1.bf16.xpose.msra.mxu0 0
    %1438 = vmatprep.subr.bf16.mxu0 0
    %1439 = vmatpush1.bf16.xpose.msra.mxu0 0
    %1440 = vmatprep.subr.bf16.mxu0 0
    %1441 = vmatpush1.bf16.xpose.msra.mxu0 0
    %1442 = vmatprep.subr.bf16.mxu0 0
    %1443 = vmatpush1.bf16.xpose.msra.mxu0 0
    %1444 = vmatprep.subr.bf16.mxu0 0
    %1445 = vmatpush1.bf16.xpose.msra.mxu0 0
    %1446 = vmatprep.subr.bf16.mxu0 0
    %1447 = vmatpush1.bf16.xpose.msra.mxu0 0
    %1448 = vmatprep.subr.bf16.mxu0 0
    %1449 = vmatpush1.bf16.xpose.msra.mxu0 0
    %1450 = vmatprep.subr.bf16.mxu0 0
    %1451 = vmatpush1.bf16.xpose.msra.mxu0 0
    %1452 = vmatprep.subr.bf16.mxu0 0
    %1453 = vmatpush1.bf16.xpose.msra.mxu0 0
    %1454 = vmatprep.subr.bf16.mxu0 0
    %1455 = vmatpush1.bf16.xpose.msra.mxu0 0
    %1456 = vmatprep.subr.bf16.mxu0 0
    %1457 = vmatpush1.bf16.xpose.msra.mxu0 0
    %1458 = vmatprep.subr.bf16.mxu0 0
    %1459 = vmatpush1.bf16.xpose.msra.mxu0 0
    %1460 = vmatprep.subr.bf16.mxu0 0
    %1461 = vmatpush1.bf16.xpose.msra.mxu0 0
    %1462 = vmatprep.mubr.bf16.mxu0 0
    %1463 = vmatmul.mubr.bf16.gmra.mrb[0].mxu0 %v1425
    %v1464 = vpop.f32.mrb[0].mxu0
    %v1465 = vadd.f32 0.0, %v1464
    %v1466 = vpop.f32.mrb[0].mxu0
    %v1467 = vpop.f32.mrb[0].mxu0
    %v1468 = vadd.f32 0.0, %v1467
    %v1469 = vpop.f32.mrb[0].mxu0
    %1470 = vdwg.mxu0
    %v1471 = vmul.f32 %v1465, 0.35355338
    %v1472 = vmul.f32 %v1468, 0.35355338
    %v1473 = vadd.f32 %v1471, %v70
    %v1474 = vadd.f32 %v1472, %v71
    %v1475 = vsel %vm322, %v1473, -inf
    %1476 = vmax.xlane.f32.xlu0 %v1475
    %v1477 = vpop.xlane.xlu0 %1476
    %v1478 = vsel %vm326, %v1474, -inf
    %1479 = vmax.xlane.f32.xlu0 %v1478
    %v1480 = vpop.xlane.xlu0 %1479
    %v1481 = vsub.f32 %v1473, %v1477
    %v1482 = vsub.f32 %v1474, %v1480
    %v1483 = vmul.f32 %v1481, 1.442695
    %v1484 = vpow.pop %v1483
    %v1485 = vmul.f32 %v1482, 1.442695
    %v1486 = vpow.pop %v1485
    %v1487 = vsel %vm322, %v1484, 0.0
    %1488 = vadd.xlane.f32.xlu0 %v1487
    %v1489 = vpop.xlane.xlu0 %1488
    %v1490 = vsel %vm326, %v1486, 0.0
    %1491 = vadd.xlane.f32.xlu0 %v1490
    %v1492 = vpop.xlane.xlu0 %1491
    %v1493 = vrcp.pop %v1489
    %v1494 = vrcp.pop %v1492
    %v1495 = vmul.f32 %v1484, %v1493
    %v1496 = vmul.f32 %v1486, %v1494
    %v1497 = vpack.c.bf16 %v1496, %v1495
    %1498 = vrot.lane.b32.xlu0 %v1166, 48
    %v1499 = vpop.permute.xlu0 %1498
    %v1501 = vsel %vm322, %v1497, 0
    %v1504 = vsel %vm352, %v1499, 0
    %1506 = vmatprep.subr.bf16.mxu0 0
    %1507 = vmatpush1.bf16.msra.mxu0 %v1504
    %1508 = vmatprep.subr.bf16.mxu0 0
    %1509 = vmatpush1.bf16.msra.mxu0 0
    %1510 = vmatprep.subr.bf16.mxu0 0
    %1511 = vmatpush1.bf16.msra.mxu0 0
    %1512 = vmatprep.subr.bf16.mxu0 0
    %1513 = vmatpush1.bf16.msra.mxu0 0
    %1514 = vmatprep.subr.bf16.mxu0 0
    %1515 = vmatpush1.bf16.msra.mxu0 0
    %1516 = vmatprep.subr.bf16.mxu0 0
    %1517 = vmatpush1.bf16.msra.mxu0 0
    %1518 = vmatprep.subr.bf16.mxu0 0
    %1519 = vmatpush1.bf16.msra.mxu0 0
    %1520 = vmatprep.subr.bf16.mxu0 0
    %1521 = vmatpush1.bf16.msra.mxu0 0
    %1522 = vmatprep.subr.bf16.mxu0 0
    %1523 = vmatpush1.bf16.msra.mxu0 0
    %1524 = vmatprep.subr.bf16.mxu0 0
    %1525 = vmatpush1.bf16.msra.mxu0 0
    %1526 = vmatprep.subr.bf16.mxu0 0
    %1527 = vmatpush1.bf16.msra.mxu0 0
    %1528 = vmatprep.subr.bf16.mxu0 0
    %1529 = vmatpush1.bf16.msra.mxu0 0
    %1530 = vmatprep.subr.bf16.mxu0 0
    %1531 = vmatpush1.bf16.msra.mxu0 0
    %1532 = vmatprep.subr.bf16.mxu0 0
    %1533 = vmatpush1.bf16.msra.mxu0 0
    %1534 = vmatprep.subr.bf16.mxu0 0
    %1535 = vmatpush1.bf16.msra.mxu0 0
    %1536 = vmatprep.subr.bf16.mxu0 0
    %1537 = vmatpush1.bf16.msra.mxu0 0
    %1538 = vmatprep.mubr.bf16.mxu0 0
    %1539 = vmatmul.mubr.bf16.gmra.mrb[0].mxu0 %v1501
    %v1540 = vpop.f32.mrb[0].mxu0
    %v1541 = vadd.f32 0.0, %v1540
    %v1542 = vpop.f32.mrb[0].mxu0
    %v1543 = vpop.f32.mrb[0].mxu0
    %v1544 = vadd.f32 0.0, %v1543
    %v1545 = vpop.f32.mrb[0].mxu0
    %1546 = vdwg.mxu0
    %1547 = vrot.lane.b32.xlu0 %v1166, 104
    %v1548 = vpop.permute.xlu0 %1547
    %1549 = vrot.lane.b32.xlu0 %v1166, 72
    %v1550 = vpop.permute.xlu0 %1549
    %v1552 = vsel %vm270, %v1548, 0
    %v1555 = vsel %vm270, %v1550, 0
    %1557 = vmatprep.subr.bf16.mxu0 0
    %1558 = vmatpush1.bf16.xpose.msra.mxu0 %v1555
    %1559 = vmatprep.subr.bf16.mxu0 0
    %1560 = vmatpush1.bf16.xpose.msra.mxu0 0
    %1561 = vmatprep.subr.bf16.mxu0 0
    %1562 = vmatpush1.bf16.xpose.msra.mxu0 0
    %1563 = vmatprep.subr.bf16.mxu0 0
    %1564 = vmatpush1.bf16.xpose.msra.mxu0 0
    %1565 = vmatprep.subr.bf16.mxu0 0
    %1566 = vmatpush1.bf16.xpose.msra.mxu0 0
    %1567 = vmatprep.subr.bf16.mxu0 0
    %1568 = vmatpush1.bf16.xpose.msra.mxu0 0
    %1569 = vmatprep.subr.bf16.mxu0 0
    %1570 = vmatpush1.bf16.xpose.msra.mxu0 0
    %1571 = vmatprep.subr.bf16.mxu0 0
    %1572 = vmatpush1.bf16.xpose.msra.mxu0 0
    %1573 = vmatprep.subr.bf16.mxu0 0
    %1574 = vmatpush1.bf16.xpose.msra.mxu0 0
    %1575 = vmatprep.subr.bf16.mxu0 0
    %1576 = vmatpush1.bf16.xpose.msra.mxu0 0
    %1577 = vmatprep.subr.bf16.mxu0 0
    %1578 = vmatpush1.bf16.xpose.msra.mxu0 0
    %1579 = vmatprep.subr.bf16.mxu0 0
    %1580 = vmatpush1.bf16.xpose.msra.mxu0 0
    %1581 = vmatprep.subr.bf16.mxu0 0
    %1582 = vmatpush1.bf16.xpose.msra.mxu0 0
    %1583 = vmatprep.subr.bf16.mxu0 0
    %1584 = vmatpush1.bf16.xpose.msra.mxu0 0
    %1585 = vmatprep.subr.bf16.mxu0 0
    %1586 = vmatpush1.bf16.xpose.msra.mxu0 0
    %1587 = vmatprep.subr.bf16.mxu0 0
    %1588 = vmatpush1.bf16.xpose.msra.mxu0 0
    %1589 = vmatprep.mubr.bf16.mxu0 0
    %1590 = vmatmul.mubr.bf16.gmra.mrb[0].mxu0 %v1552
    %v1591 = vpop.f32.mrb[0].mxu0
    %v1592 = vadd.f32 0.0, %v1591
    %v1593 = vpop.f32.mrb[0].mxu0
    %v1594 = vpop.f32.mrb[0].mxu0
    %v1595 = vadd.f32 0.0, %v1594
    %v1596 = vpop.f32.mrb[0].mxu0
    %1597 = vdwg.mxu0
    %v1598 = vmul.f32 %v1592, 0.35355338
    %v1599 = vmul.f32 %v1595, 0.35355338
    %v1600 = vadd.f32 %v1598, %v70
    %v1601 = vadd.f32 %v1599, %v71
    %v1602 = vsel %vm322, %v1600, -inf
    %1603 = vmax.xlane.f32.xlu0 %v1602
    %v1604 = vpop.xlane.xlu0 %1603
    %v1605 = vsel %vm326, %v1601, -inf
    %1606 = vmax.xlane.f32.xlu0 %v1605
    %v1607 = vpop.xlane.xlu0 %1606
    %v1608 = vsub.f32 %v1600, %v1604
    %v1609 = vsub.f32 %v1601, %v1607
    %v1610 = vmul.f32 %v1608, 1.442695
    %v1611 = vpow.pop %v1610
    %v1612 = vmul.f32 %v1609, 1.442695
    %v1613 = vpow.pop %v1612
    %v1614 = vsel %vm322, %v1611, 0.0
    %1615 = vadd.xlane.f32.xlu0 %v1614
    %v1616 = vpop.xlane.xlu0 %1615
    %v1617 = vsel %vm326, %v1613, 0.0
    %1618 = vadd.xlane.f32.xlu0 %v1617
    %v1619 = vpop.xlane.xlu0 %1618
    %v1620 = vrcp.pop %v1616
    %v1621 = vrcp.pop %v1619
    %v1622 = vmul.f32 %v1611, %v1620
    %v1623 = vmul.f32 %v1613, %v1621
    %v1624 = vpack.c.bf16 %v1623, %v1622
    %1625 = vrot.lane.b32.xlu0 %v1166, 40
    %v1626 = vpop.permute.xlu0 %1625
    %v1628 = vsel %vm322, %v1624, 0
    %v1631 = vsel %vm352, %v1626, 0
    %1633 = vmatprep.subr.bf16.mxu0 0
    %1634 = vmatpush1.bf16.msra.mxu0 %v1631
    %1635 = vmatprep.subr.bf16.mxu0 0
    %1636 = vmatpush1.bf16.msra.mxu0 0
    %1637 = vmatprep.subr.bf16.mxu0 0
    %1638 = vmatpush1.bf16.msra.mxu0 0
    %1639 = vmatprep.subr.bf16.mxu0 0
    %1640 = vmatpush1.bf16.msra.mxu0 0
    %1641 = vmatprep.subr.bf16.mxu0 0
    %1642 = vmatpush1.bf16.msra.mxu0 0
    %1643 = vmatprep.subr.bf16.mxu0 0
    %1644 = vmatpush1.bf16.msra.mxu0 0
    %1645 = vmatprep.subr.bf16.mxu0 0
    %1646 = vmatpush1.bf16.msra.mxu0 0
    %1647 = vmatprep.subr.bf16.mxu0 0
    %1648 = vmatpush1.bf16.msra.mxu0 0
    %1649 = vmatprep.subr.bf16.mxu0 0
    %1650 = vmatpush1.bf16.msra.mxu0 0
    %1651 = vmatprep.subr.bf16.mxu0 0
    %1652 = vmatpush1.bf16.msra.mxu0 0
    %1653 = vmatprep.subr.bf16.mxu0 0
    %1654 = vmatpush1.bf16.msra.mxu0 0
    %1655 = vmatprep.subr.bf16.mxu0 0
    %1656 = vmatpush1.bf16.msra.mxu0 0
    %1657 = vmatprep.subr.bf16.mxu0 0
    %1658 = vmatpush1.bf16.msra.mxu0 0
    %1659 = vmatprep.subr.bf16.mxu0 0
    %1660 = vmatpush1.bf16.msra.mxu0 0
    %1661 = vmatprep.subr.bf16.mxu0 0
    %1662 = vmatpush1.bf16.msra.mxu0 0
    %1663 = vmatprep.subr.bf16.mxu0 0
    %1664 = vmatpush1.bf16.msra.mxu0 0
    %1665 = vmatprep.mubr.bf16.mxu0 0
    %1666 = vmatmul.mubr.bf16.gmra.mrb[0].mxu0 %v1628
    %v1667 = vpop.f32.mrb[0].mxu0
    %v1668 = vadd.f32 0.0, %v1667
    %v1669 = vpop.f32.mrb[0].mxu0
    %v1670 = vpop.f32.mrb[0].mxu0
    %v1671 = vadd.f32 0.0, %v1670
    %v1672 = vpop.f32.mrb[0].mxu0
    %1673 = vdwg.mxu0
    %1676 = vrot.lane.b32.xlu0 %v1414, 8
    %v1677 = vpop.permute.xlu0 %1676
    %1678 = vrot.lane.b32.xlu0 %v1417, 8
    %v1679 = vpop.permute.xlu0 %1678
    %1684 = vrot.lane.b32.xlu0 %v1541, 16
    %v1685 = vpop.permute.xlu0 %1684
    %1686 = vrot.lane.b32.xlu0 %v1544, 16
    %v1687 = vpop.permute.xlu0 %1686
    %1692 = vrot.lane.b32.xlu0 %v1668, 24
    %v1693 = vpop.permute.xlu0 %1692
    %1694 = vrot.lane.b32.xlu0 %v1671, 24
    %v1695 = vpop.permute.xlu0 %1694
    %v1698 = vsel %vm270, %v1287, %v1677
    %v1699 = vsel %vm270, %v1290, %v1679
    %v1700 = vsel %vm804, %v1698, %v1685
    %v1701 = vsel %vm804, %v1699, %v1687
    %v1702 = vsel %vm807, %v1700, %v1693
    %v1703 = vsel %vm807, %v1701, %v1695
    %s1704 = scalar_lea.vmem %s8, 32
    %v1705 = vld [vmem:[%s1704] sm:$0xff]
    %v1706 = vld [vmem:[%s1704 + $0x8] sm:$0xff]
    %v1707 = vld [vmem:[%s1704 + $0x10] sm:$0xff]
    %v1708 = vld [vmem:[%s1704 + $0x18] sm:$0xff]
    %v1709 = vpack.c.bf16 %v1703, %v1702
    %v1710 = vpack.c.bf16 %v1706, %v1705
    %v1711 = vpack.c.bf16 %v1708, %v1707
    %v1713 = vsel %vm163, %v1709, 0
    %1715 = vmatprep.subr.bf16.mxu0 0
    %1716 = vmatpush1.bf16.msra.mxu0 %v1710
    %1717 = vmatprep.subr.bf16.mxu0 0
    %1718 = vmatpush1.bf16.msra.mxu0 %v1711
    %1719 = vmatprep.subr.bf16.mxu0 0
    %1720 = vmatpush1.bf16.msra.mxu0 0
    %1721 = vmatprep.subr.bf16.mxu0 0
    %1722 = vmatpush1.bf16.msra.mxu0 0
    %1723 = vmatprep.subr.bf16.mxu0 0
    %1724 = vmatpush1.bf16.msra.mxu0 0
    %1725 = vmatprep.subr.bf16.mxu0 0
    %1726 = vmatpush1.bf16.msra.mxu0 0
    %1727 = vmatprep.subr.bf16.mxu0 0
    %1728 = vmatpush1.bf16.msra.mxu0 0
    %1729 = vmatprep.subr.bf16.mxu0 0
    %1730 = vmatpush1.bf16.msra.mxu0 0
    %1731 = vmatprep.subr.bf16.mxu0 0
    %1732 = vmatpush1.bf16.msra.mxu0 0
    %1733 = vmatprep.subr.bf16.mxu0 0
    %1734 = vmatpush1.bf16.msra.mxu0 0
    %1735 = vmatprep.subr.bf16.mxu0 0
    %1736 = vmatpush1.bf16.msra.mxu0 0
    %1737 = vmatprep.subr.bf16.mxu0 0
    %1738 = vmatpush1.bf16.msra.mxu0 0
    %1739 = vmatprep.subr.bf16.mxu0 0
    %1740 = vmatpush1.bf16.msra.mxu0 0
    %1741 = vmatprep.subr.bf16.mxu0 0
    %1742 = vmatpush1.bf16.msra.mxu0 0
    %1743 = vmatprep.subr.bf16.mxu0 0
    %1744 = vmatpush1.bf16.msra.mxu0 0
    %1745 = vmatprep.subr.bf16.mxu0 0
    %1746 = vmatpush1.bf16.msra.mxu0 0
    %1747 = vmatprep.mubr.bf16.mxu0 0
    %1748 = vmatmul.mubr.bf16.gmra.mrb[0].mxu0 %v1713
    %v1749 = vpop.f32.mrb[0].mxu0
    %v1750 = vadd.f32 0.0, %v1749
    %v1751 = vpop.f32.mrb[0].mxu0
    %v1752 = vpop.f32.mrb[0].mxu0
    %v1753 = vadd.f32 0.0, %v1752
    %v1754 = vpop.f32.mrb[0].mxu0
    %1755 = vdwg.mxu0
    %v1756 = vadd.f32 %v1058, %v1750
    %v1757 = vadd.f32 %v1059, %v1753
    %s1758 = scalar_lea.vmem %s9, 1
    %v1759 = vld [vmem:[%s1758] sm:$0x1]
    %v1761 = vlaneseq
    %v1762 = vshrl.u32 %v1761, 7
    %v1763 = vsub.s32 0, %v1762
    %v1764 = vrot.slane %v1759, %v1763
    %v1766 = vadd.f32 %v1756, %v1764
    %v1767 = vadd.f32 %v1757, %v1764
    %s1768 = scalar_lea.vmem %s10, 1
    %v1769 = vld [vmem:[%s1768] sm:$0x1]
    %s1770 = scalar_lea.vmem %s11, 1
    %v1771 = vld [vmem:[%s1770] sm:$0x1]
    %v1772 = vsel %vm163, %v1766, 0.0
    %1773 = vadd.xlane.f32.xlu0 %v1772
    %v1774 = vpop.xlane.xlu0 %1773
    %v1775 = vsel %vm167, %v1767, 0.0
    %1776 = vadd.xlane.f32.xlu0 %v1775
    %v1777 = vpop.xlane.xlu0 %1776
    %v1778 = vmul.f32 %v1774, %v171
    %v1779 = vmul.f32 %v1777, %v171
    %v1780 = vsub.f32 %v1766, %v1778
    %v1781 = vsub.f32 %v1767, %v1779
    %v1782 = vmul.f32 %v1780, %v1780
    %v1783 = vmul.f32 %v1781, %v1781
    %v1784 = vsel %vm163, %v1782, 0.0
    %1785 = vadd.xlane.f32.xlu0 %v1784
    %v1786 = vpop.xlane.xlu0 %1785
    %v1787 = vsel %vm167, %v1783, 0.0
    %1788 = vadd.xlane.f32.xlu0 %v1787
    %v1789 = vpop.xlane.xlu0 %1788
    %v1790 = vmul.f32 %v1786, %v171
    %v1791 = vmul.f32 %v1789, %v171
    %v1792 = vadd.f32 %v1790, 1e-12
    %v1793 = vadd.f32 %v1791, 1e-12
    %v1794 = vrsqrt.pop %v1792
    %v1795 = vrsqrt.pop %v1793
    %v1796 = vmul.f32 %v1780, %v1794
    %v1797 = vmul.f32 %v1781, %v1795
    %v1799 = vlaneseq
    %v1800 = vshrl.u32 %v1799, 7
    %v1801 = vsub.s32 0, %v1800
    %v1802 = vrot.slane %v1769, %v1801
    %v1804 = vmul.f32 %v1796, %v1802
    %v1805 = vmul.f32 %v1797, %v1802
    %v1807 = vlaneseq
    %v1808 = vshrl.u32 %v1807, 7
    %v1809 = vsub.s32 0, %v1808
    %v1810 = vrot.slane %v1771, %v1809
    %v1812 = vadd.f32 %v1804, %v1810
    %v1813 = vadd.f32 %v1805, %v1810
    %s1814 = scalar_lea.vmem %s12, 32
    %v1815 = vld [vmem:[%s1814] sm:$0xff]
    %v1816 = vld [vmem:[%s1814 + $0x8] sm:$0xff]
    %v1817 = vld [vmem:[%s1814 + $0x10] sm:$0xff]
    %v1818 = vld [vmem:[%s1814 + $0x18] sm:$0xff]
    %v1819 = vpack.c.bf16 %v1813, %v1812
    %v1820 = vpack.c.bf16 %v1816, %v1815
    %v1821 = vpack.c.bf16 %v1818, %v1817
    %s1822 = scalar_lea.vmem %s13, 1
    %v1823 = vld [vmem:[%s1822] sm:$0x1]
    %v1825 = vlaneseq
    %v1826 = vshrl.u32 %v1825, 7
    %v1827 = vsub.s32 0, %v1826
    %v1828 = vrot.slane %v1823, %v1827
    %v1831 = vsel %vm163, %v1819, 0
    %1833 = vmatprep.subr.bf16.mxu0 0
    %1834 = vmatpush1.bf16.msra.mxu0 %v1820
    %1835 = vmatprep.subr.bf16.mxu0 0
    %1836 = vmatpush1.bf16.msra.mxu0 %v1821
    %1837 = vmatprep.subr.bf16.mxu0 0
    %1838 = vmatpush1.bf16.msra.mxu0 0
    %1839 = vmatprep.subr.bf16.mxu0 0
    %1840 = vmatpush1.bf16.msra.mxu0 0
    %1841 = vmatprep.subr.bf16.mxu0 0
    %1842 = vmatpush1.bf16.msra.mxu0 0
    %1843 = vmatprep.subr.bf16.mxu0 0
    %1844 = vmatpush1.bf16.msra.mxu0 0
    %1845 = vmatprep.subr.bf16.mxu0 0
    %1846 = vmatpush1.bf16.msra.mxu0 0
    %1847 = vmatprep.subr.bf16.mxu0 0
    %1848 = vmatpush1.bf16.msra.mxu0 0
    %1849 = vmatprep.subr.bf16.mxu0 0
    %1850 = vmatpush1.bf16.msra.mxu0 0
    %1851 = vmatprep.subr.bf16.mxu0 0
    %1852 = vmatpush1.bf16.msra.mxu0 0
    %1853 = vmatprep.subr.bf16.mxu0 0
    %1854 = vmatpush1.bf16.msra.mxu0 0
    %1855 = vmatprep.subr.bf16.mxu0 0
    %1856 = vmatpush1.bf16.msra.mxu0 0
    %1857 = vmatprep.subr.bf16.mxu0 0
    %1858 = vmatpush1.bf16.msra.mxu0 0
    %1859 = vmatprep.subr.bf16.mxu0 0
    %1860 = vmatpush1.bf16.msra.mxu0 0
    %1861 = vmatprep.subr.bf16.mxu0 0
    %1862 = vmatpush1.bf16.msra.mxu0 0
    %1863 = vmatprep.subr.bf16.mxu0 0
    %1864 = vmatpush1.bf16.msra.mxu0 0
    %1865 = vmatprep.mubr.bf16.mxu0 0
    %1866 = vmatmul.mubr.bf16.gmra.mrb[0].mxu0 %v1831
    %v1867 = vpop.f32.mrb[0].mxu0
    %v1868 = vadd.f32 %v1828, %v1867
    %v1869 = vpop.f32.mrb[0].mxu0
    %v1870 = vpop.f32.mrb[0].mxu0
    %v1871 = vadd.f32 %v1828, %v1870
    %v1872 = vpop.f32.mrb[0].mxu0
    %1873 = vdwg.mxu0
    %v1874 = vmul.f32 %v1868, 0.5
    %v1875 = vmul.f32 %v1871, 0.5
    %v1876 = vmul.f32 %v1868, 0.044715
    %v1877 = vmul.f32 %v1871, 0.044715
    %v1878 = vmul.f32 %v1876, %v1868
    %v1879 = vmul.f32 %v1877, %v1871
    %v1880 = vmul.f32 %v1878, %v1868
    %v1881 = vmul.f32 %v1879, %v1871
    %v1882 = vadd.f32 %v1868, %v1880
    %v1883 = vadd.f32 %v1871, %v1881
    %v1884 = vmul.f32 %v1882, 0.7978846
    %v1885 = vmul.f32 %v1883, 0.7978846
    %v1886 = vtanh.pop %v1884
    %v1887 = vtanh.pop %v1885
    %v1888 = vadd.f32 %v1886, 1.0
    %v1889 = vadd.f32 %v1887, 1.0
    %v1890 = vmul.f32 %v1874, %v1888
    %v1891 = vmul.f32 %v1875, %v1889
    %s1892 = scalar_lea.vmem %s14, 64
    %v1893 = vld [vmem:[%s1892] sm:$0xff]
    %v1894 = vld [vmem:[%s1892 + $0x8] sm:$0xff]
    %v1895 = vld [vmem:[%s1892 + $0x10] sm:$0xff]
    %v1896 = vld [vmem:[%s1892 + $0x18] sm:$0xff]
    %v1897 = vld [vmem:[%s1892 + $0x20] sm:$0xff]
    %v1898 = vld [vmem:[%s1892 + $0x28] sm:$0xff]
    %v1899 = vld [vmem:[%s1892 + $0x30] sm:$0xff]
    %v1900 = vld [vmem:[%s1892 + $0x38] sm:$0xff]
    %v1901 = vpack.c.bf16 %v1891, %v1890
    %v1902 = vpack.c.bf16 %v1894, %v1893
    %v1903 = vpack.c.bf16 %v1896, %v1895
    %v1904 = vpack.c.bf16 %v1898, %v1897
    %v1905 = vpack.c.bf16 %v1900, %v1899
    %v1907 = vsel %vm116, %v1901, 0
    %1909 = vmatprep.subr.bf16.mxu0 0
    %1910 = vmatpush1.bf16.msra.mxu0 %v1902
    %1911 = vmatprep.subr.bf16.mxu0 0
    %1912 = vmatpush1.bf16.msra.mxu0 %v1903
    %1913 = vmatprep.subr.bf16.mxu0 0
    %1914 = vmatpush1.bf16.msra.mxu0 %v1904
    %1915 = vmatprep.subr.bf16.mxu0 0
    %1916 = vmatpush1.bf16.msra.mxu0 %v1905
    %1917 = vmatprep.subr.bf16.mxu0 0
    %1918 = vmatpush1.bf16.msra.mxu0 0
    %1919 = vmatprep.subr.bf16.mxu0 0
    %1920 = vmatpush1.bf16.msra.mxu0 0
    %1921 = vmatprep.subr.bf16.mxu0 0
    %1922 = vmatpush1.bf16.msra.mxu0 0
    %1923 = vmatprep.subr.bf16.mxu0 0
    %1924 = vmatpush1.bf16.msra.mxu0 0
    %1925 = vmatprep.subr.bf16.mxu0 0
    %1926 = vmatpush1.bf16.msra.mxu0 0
    %1927 = vmatprep.subr.bf16.mxu0 0
    %1928 = vmatpush1.bf16.msra.mxu0 0
    %1929 = vmatprep.subr.bf16.mxu0 0
    %1930 = vmatpush1.bf16.msra.mxu0 0
    %1931 = vmatprep.subr.bf16.mxu0 0
    %1932 = vmatpush1.bf16.msra.mxu0 0
    %1933 = vmatprep.subr.bf16.mxu0 0
    %1934 = vmatpush1.bf16.msra.mxu0 0
    %1935 = vmatprep.subr.bf16.mxu0 0
    %1936 = vmatpush1.bf16.msra.mxu0 0
    %1937 = vmatprep.subr.bf16.mxu0 0
    %1938 = vmatpush1.bf16.msra.mxu0 0
    %1939 = vmatprep.subr.bf16.mxu0 0
    %1940 = vmatpush1.bf16.msra.mxu0 0
    %1941 = vmatprep.mubr.bf16.mxu0 0
    %1942 = vmatmul.mubr.bf16.gmra.mrb[0].mxu0 %v1907
    %v1943 = vpop.f32.mrb[0].mxu0
    %v1944 = vadd.f32 0.0, %v1943
    %v1945 = vpop.f32.mrb[0].mxu0
    %v1946 = vpop.f32.mrb[0].mxu0
    %v1947 = vadd.f32 0.0, %v1946
    %v1948 = vpop.f32.mrb[0].mxu0
    %1949 = vdwg.mxu0
    %v1950 = vadd.f32 %v1766, %v1944
    %v1951 = vadd.f32 %v1767, %v1947
    %s1952 = scalar_lea.vmem %s15, 1
    %v1953 = vld [vmem:[%s1952] sm:$0x1]
    %v1955 = vlaneseq
    %v1956 = vshrl.u32 %v1955, 7
    %v1957 = vsub.s32 0, %v1956
    %v1958 = vrot.slane %v1953, %v1957
    %v1960 = vadd.f32 %v1950, %v1958
    %v1961 = vadd.f32 %v1951, %v1958
    %v1962 = vld [vmem:[%s18] sm:$0x3]
    %v1964 = vsel %vm322, %v1962, 0
    %vm1966 = vcmask 1041408
    %v1968 = vsel %vm1966, %v1961, 0
    %1970 = vmatprep.subr.mxu0 0.0
    %1971 = vmatpush1.msra.mxu0 %v1960
    %1972 = vmatprep.subr.mxu0 0.0
    %1973 = vmatpush1.msra.mxu0 %v1968
    %1974 = vmatprep.subr.mxu0 0.0
    %1975 = vmatpush1.msra.mxu0 0.0
    %1976 = vmatprep.subr.mxu0 0.0
    %1977 = vmatpush1.msra.mxu0 0.0
    %1978 = vmatprep.subr.mxu0 0.0
    %1979 = vmatpush1.msra.mxu0 0.0
    %1980 = vmatprep.subr.mxu0 0.0
    %1981 = vmatpush1.msra.mxu0 0.0
    %1982 = vmatprep.subr.mxu0 0.0
    %1983 = vmatpush1.msra.mxu0 0.0
    %1984 = vmatprep.subr.mxu0 0.0
    %1985 = vmatpush1.msra.mxu0 0.0
    %1986 = vmatprep.subr.mxu0 0.0
    %1987 = vmatpush1.msra.mxu0 0.0
    %1988 = vmatprep.subr.mxu0 0.0
    %1989 = vmatpush1.msra.mxu0 0.0
    %1990 = vmatprep.subr.mxu0 0.0
    %1991 = vmatpush1.msra.mxu0 0.0
    %1992 = vmatprep.subr.mxu0 0.0
    %1993 = vmatpush1.msra.mxu0 0.0
    %1994 = vmatprep.subr.mxu0 0.0
    %1995 = vmatpush1.msra.mxu0 0.0
    %1996 = vmatprep.subr.mxu0 0.0
    %1997 = vmatpush1.msra.mxu0 0.0
    %1998 = vmatprep.subr.mxu0 0.0
    %1999 = vmatpush1.msra.mxu0 0.0
    %2000 = vmatprep.subr.mxu0 0.0
    %2001 = vmatpush1.msra.mxu0 0.0
    %2002 = vmatprep.subr.mxu0 0.0
    %2003 = vmatpush1.msra.mxu0 0.0
    %2004 = vmatprep.subr.mxu0 0.0
    %2005 = vmatpush1.msra.mxu0 0.0
    %2006 = vmatprep.subr.mxu0 0.0
    %2007 = vmatpush1.msra.mxu0 0.0
    %2008 = vmatprep.subr.mxu0 0.0
    %2009 = vmatpush1.msra.mxu0 0.0
    %2010 = vmatprep.subr.mxu0 0.0
    %2011 = vmatpush1.msra.mxu0 0.0
    %2012 = vmatprep.subr.mxu0 0.0
    %2013 = vmatpush1.msra.mxu0 0.0
    %2014 = vmatprep.subr.mxu0 0.0
    %2015 = vmatpush1.msra.mxu0 0.0
    %2016 = vmatprep.subr.mxu0 0.0
    %2017 = vmatpush1.msra.mxu0 0.0
    %2018 = vmatprep.subr.mxu0 0.0
    %2019 = vmatpush1.msra.mxu0 0.0
    %2020 = vmatprep.subr.mxu0 0.0
    %2021 = vmatpush1.msra.mxu0 0.0
    %2022 = vmatprep.subr.mxu0 0.0
    %2023 = vmatpush1.msra.mxu0 0.0
    %2024 = vmatprep.subr.mxu0 0.0
    %2025 = vmatpush1.msra.mxu0 0.0
    %2026 = vmatprep.subr.mxu0 0.0
    %2027 = vmatpush1.msra.mxu0 0.0
    %2028 = vmatprep.subr.mxu0 0.0
    %2029 = vmatpush1.msra.mxu0 0.0
    %2030 = vmatprep.subr.mxu0 0.0
    %2031 = vmatpush1.msra.mxu0 0.0
    %2032 = vmatprep.subr.mxu0 0.0
    %2033 = vmatpush1.msra.mxu0 0.0
    %2034 = vmatprep.mubr.f32.mxu0 0.0
    %2035 = vmatmul.mubr.f32.gmra.mrb[0].mxu0 %v1964
    %v2036 = vpop.f32.mrb[0].mxu0
    %v2037 = vadd.f32 0.0, %v2036
    %v2038 = vpop.f32.mrb[0].mxu0
    %2039 = vdwg.mxu0
    %v2040 = vld [vmem:[%s16] sm:$0x1]
    %v2041 = vld [vmem:[%s17] sm:$0x1]
    %v2042 = vsel %vm167, %v2037, 0.0
    %2043 = vadd.xlane.f32.xlu0 %v2042
    %v2044 = vpop.xlane.xlu0 %2043
    %v2045 = vmul.f32 %v2044, %v171
    %v2046 = vsub.f32 %v2037, %v2045
    %v2047 = vmul.f32 %v2046, %v2046
    %v2048 = vsel %vm167, %v2047, 0.0
    %2049 = vadd.xlane.f32.xlu0 %v2048
    %v2050 = vpop.xlane.xlu0 %2049
    %v2051 = vmul.f32 %v2050, %v171
    %v2052 = vadd.f32 %v2051, 1e-12
    %v2053 = vrsqrt.pop %v2052
    %v2054 = vmul.f32 %v2046, %v2053
    %v2056 = vlaneseq
    %v2057 = vshrl.u32 %v2056, 7
    %v2058 = vsub.s32 0, %v2057
    %v2059 = vrot.slane %v2040, %v2058
    %v2061 = vmul.f32 %v2054, %v2059
    %v2063 = vlaneseq
    %v2064 = vshrl.u32 %v2063, 7
    %v2065 = vsub.s32 0, %v2064
    %v2066 = vrot.slane %v2041, %v2065
    %v2068 = vadd.f32 %v2061, %v2066
    %v2069 = vld [vmem:[%s19] sm:$0xff]
    %v2070 = vld [vmem:[%s19 + $0x8] sm:$0xff]
    %v2071 = vld [vmem:[%s19 + $0x10] sm:$0xff]
    %v2072 = vld [vmem:[%s19 + $0x18] sm:$0xff]
    %v2073 = vpack.c.bf16 %v2068, %v2068
    %v2074 = vpack.c.bf16 %v2070, %v2069
    %v2075 = vpack.c.bf16 %v2072, %v2071
    %v2076 = vld [vmem:[%s20] sm:$0x1]
    %v2078 = vlaneseq
    %v2079 = vshrl.u32 %v2078, 7
    %v2080 = vsub.s32 0, %v2079
    %v2081 = vrot.slane %v2076, %v2080
    %v2084 = vsel %vm163, %v2073, 0
    %2086 = vmatprep.subr.bf16.mxu0 0
    %2087 = vmatpush1.bf16.msra.mxu0 %v2074
    %2088 = vmatprep.subr.bf16.mxu0 0
    %2089 = vmatpush1.bf16.msra.mxu0 %v2075
    %2090 = vmatprep.subr.bf16.mxu0 0
    %2091 = vmatpush1.bf16.msra.mxu0 0
    %2092 = vmatprep.subr.bf16.mxu0 0
    %2093 = vmatpush1.bf16.msra.mxu0 0
    %2094 = vmatprep.subr.bf16.mxu0 0
    %2095 = vmatpush1.bf16.msra.mxu0 0
    %2096 = vmatprep.subr.bf16.mxu0 0
    %2097 = vmatpush1.bf16.msra.mxu0 0
    %2098 = vmatprep.subr.bf16.mxu0 0
    %2099 = vmatpush1.bf16.msra.mxu0 0
    %2100 = vmatprep.subr.bf16.mxu0 0
    %2101 = vmatpush1.bf16.msra.mxu0 0
    %2102 = vmatprep.subr.bf16.mxu0 0
    %2103 = vmatpush1.bf16.msra.mxu0 0
    %2104 = vmatprep.subr.bf16.mxu0 0
    %2105 = vmatpush1.bf16.msra.mxu0 0
    %2106 = vmatprep.subr.bf16.mxu0 0
    %2107 = vmatpush1.bf16.msra.mxu0 0
    %2108 = vmatprep.subr.bf16.mxu0 0
    %2109 = vmatpush1.bf16.msra.mxu0 0
    %2110 = vmatprep.subr.bf16.mxu0 0
    %2111 = vmatpush1.bf16.msra.mxu0 0
    %2112 = vmatprep.subr.bf16.mxu0 0
    %2113 = vmatpush1.bf16.msra.mxu0 0
    %2114 = vmatprep.subr.bf16.mxu0 0
    %2115 = vmatpush1.bf16.msra.mxu0 0
    %2116 = vmatprep.subr.bf16.mxu0 0
    %2117 = vmatpush1.bf16.msra.mxu0 0
    %2118 = vmatprep.mubr.bf16.mxu0 0
    %2119 = vmatmul.mubr.bf16.gmra.mrb[0].mxu0 %v2084
    %v2120 = vpop.f32.mrb[0].mxu0
    %v2121 = vadd.f32 %v2081, %v2120
    %v2122 = vpop.f32.mrb[0].mxu0
    %v2123 = vpop.f32.mrb[0].mxu0
    %v2124 = vpop.f32.mrb[0].mxu0
    %2125 = vdwg.mxu0
    %vm2126 = vcmask 17408
    %2127 = vst.msk [vmem:[#allocation2] sm:$0x3] %vm2126, %v2121
    // Predicated region
    $region86: #{vit_forward.1} parent=1 // pred_check
      _
    $region87: #{vit_forward.1} parent=1 // pred_check_branch
      %2129 = sbr.rel (0) target = $region89
    $region88: #{vit_forward.1} parent=1 // pred_region
      %s2131 = ssub.s32 32, 32
      %2132 = vsyncadd [#allocation3], %s2131
      %s2134 = sshll.u32 [#allocation2], 4
      %s2135 = int_to_ptr.vmem [resolvable:$true] %s2134
      %2137 = dma.vmem_to_hbm [thread:$0]  %s2135, 32, %s21, [#allocation3]
    $region89: #{vit_forward.1} parent=1 // pred_fallthru
      _
    // Predicated region
    $region90: #{vit_forward.1} parent=1 // pred_check
      _
    $region91: #{vit_forward.1} parent=1 // pred_check_branch
      %2139 = sbr.rel (0) target = $region93
    $region92: #{vit_forward.1} parent=1 // pred_region
      %2140 = dma.done [#allocation3], 32
    $region93: #{vit_forward.1} parent=1 // pred_fallthru
      _
    %2141 = vsyncpa [#allocation3], 1

</llo_original>
